<compile_context>
chip_gen: v7x
topology: tpu7x:2x2x1
jax: 0.10.0
libtpu: 0.0.40
codegen_flags: <defaults>
</compile_context>

<pallas_src>
import numpy as np
import jax
import jax.numpy as jnp
from jax import lax
from jax.experimental import pallas as pl
from jax.experimental.pallas import tpu as pltpu


# ----------------------- host-side precompute (glue) ------------------------
def interp_matrix(n_in: int, n_out: int) -> np.ndarray:
    """M (n_out, n_in): M @ v = 1-D bilinear resize, align_corners=True."""
    M = np.zeros((n_out, n_in), dtype=np.float32)
    if n_out == 1 or n_in == 1:
        M[:, 0] = 1.0
        return M
    scale = (n_in - 1) / (n_out - 1)
    for o in range(n_out):
        src = o * scale
        i0 = min(int(np.floor(src)), n_in - 1)
        i1 = min(i0 + 1, n_in - 1)
        f = src - i0
        M[o, i0] += 1.0 - f
        M[o, i1] += f
    return M


# ------------------------------ fused forward -------------------------------
def upsample_conv_forward(x_nchw, w1_oihw, w2_oihw):
    N, Cin, H, W = x_nchw.shape
    Cout = w1_oihw.shape[0]
    H2, W2 = 2 * H, 2 * W
    P = H2 * W2                               # flattened upsampled spatial
    # NOTE: lane-dense stores assume P % 128 == 0 (true here); other sizes
    # still work, just with masked partial stores / layout padding.
    L = ((W2 + 1 + 127) // 128) * 128         # halo width (>= W2+1), lane-aligned
    Cmax = max(Cin, Cout)

    # Separable bilinear-x2 operands (tiny; kept f32 for accuracy).
    wwT = jnp.asarray(interp_matrix(W, W2).T)                       # (W,  W2)
    wh = jnp.asarray(interp_matrix(H, H2))                          # (H2, H)
    # Conv weights, tap-major (9, Cout, C); bf16 MXU operands, f32 accumulate.
    w1t = jnp.transpose(w1_oihw, (2, 3, 0, 1)).reshape(9, Cout, Cin).astype(jnp.bfloat16)
    w2t = jnp.transpose(w2_oihw, (2, 3, 0, 1)).reshape(9, Cout, Cout).astype(jnp.bfloat16)
    # (N, Cin*H, W): free host reshape; lets the W-interp be one 2-D matmul.
    x2d = x_nchw.reshape(N, Cin * H, W)

    def kernel(x_ref, wwT_ref, wh_ref, w1_ref, w2_ref, o_ref, pad_ref):
        # ---- separable bilinear x2 upsample (align_corners=True), f32.
        # W axis: one matmul over all (channel, row) pairs.
        t = jnp.dot(x_ref[0], wwT_ref[...],
                    preferred_element_type=jnp.float32)             # (Cin*H, W2)
        t3 = t.reshape(Cin, H, W2)
        # H axis: small batched matmul (batch = channels).
        wh_b = jnp.broadcast_to(wh_ref[...], (Cin, H2, H))
        xu = jnp.einsum('cih,chj->cij', wh_b, t3,
                        preferred_element_type=jnp.float32)         # (Cin, H2, W2)
        xu = xu.reshape(Cin, P)                                     # (Cin, P)

        # Per-column validity masks; only the 6 dx != 0 taps need them
        # (dy out-of-range reads already land in the zero halo).
        col = lax.broadcasted_iota(jnp.int32, (1, P), 1) % W2
        dx_mask = {-1: col >= 1, 0: None, 1: col <= W2 - 2}

        def conv3x3_in_relu(act, C, w_ref):
            # act: (C, P) f32 -> ReLU(InstanceNorm(conv3x3_pad1(act))) : (Cout, P) f32
            # Zero only the halos; the middle is fully overwritten.
            pad_ref[:C, 0:L] = jnp.zeros((C, L), pad_ref.dtype)
            pad_ref[:C, L + P:L + P + L] = jnp.zeros((C, L), pad_ref.dtype)
            pad_ref[:C, L:L + P] = act.astype(pad_ref.dtype)        # bf16
            # 9 per-tap matmuls accumulated in f32 (no (9C, P) im2col tensor).
            acc = None
            for dy in (-1, 0, 1):
                for dx in (-1, 0, 1):
                    k = (dy + 1) * 3 + (dx + 1)
                    s = L + dy * W2 + dx
                    tap = pad_ref[:C, s:s + P]                      # (C, P) bf16
                    m = dx_mask[dx]
                    if m is not None:
                        tap = jnp.where(m, tap, jnp.zeros_like(tap))
                    contrib = jnp.dot(w_ref[k], tap,
                                      preferred_element_type=jnp.float32)
                    acc = contrib if acc is None else acc + contrib
            # InstanceNorm2d (affine=False, eps=1e-5, biased var) + ReLU, f32.
            mean = jnp.mean(acc, axis=1, keepdims=True)
            cent = acc - mean
            var = jnp.mean(cent * cent, axis=1, keepdims=True)
            return jnp.maximum(cent * lax.rsqrt(var + 1e-5), 0.0)

        y1 = conv3x3_in_relu(xu, Cin, w1_ref)                        # (Cout, P)
        y2 = conv3x3_in_relu(y1, Cout, w2_ref)                       # (Cout, P)
        o_ref[0] = y2.astype(o_ref.dtype)

    out_flat = pl.pallas_call(
        kernel,
        out_shape=jax.ShapeDtypeStruct((N, Cout, P), x_nchw.dtype),
        grid_spec=pltpu.PrefetchScalarGridSpec(
            num_scalar_prefetch=0,
            grid=(N,),
            in_specs=[
                pl.BlockSpec((1, Cin * H, W), lambda n: (n, 0, 0)),
                pl.BlockSpec((W, W2), lambda n: (0, 0)),
                pl.BlockSpec((H2, H), lambda n: (0, 0)),
                pl.BlockSpec((9, Cout, Cin), lambda n: (0, 0, 0)),
                pl.BlockSpec((9, Cout, Cout), lambda n: (0, 0, 0)),
            ],
            out_specs=pl.BlockSpec((1, Cout, P), lambda n: (n, 0, 0)),
            # One shared zero-haloed activation scratch for BOTH convs (bf16).
            scratch_shapes=[pltpu.VMEM((Cmax, P + 2 * L), jnp.bfloat16)],
        ),
        compiler_params=pltpu.CompilerParams(
            dimension_semantics=("parallel",),
        ),
    )(x2d, wwT, wh, w1t, w2t)

    return out_flat.reshape(N, Cout, H2, W2)


# ----------------------- pure-JAX reference (checking) ----------------------
def reference_forward(x_nchw, w1_oihw, w2_oihw):
    N, Cin, H, W = x_nchw.shape
    H2, W2 = 2 * H, 2 * W
    Wh = jnp.asarray(interp_matrix(H, H2))
    Ww = jnp.asarray(interp_matrix(W, W2))
    xu = jnp.einsum('ih,nchw,jw->ncij', Wh, x_nchw, Ww,
                    precision=lax.Precision.HIGHEST)

    def block(a, w):
        y = lax.conv_general_dilated(
            a, w, window_strides=(1, 1), padding='SAME',
            dimension_numbers=('NCHW', 'OIHW', 'NCHW'),
            precision=lax.Precision.HIGHEST)
        mean = jnp.mean(y, axis=(2, 3), keepdims=True)
        var = jnp.mean((y - mean) ** 2, axis=(2, 3), keepdims=True)
        return jnp.maximum((y - mean) * lax.rsqrt(var + 1e-5), 0.0)

    return block(block(xu, w1_oihw), w2_oihw)


if __name__ == "__main__":
    N, Cin, Cout, H, W = 2, 4, 8, 16, 16

    key = jax.random.PRNGKey(0)
    kx, k1, k2 = jax.random.split(key, 3)
    x = jax.random.normal(kx, (N, Cin, H, W), dtype=jnp.float32)
    # PyTorch-layout (OIHW) synthetic conv weights.
    w1 = 0.1 * jax.random.normal(k1, (Cout, Cin, 3, 3), dtype=jnp.float32)
    w2 = 0.1 * jax.random.normal(k2, (Cout, Cout, 3, 3), dtype=jnp.float32)

    out = jax.jit(upsample_conv_forward)(x, w1, w2)
    out = jax.block_until_ready(out)

    assert out.shape == (N, Cout, 2 * H, 2 * W), out.shape
    assert bool(jnp.all(jnp.isfinite(out)))

    ref = reference_forward(x, w1, w2)
    err = float(jnp.max(jnp.abs(out - ref)))
    # bf16 MXU operands (f32 accumulation) per the perf review -> slightly
    # looser tolerance than a pure-f32 kernel.
    assert err < 3e-2, f"max abs err vs reference: {err}"

    print("KERNEL_OK")
</pallas_src>

<mosaic_0001>
module attributes {stable_mosaic.version = 11 : i64} {
  func.func @kernel(%arg0: i32, %arg1: memref<1x64x16xf32, #tpu.memory_space<vmem>>, %arg2: memref<16x32xf32, #tpu.memory_space<vmem>>, %arg3: memref<32x16xf32, #tpu.memory_space<vmem>>, %arg4: memref<9x8x4xbf16, #tpu.memory_space<vmem>>, %arg5: memref<9x8x8xbf16, #tpu.memory_space<vmem>>, %arg6: memref<1x8x1024xf32, #tpu.memory_space<vmem>>, %arg7: memref<8x1280xbf16, #tpu.memory_space<vmem>>) attributes {dimension_semantics = [#tpu.dimension_semantics<parallel>], iteration_bounds = array<i64: 2>, scalar_prefetch = 0 : i64, scratch_operands = 1 : i64, tpu.core_type = #tpu.core_type<tc>, window_params = [{transform_indices = @transform_0, window_bounds = array<i64: 1, 64, 16>}, {pipeline_mode = #tpu.pipeline_mode<synchronous>, transform_indices = @transform_1, window_bounds = array<i64: 16, 32>}, {pipeline_mode = #tpu.pipeline_mode<synchronous>, transform_indices = @transform_2, window_bounds = array<i64: 32, 16>}, {pipeline_mode = #tpu.pipeline_mode<synchronous>, transform_indices = @transform_3, window_bounds = array<i64: 9, 8, 4>}, {pipeline_mode = #tpu.pipeline_mode<synchronous>, transform_indices = @transform_4, window_bounds = array<i64: 9, 8, 8>}, {transform_indices = @transform_5, window_bounds = array<i64: 1, 8, 1024>}]} {
    %c0 = arith.constant 0 : index
    %c0_0 = arith.constant 0 : index
    %c0_1 = arith.constant 0 : index
    %0 = vector.load %arg1[%c0, %c0_0, %c0_1] : memref<1x64x16xf32, #tpu.memory_space<vmem>>, vector<1x64x16xf32>
    %1 = vector.shape_cast %0 : vector<1x64x16xf32> to vector<64x16xf32>
    %c0_2 = arith.constant 0 : index
    %c0_3 = arith.constant 0 : index
    %2 = vector.load %arg2[%c0_2, %c0_3] : memref<16x32xf32, #tpu.memory_space<vmem>>, vector<16x32xf32>
    %cst = arith.constant dense<0.000000e+00> : vector<64x32xf32>
    %3 = tpu.matmul %1, %2, %cst {dimension_numbers = #tpu.dot_dimension_numbers<[1], [0], [0], [1], [0, 0, 1, 1], [], []>} : vector<64x16xf32>, vector<16x32xf32>, vector<64x32xf32> -> vector<64x32xf32>
    %4 = vector.shape_cast %3 : vector<64x32xf32> to vector<4x16x32xf32>
    %c0_4 = arith.constant 0 : index
    %c0_5 = arith.constant 0 : index
    %5 = vector.load %arg3[%c0_4, %c0_5] : memref<32x16xf32, #tpu.memory_space<vmem>>, vector<32x16xf32>
    %6 = vector.shape_cast %5 : vector<32x16xf32> to vector<1x32x16xf32>
    %7 = vector.broadcast %6 : vector<1x32x16xf32> to vector<4x32x16xf32>
    "tpu.trace_start"() <{level = 10 : i32, message = "cih,chj->cij"}> : () -> ()
    %cst_6 = arith.constant dense<0.000000e+00> : vector<4x32x32xf32>
    %8 = tpu.matmul %7, %4, %cst_6 {dimension_numbers = #tpu.dot_dimension_numbers<[2], [1], [1], [2], [0, 0, 0, 1, 1, 2], [0], [0]>} : vector<4x32x16xf32>, vector<4x16x32xf32>, vector<4x32x32xf32> -> vector<4x32x32xf32>
    "tpu.trace_stop"() : () -> ()
    %9 = vector.shape_cast %8 : vector<4x32x32xf32> to vector<4x1024xf32>
    %10 = tpu.iota {dimensions = array<i32: 1>} : vector<1x1024xi32>
    %c32_i32 = arith.constant 32 : i32
    %c0_i32 = arith.constant 0 : i32
    %11 = arith.cmpi eq, %c32_i32, %c0_i32 : i32
    %c1_i32 = arith.constant 1 : i32
    %12 = arith.select %11, %c1_i32, %c32_i32 : i32
    %13 = vector.broadcast %12 : i32 to vector<1x1024xi32>
    %14 = arith.remsi %10, %13 : vector<1x1024xi32>
    %c0_i32_7 = arith.constant 0 : i32
    %15 = vector.broadcast %c0_i32_7 : i32 to vector<1x1024xi32>
    %16 = arith.cmpi ne, %14, %15 : vector<1x1024xi32>
    %c0_i32_8 = arith.constant 0 : i32
    %17 = vector.broadcast %c0_i32_8 : i32 to vector<1x1024xi32>
    %18 = arith.cmpi slt, %14, %17 : vector<1x1024xi32>
    %c0_i32_9 = arith.constant 0 : i32
    %19 = arith.cmpi slt, %12, %c0_i32_9 : i32
    %20 = vector.broadcast %19 : i1 to vector<1x1024xi1>
    %21 = vector.broadcast %20 : vector<1x1024xi1> to vector<1x1024xi1>
    %22 = arith.xori %18, %21 : vector<1x1024xi1>
    %23 = arith.andi %22, %16 : vector<1x1024xi1>
    %24 = vector.broadcast %12 : i32 to vector<1x1024xi32>
    %25 = arith.addi %14, %24 : vector<1x1024xi32>
    %26 = arith.select %23, %25, %14 : vector<1x1024xi1>, vector<1x1024xi32>
    %c1_i32_10 = arith.constant 1 : i32
    %27 = vector.broadcast %c1_i32_10 : i32 to vector<1x1024xi32>
    %28 = arith.cmpi sge, %26, %27 : vector<1x1024xi32>
    %c30_i32 = arith.constant 30 : i32
    %29 = vector.broadcast %c30_i32 : i32 to vector<1x1024xi32>
    %30 = arith.cmpi sle, %26, %29 : vector<1x1024xi32>
    %cst_11 = arith.constant 0.000000e+00 : bf16
    %31 = vector.broadcast %cst_11 : bf16 to vector<4x128xbf16>
    %c0_12 = arith.constant 0 : index
    %c0_13 = arith.constant 0 : index
    %32 = vector.load %arg7[%c0_12, %c0_13] : memref<8x1280xbf16, #tpu.memory_space<vmem>>, vector<4x128xbf16>
    tpu.vector_store %arg7[%c0_12, %c0_13], %31 {strides = array<i32>} : memref<8x1280xbf16, #tpu.memory_space<vmem>>, vector<4x128xbf16>,
    %cst_14 = arith.constant 0.000000e+00 : bf16
    %33 = vector.broadcast %cst_14 : bf16 to vector<4x128xbf16>
    %c0_15 = arith.constant 0 : index
    %c1152 = arith.constant 1152 : index
    %34 = vector.load %arg7[%c0_15, %c1152] : memref<8x1280xbf16, #tpu.memory_space<vmem>>, vector<4x128xbf16>
    tpu.vector_store %arg7[%c0_15, %c1152], %33 {strides = array<i32>} : memref<8x1280xbf16, #tpu.memory_space<vmem>>, vector<4x128xbf16>,
    %35 = arith.truncf %9 : vector<4x1024xf32> to vector<4x1024xbf16>
    %c0_16 = arith.constant 0 : index
    %c128 = arith.constant 128 : index
    %36 = vector.load %arg7[%c0_16, %c128] : memref<8x1280xbf16, #tpu.memory_space<vmem>>, vector<4x1024xbf16>
    tpu.vector_store %arg7[%c0_16, %c128], %35 {strides = array<i32>} : memref<8x1280xbf16, #tpu.memory_space<vmem>>, vector<4x1024xbf16>,
    %c0_17 = arith.constant 0 : index
    %c95 = arith.constant 95 : index
    %37 = vector.load %arg7[%c0_17, %c95] : memref<8x1280xbf16, #tpu.memory_space<vmem>>, vector<4x1024xbf16>
    %cst_18 = arith.constant 0.000000e+00 : bf16
    %38 = vector.broadcast %cst_18 : bf16 to vector<4x1024xbf16>
    %39 = vector.shape_cast %28 : vector<1x1024xi1> to vector<1x1024xi1>
    %40 = vector.broadcast %39 : vector<1x1024xi1> to vector<4x1024xi1>
    %41 = arith.select %40, %37, %38 : vector<4x1024xi1>, vector<4x1024xbf16>
    %c0_19 = arith.constant 0 : index
    %c0_20 = arith.constant 0 : index
    %c0_21 = arith.constant 0 : index
    %42 = vector.load %arg4[%c0_19, %c0_20, %c0_21] : memref<9x8x4xbf16, #tpu.memory_space<vmem>>, vector<1x8x4xbf16>
    %43 = vector.shape_cast %42 : vector<1x8x4xbf16> to vector<8x4xbf16>
    %cst_22 = arith.constant dense<0.000000e+00> : vector<8x1024xf32>
    %44 = tpu.matmul %43, %41, %cst_22 {dimension_numbers = #tpu.dot_dimension_numbers<[1], [0], [0], [1], [0, 0, 1, 1], [], []>} : vector<8x4xbf16>, vector<4x1024xbf16>, vector<8x1024xf32> -> vector<8x1024xf32>
    %c0_23 = arith.constant 0 : index
    %c96 = arith.constant 96 : index
    %45 = vector.load %arg7[%c0_23, %c96] : memref<8x1280xbf16, #tpu.memory_space<vmem>>, vector<4x1024xbf16>
    %c1 = arith.constant 1 : index
    %c0_24 = arith.constant 0 : index
    %c0_25 = arith.constant 0 : index
    %46 = vector.load %arg4[%c1, %c0_24, %c0_25] : memref<9x8x4xbf16, #tpu.memory_space<vmem>>, vector<1x8x4xbf16>
    %47 = vector.shape_cast %46 : vector<1x8x4xbf16> to vector<8x4xbf16>
    %cst_26 = arith.constant dense<0.000000e+00> : vector<8x1024xf32>
    %48 = tpu.matmul %47, %45, %cst_26 {dimension_numbers = #tpu.dot_dimension_numbers<[1], [0], [0], [1], [0, 0, 1, 1], [], []>} : vector<8x4xbf16>, vector<4x1024xbf16>, vector<8x1024xf32> -> vector<8x1024xf32>
    %49 = arith.addf %44, %48 : vector<8x1024xf32>
    %c0_27 = arith.constant 0 : index
    %c97 = arith.constant 97 : index
    %50 = vector.load %arg7[%c0_27, %c97] : memref<8x1280xbf16, #tpu.memory_space<vmem>>, vector<4x1024xbf16>
    %cst_28 = arith.constant 0.000000e+00 : bf16
    %51 = vector.broadcast %cst_28 : bf16 to vector<4x1024xbf16>
    %52 = vector.shape_cast %30 : vector<1x1024xi1> to vector<1x1024xi1>
    %53 = vector.broadcast %52 : vector<1x1024xi1> to vector<4x1024xi1>
    %54 = arith.select %53, %50, %51 : vector<4x1024xi1>, vector<4x1024xbf16>
    %c2 = arith.constant 2 : index
    %c0_29 = arith.constant 0 : index
    %c0_30 = arith.constant 0 : index
    %55 = vector.load %arg4[%c2, %c0_29, %c0_30] : memref<9x8x4xbf16, #tpu.memory_space<vmem>>, vector<1x8x4xbf16>
    %56 = vector.shape_cast %55 : vector<1x8x4xbf16> to vector<8x4xbf16>
    %cst_31 = arith.constant dense<0.000000e+00> : vector<8x1024xf32>
    %57 = tpu.matmul %56, %54, %cst_31 {dimension_numbers = #tpu.dot_dimension_numbers<[1], [0], [0], [1], [0, 0, 1, 1], [], []>} : vector<8x4xbf16>, vector<4x1024xbf16>, vector<8x1024xf32> -> vector<8x1024xf32>
    %58 = arith.addf %49, %57 : vector<8x1024xf32>
    %c0_32 = arith.constant 0 : index
    %c127 = arith.constant 127 : index
    %59 = vector.load %arg7[%c0_32, %c127] : memref<8x1280xbf16, #tpu.memory_space<vmem>>, vector<4x1024xbf16>
    %cst_33 = arith.constant 0.000000e+00 : bf16
    %60 = vector.broadcast %cst_33 : bf16 to vector<4x1024xbf16>
    %61 = vector.shape_cast %28 : vector<1x1024xi1> to vector<1x1024xi1>
    %62 = vector.broadcast %61 : vector<1x1024xi1> to vector<4x1024xi1>
    %63 = arith.select %62, %59, %60 : vector<4x1024xi1>, vector<4x1024xbf16>
    %c3 = arith.constant 3 : index
    %c0_34 = arith.constant 0 : index
    %c0_35 = arith.constant 0 : index
    %64 = vector.load %arg4[%c3, %c0_34, %c0_35] : memref<9x8x4xbf16, #tpu.memory_space<vmem>>, vector<1x8x4xbf16>
    %65 = vector.shape_cast %64 : vector<1x8x4xbf16> to vector<8x4xbf16>
    %cst_36 = arith.constant dense<0.000000e+00> : vector<8x1024xf32>
    %66 = tpu.matmul %65, %63, %cst_36 {dimension_numbers = #tpu.dot_dimension_numbers<[1], [0], [0], [1], [0, 0, 1, 1], [], []>} : vector<8x4xbf16>, vector<4x1024xbf16>, vector<8x1024xf32> -> vector<8x1024xf32>
    %67 = arith.addf %58, %66 : vector<8x1024xf32>
    %c0_37 = arith.constant 0 : index
    %c128_38 = arith.constant 128 : index
    %68 = vector.load %arg7[%c0_37, %c128_38] : memref<8x1280xbf16, #tpu.memory_space<vmem>>, vector<4x1024xbf16>
    %c4 = arith.constant 4 : index
    %c0_39 = arith.constant 0 : index
    %c0_40 = arith.constant 0 : index
    %69 = vector.load %arg4[%c4, %c0_39, %c0_40] : memref<9x8x4xbf16, #tpu.memory_space<vmem>>, vector<1x8x4xbf16>
    %70 = vector.shape_cast %69 : vector<1x8x4xbf16> to vector<8x4xbf16>
    %cst_41 = arith.constant dense<0.000000e+00> : vector<8x1024xf32>
    %71 = tpu.matmul %70, %68, %cst_41 {dimension_numbers = #tpu.dot_dimension_numbers<[1], [0], [0], [1], [0, 0, 1, 1], [], []>} : vector<8x4xbf16>, vector<4x1024xbf16>, vector<8x1024xf32> -> vector<8x1024xf32>
    %72 = arith.addf %67, %71 : vector<8x1024xf32>
    %c0_42 = arith.constant 0 : index
    %c129 = arith.constant 129 : index
    %73 = vector.load %arg7[%c0_42, %c129] : memref<8x1280xbf16, #tpu.memory_space<vmem>>, vector<4x1024xbf16>
    %cst_43 = arith.constant 0.000000e+00 : bf16
    %74 = vector.broadcast %cst_43 : bf16 to vector<4x1024xbf16>
    %75 = vector.shape_cast %30 : vector<1x1024xi1> to vector<1x1024xi1>
    %76 = vector.broadcast %75 : vector<1x1024xi1> to vector<4x1024xi1>
    %77 = arith.select %76, %73, %74 : vector<4x1024xi1>, vector<4x1024xbf16>
    %c5 = arith.constant 5 : index
    %c0_44 = arith.constant 0 : index
    %c0_45 = arith.constant 0 : index
    %78 = vector.load %arg4[%c5, %c0_44, %c0_45] : memref<9x8x4xbf16, #tpu.memory_space<vmem>>, vector<1x8x4xbf16>
    %79 = vector.shape_cast %78 : vector<1x8x4xbf16> to vector<8x4xbf16>
    %cst_46 = arith.constant dense<0.000000e+00> : vector<8x1024xf32>
    %80 = tpu.matmul %79, %77, %cst_46 {dimension_numbers = #tpu.dot_dimension_numbers<[1], [0], [0], [1], [0, 0, 1, 1], [], []>} : vector<8x4xbf16>, vector<4x1024xbf16>, vector<8x1024xf32> -> vector<8x1024xf32>
    %81 = arith.addf %72, %80 : vector<8x1024xf32>
    %c0_47 = arith.constant 0 : index
    %c159 = arith.constant 159 : index
    %82 = vector.load %arg7[%c0_47, %c159] : memref<8x1280xbf16, #tpu.memory_space<vmem>>, vector<4x1024xbf16>
    %cst_48 = arith.constant 0.000000e+00 : bf16
    %83 = vector.broadcast %cst_48 : bf16 to vector<4x1024xbf16>
    %84 = vector.shape_cast %28 : vector<1x1024xi1> to vector<1x1024xi1>
    %85 = vector.broadcast %84 : vector<1x1024xi1> to vector<4x1024xi1>
    %86 = arith.select %85, %82, %83 : vector<4x1024xi1>, vector<4x1024xbf16>
    %c6 = arith.constant 6 : index
    %c0_49 = arith.constant 0 : index
    %c0_50 = arith.constant 0 : index
    %87 = vector.load %arg4[%c6, %c0_49, %c0_50] : memref<9x8x4xbf16, #tpu.memory_space<vmem>>, vector<1x8x4xbf16>
    %88 = vector.shape_cast %87 : vector<1x8x4xbf16> to vector<8x4xbf16>
    %cst_51 = arith.constant dense<0.000000e+00> : vector<8x1024xf32>
    %89 = tpu.matmul %88, %86, %cst_51 {dimension_numbers = #tpu.dot_dimension_numbers<[1], [0], [0], [1], [0, 0, 1, 1], [], []>} : vector<8x4xbf16>, vector<4x1024xbf16>, vector<8x1024xf32> -> vector<8x1024xf32>
    %90 = arith.addf %81, %89 : vector<8x1024xf32>
    %c0_52 = arith.constant 0 : index
    %c160 = arith.constant 160 : index
    %91 = vector.load %arg7[%c0_52, %c160] : memref<8x1280xbf16, #tpu.memory_space<vmem>>, vector<4x1024xbf16>
    %c7 = arith.constant 7 : index
    %c0_53 = arith.constant 0 : index
    %c0_54 = arith.constant 0 : index
    %92 = vector.load %arg4[%c7, %c0_53, %c0_54] : memref<9x8x4xbf16, #tpu.memory_space<vmem>>, vector<1x8x4xbf16>
    %93 = vector.shape_cast %92 : vector<1x8x4xbf16> to vector<8x4xbf16>
    %cst_55 = arith.constant dense<0.000000e+00> : vector<8x1024xf32>
    %94 = tpu.matmul %93, %91, %cst_55 {dimension_numbers = #tpu.dot_dimension_numbers<[1], [0], [0], [1], [0, 0, 1, 1], [], []>} : vector<8x4xbf16>, vector<4x1024xbf16>, vector<8x1024xf32> -> vector<8x1024xf32>
    %95 = arith.addf %90, %94 : vector<8x1024xf32>
    %c0_56 = arith.constant 0 : index
    %c161 = arith.constant 161 : index
    %96 = vector.load %arg7[%c0_56, %c161] : memref<8x1280xbf16, #tpu.memory_space<vmem>>, vector<4x1024xbf16>
    %cst_57 = arith.constant 0.000000e+00 : bf16
    %97 = vector.broadcast %cst_57 : bf16 to vector<4x1024xbf16>
    %98 = vector.shape_cast %30 : vector<1x1024xi1> to vector<1x1024xi1>
    %99 = vector.broadcast %98 : vector<1x1024xi1> to vector<4x1024xi1>
    %100 = arith.select %99, %96, %97 : vector<4x1024xi1>, vector<4x1024xbf16>
    %c8 = arith.constant 8 : index
    %c0_58 = arith.constant 0 : index
    %c0_59 = arith.constant 0 : index
    %101 = vector.load %arg4[%c8, %c0_58, %c0_59] : memref<9x8x4xbf16, #tpu.memory_space<vmem>>, vector<1x8x4xbf16>
    %102 = vector.shape_cast %101 : vector<1x8x4xbf16> to vector<8x4xbf16>
    %cst_60 = arith.constant dense<0.000000e+00> : vector<8x1024xf32>
    %103 = tpu.matmul %102, %100, %cst_60 {dimension_numbers = #tpu.dot_dimension_numbers<[1], [0], [0], [1], [0, 0, 1, 1], [], []>} : vector<8x4xbf16>, vector<4x1024xbf16>, vector<8x1024xf32> -> vector<8x1024xf32>
    %104 = arith.addf %95, %103 : vector<8x1024xf32>
    %cst_61 = arith.constant dense<0.000000e+00> : vector<8xf32>
    %105 = vector.multi_reduction <add>, %104, %cst_61 [1] : vector<8x1024xf32> to vector<8xf32>
    %106 = vector.shape_cast %105 : vector<8xf32> to vector<8x1xf32>
    %cst_62 = arith.constant 1.024000e+03 : f32
    %107 = vector.broadcast %cst_62 : f32 to vector<8x1xf32>
    %108 = arith.divf %106, %107 : vector<8x1xf32>
    %109 = vector.broadcast %108 : vector<8x1xf32> to vector<8x1024xf32>
    %110 = arith.subf %104, %109 : vector<8x1024xf32>
    %111 = arith.mulf %110, %110 : vector<8x1024xf32>
    %cst_63 = arith.constant dense<0.000000e+00> : vector<8xf32>
    %112 = vector.multi_reduction <add>, %111, %cst_63 [1] : vector<8x1024xf32> to vector<8xf32>
    %113 = vector.shape_cast %112 : vector<8xf32> to vector<8x1xf32>
    %cst_64 = arith.constant 1.024000e+03 : f32
    %114 = vector.broadcast %cst_64 : f32 to vector<8x1xf32>
    %115 = arith.divf %113, %114 : vector<8x1xf32>
    %cst_65 = arith.constant 9.99999974E-6 : f32
    %116 = vector.broadcast %cst_65 : f32 to vector<8x1xf32>
    %117 = arith.addf %115, %116 : vector<8x1xf32>
    %118 = math.rsqrt %117 : vector<8x1xf32>
    %119 = vector.broadcast %118 : vector<8x1xf32> to vector<8x1024xf32>
    %120 = arith.mulf %110, %119 : vector<8x1024xf32>
    %cst_66 = arith.constant 0.000000e+00 : f32
    %121 = vector.broadcast %cst_66 : f32 to vector<8x1024xf32>
    %122 = arith.maximumf %120, %121 : vector<8x1024xf32>
    %cst_67 = arith.constant 0.000000e+00 : bf16
    %123 = vector.broadcast %cst_67 : bf16 to vector<8x128xbf16>
    %c0_68 = arith.constant 0 : index
    %c0_69 = arith.constant 0 : index
    %124 = vector.load %arg7[%c0_68, %c0_69] : memref<8x1280xbf16, #tpu.memory_space<vmem>>, vector<8x128xbf16>
    tpu.vector_store %arg7[%c0_68, %c0_69], %123 {strides = array<i32>} : memref<8x1280xbf16, #tpu.memory_space<vmem>>, vector<8x128xbf16>,
    %cst_70 = arith.constant 0.000000e+00 : bf16
    %125 = vector.broadcast %cst_70 : bf16 to vector<8x128xbf16>
    %c0_71 = arith.constant 0 : index
    %c1152_72 = arith.constant 1152 : index
    %126 = vector.load %arg7[%c0_71, %c1152_72] : memref<8x1280xbf16, #tpu.memory_space<vmem>>, vector<8x128xbf16>
    tpu.vector_store %arg7[%c0_71, %c1152_72], %125 {strides = array<i32>} : memref<8x1280xbf16, #tpu.memory_space<vmem>>, vector<8x128xbf16>,
    %127 = arith.truncf %122 : vector<8x1024xf32> to vector<8x1024xbf16>
    %c0_73 = arith.constant 0 : index
    %c128_74 = arith.constant 128 : index
    %128 = vector.load %arg7[%c0_73, %c128_74] : memref<8x1280xbf16, #tpu.memory_space<vmem>>, vector<8x1024xbf16>
    tpu.vector_store %arg7[%c0_73, %c128_74], %127 {strides = array<i32>} : memref<8x1280xbf16, #tpu.memory_space<vmem>>, vector<8x1024xbf16>,
    %c0_75 = arith.constant 0 : index
    %c95_76 = arith.constant 95 : index
    %129 = vector.load %arg7[%c0_75, %c95_76] : memref<8x1280xbf16, #tpu.memory_space<vmem>>, vector<8x1024xbf16>
    %cst_77 = arith.constant 0.000000e+00 : bf16
    %130 = vector.broadcast %cst_77 : bf16 to vector<8x1024xbf16>
    %131 = vector.shape_cast %28 : vector<1x1024xi1> to vector<1x1024xi1>
    %132 = vector.broadcast %131 : vector<1x1024xi1> to vector<8x1024xi1>
    %133 = arith.select %132, %129, %130 : vector<8x1024xi1>, vector<8x1024xbf16>
    %c0_78 = arith.constant 0 : index
    %c0_79 = arith.constant 0 : index
    %c0_80 = arith.constant 0 : index
    %134 = vector.load %arg5[%c0_78, %c0_79, %c0_80] : memref<9x8x8xbf16, #tpu.memory_space<vmem>>, vector<1x8x8xbf16>
    %135 = vector.shape_cast %134 : vector<1x8x8xbf16> to vector<8x8xbf16>
    %cst_81 = arith.constant dense<0.000000e+00> : vector<8x1024xf32>
    %136 = tpu.matmul %135, %133, %cst_81 {dimension_numbers = #tpu.dot_dimension_numbers<[1], [0], [0], [1], [0, 0, 1, 1], [], []>} : vector<8x8xbf16>, vector<8x1024xbf16>, vector<8x1024xf32> -> vector<8x1024xf32>
    %c0_82 = arith.constant 0 : index
    %c96_83 = arith.constant 96 : index
    %137 = vector.load %arg7[%c0_82, %c96_83] : memref<8x1280xbf16, #tpu.memory_space<vmem>>, vector<8x1024xbf16>
    %c1_84 = arith.constant 1 : index
    %c0_85 = arith.constant 0 : index
    %c0_86 = arith.constant 0 : index
    %138 = vector.load %arg5[%c1_84, %c0_85, %c0_86] : memref<9x8x8xbf16, #tpu.memory_space<vmem>>, vector<1x8x8xbf16>
    %139 = vector.shape_cast %138 : vector<1x8x8xbf16> to vector<8x8xbf16>
    %cst_87 = arith.constant dense<0.000000e+00> : vector<8x1024xf32>
    %140 = tpu.matmul %139, %137, %cst_87 {dimension_numbers = #tpu.dot_dimension_numbers<[1], [0], [0], [1], [0, 0, 1, 1], [], []>} : vector<8x8xbf16>, vector<8x1024xbf16>, vector<8x1024xf32> -> vector<8x1024xf32>
    %141 = arith.addf %136, %140 : vector<8x1024xf32>
    %c0_88 = arith.constant 0 : index
    %c97_89 = arith.constant 97 : index
    %142 = vector.load %arg7[%c0_88, %c97_89] : memref<8x1280xbf16, #tpu.memory_space<vmem>>, vector<8x1024xbf16>
    %cst_90 = arith.constant 0.000000e+00 : bf16
    %143 = vector.broadcast %cst_90 : bf16 to vector<8x1024xbf16>
    %144 = vector.shape_cast %30 : vector<1x1024xi1> to vector<1x1024xi1>
    %145 = vector.broadcast %144 : vector<1x1024xi1> to vector<8x1024xi1>
    %146 = arith.select %145, %142, %143 : vector<8x1024xi1>, vector<8x1024xbf16>
    %c2_91 = arith.constant 2 : index
    %c0_92 = arith.constant 0 : index
    %c0_93 = arith.constant 0 : index
    %147 = vector.load %arg5[%c2_91, %c0_92, %c0_93] : memref<9x8x8xbf16, #tpu.memory_space<vmem>>, vector<1x8x8xbf16>
    %148 = vector.shape_cast %147 : vector<1x8x8xbf16> to vector<8x8xbf16>
    %cst_94 = arith.constant dense<0.000000e+00> : vector<8x1024xf32>
    %149 = tpu.matmul %148, %146, %cst_94 {dimension_numbers = #tpu.dot_dimension_numbers<[1], [0], [0], [1], [0, 0, 1, 1], [], []>} : vector<8x8xbf16>, vector<8x1024xbf16>, vector<8x1024xf32> -> vector<8x1024xf32>
    %150 = arith.addf %141, %149 : vector<8x1024xf32>
    %c0_95 = arith.constant 0 : index
    %c127_96 = arith.constant 127 : index
    %151 = vector.load %arg7[%c0_95, %c127_96] : memref<8x1280xbf16, #tpu.memory_space<vmem>>, vector<8x1024xbf16>
    %cst_97 = arith.constant 0.000000e+00 : bf16
    %152 = vector.broadcast %cst_97 : bf16 to vector<8x1024xbf16>
    %153 = vector.shape_cast %28 : vector<1x1024xi1> to vector<1x1024xi1>
    %154 = vector.broadcast %153 : vector<1x1024xi1> to vector<8x1024xi1>
    %155 = arith.select %154, %151, %152 : vector<8x1024xi1>, vector<8x1024xbf16>
    %c3_98 = arith.constant 3 : index
    %c0_99 = arith.constant 0 : index
    %c0_100 = arith.constant 0 : index
    %156 = vector.load %arg5[%c3_98, %c0_99, %c0_100] : memref<9x8x8xbf16, #tpu.memory_space<vmem>>, vector<1x8x8xbf16>
    %157 = vector.shape_cast %156 : vector<1x8x8xbf16> to vector<8x8xbf16>
    %cst_101 = arith.constant dense<0.000000e+00> : vector<8x1024xf32>
    %158 = tpu.matmul %157, %155, %cst_101 {dimension_numbers = #tpu.dot_dimension_numbers<[1], [0], [0], [1], [0, 0, 1, 1], [], []>} : vector<8x8xbf16>, vector<8x1024xbf16>, vector<8x1024xf32> -> vector<8x1024xf32>
    %159 = arith.addf %150, %158 : vector<8x1024xf32>
    %c0_102 = arith.constant 0 : index
    %c128_103 = arith.constant 128 : index
    %160 = vector.load %arg7[%c0_102, %c128_103] : memref<8x1280xbf16, #tpu.memory_space<vmem>>, vector<8x1024xbf16>
    %c4_104 = arith.constant 4 : index
    %c0_105 = arith.constant 0 : index
    %c0_106 = arith.constant 0 : index
    %161 = vector.load %arg5[%c4_104, %c0_105, %c0_106] : memref<9x8x8xbf16, #tpu.memory_space<vmem>>, vector<1x8x8xbf16>
    %162 = vector.shape_cast %161 : vector<1x8x8xbf16> to vector<8x8xbf16>
    %cst_107 = arith.constant dense<0.000000e+00> : vector<8x1024xf32>
    %163 = tpu.matmul %162, %160, %cst_107 {dimension_numbers = #tpu.dot_dimension_numbers<[1], [0], [0], [1], [0, 0, 1, 1], [], []>} : vector<8x8xbf16>, vector<8x1024xbf16>, vector<8x1024xf32> -> vector<8x1024xf32>
    %164 = arith.addf %159, %163 : vector<8x1024xf32>
    %c0_108 = arith.constant 0 : index
    %c129_109 = arith.constant 129 : index
    %165 = vector.load %arg7[%c0_108, %c129_109] : memref<8x1280xbf16, #tpu.memory_space<vmem>>, vector<8x1024xbf16>
    %cst_110 = arith.constant 0.000000e+00 : bf16
    %166 = vector.broadcast %cst_110 : bf16 to vector<8x1024xbf16>
    %167 = vector.shape_cast %30 : vector<1x1024xi1> to vector<1x1024xi1>
    %168 = vector.broadcast %167 : vector<1x1024xi1> to vector<8x1024xi1>
    %169 = arith.select %168, %165, %166 : vector<8x1024xi1>, vector<8x1024xbf16>
    %c5_111 = arith.constant 5 : index
    %c0_112 = arith.constant 0 : index
    %c0_113 = arith.constant 0 : index
    %170 = vector.load %arg5[%c5_111, %c0_112, %c0_113] : memref<9x8x8xbf16, #tpu.memory_space<vmem>>, vector<1x8x8xbf16>
    %171 = vector.shape_cast %170 : vector<1x8x8xbf16> to vector<8x8xbf16>
    %cst_114 = arith.constant dense<0.000000e+00> : vector<8x1024xf32>
    %172 = tpu.matmul %171, %169, %cst_114 {dimension_numbers = #tpu.dot_dimension_numbers<[1], [0], [0], [1], [0, 0, 1, 1], [], []>} : vector<8x8xbf16>, vector<8x1024xbf16>, vector<8x1024xf32> -> vector<8x1024xf32>
    %173 = arith.addf %164, %172 : vector<8x1024xf32>
    %c0_115 = arith.constant 0 : index
    %c159_116 = arith.constant 159 : index
    %174 = vector.load %arg7[%c0_115, %c159_116] : memref<8x1280xbf16, #tpu.memory_space<vmem>>, vector<8x1024xbf16>
    %cst_117 = arith.constant 0.000000e+00 : bf16
    %175 = vector.broadcast %cst_117 : bf16 to vector<8x1024xbf16>
    %176 = vector.shape_cast %28 : vector<1x1024xi1> to vector<1x1024xi1>
    %177 = vector.broadcast %176 : vector<1x1024xi1> to vector<8x1024xi1>
    %178 = arith.select %177, %174, %175 : vector<8x1024xi1>, vector<8x1024xbf16>
    %c6_118 = arith.constant 6 : index
    %c0_119 = arith.constant 0 : index
    %c0_120 = arith.constant 0 : index
    %179 = vector.load %arg5[%c6_118, %c0_119, %c0_120] : memref<9x8x8xbf16, #tpu.memory_space<vmem>>, vector<1x8x8xbf16>
    %180 = vector.shape_cast %179 : vector<1x8x8xbf16> to vector<8x8xbf16>
    %cst_121 = arith.constant dense<0.000000e+00> : vector<8x1024xf32>
    %181 = tpu.matmul %180, %178, %cst_121 {dimension_numbers = #tpu.dot_dimension_numbers<[1], [0], [0], [1], [0, 0, 1, 1], [], []>} : vector<8x8xbf16>, vector<8x1024xbf16>, vector<8x1024xf32> -> vector<8x1024xf32>
    %182 = arith.addf %173, %181 : vector<8x1024xf32>
    %c0_122 = arith.constant 0 : index
    %c160_123 = arith.constant 160 : index
    %183 = vector.load %arg7[%c0_122, %c160_123] : memref<8x1280xbf16, #tpu.memory_space<vmem>>, vector<8x1024xbf16>
    %c7_124 = arith.constant 7 : index
    %c0_125 = arith.constant 0 : index
    %c0_126 = arith.constant 0 : index
    %184 = vector.load %arg5[%c7_124, %c0_125, %c0_126] : memref<9x8x8xbf16, #tpu.memory_space<vmem>>, vector<1x8x8xbf16>
    %185 = vector.shape_cast %184 : vector<1x8x8xbf16> to vector<8x8xbf16>
    %cst_127 = arith.constant dense<0.000000e+00> : vector<8x1024xf32>
    %186 = tpu.matmul %185, %183, %cst_127 {dimension_numbers = #tpu.dot_dimension_numbers<[1], [0], [0], [1], [0, 0, 1, 1], [], []>} : vector<8x8xbf16>, vector<8x1024xbf16>, vector<8x1024xf32> -> vector<8x1024xf32>
    %187 = arith.addf %182, %186 : vector<8x1024xf32>
    %c0_128 = arith.constant 0 : index
    %c161_129 = arith.constant 161 : index
    %188 = vector.load %arg7[%c0_128, %c161_129] : memref<8x1280xbf16, #tpu.memory_space<vmem>>, vector<8x1024xbf16>
    %cst_130 = arith.constant 0.000000e+00 : bf16
    %189 = vector.broadcast %cst_130 : bf16 to vector<8x1024xbf16>
    %190 = vector.shape_cast %30 : vector<1x1024xi1> to vector<1x1024xi1>
    %191 = vector.broadcast %190 : vector<1x1024xi1> to vector<8x1024xi1>
    %192 = arith.select %191, %188, %189 : vector<8x1024xi1>, vector<8x1024xbf16>
    %c8_131 = arith.constant 8 : index
    %c0_132 = arith.constant 0 : index
    %c0_133 = arith.constant 0 : index
    %193 = vector.load %arg5[%c8_131, %c0_132, %c0_133] : memref<9x8x8xbf16, #tpu.memory_space<vmem>>, vector<1x8x8xbf16>
    %194 = vector.shape_cast %193 : vector<1x8x8xbf16> to vector<8x8xbf16>
    %cst_134 = arith.constant dense<0.000000e+00> : vector<8x1024xf32>
    %195 = tpu.matmul %194, %192, %cst_134 {dimension_numbers = #tpu.dot_dimension_numbers<[1], [0], [0], [1], [0, 0, 1, 1], [], []>} : vector<8x8xbf16>, vector<8x1024xbf16>, vector<8x1024xf32> -> vector<8x1024xf32>
    %196 = arith.addf %187, %195 : vector<8x1024xf32>
    %cst_135 = arith.constant dense<0.000000e+00> : vector<8xf32>
    %197 = vector.multi_reduction <add>, %196, %cst_135 [1] : vector<8x1024xf32> to vector<8xf32>
    %198 = vector.shape_cast %197 : vector<8xf32> to vector<8x1xf32>
    %cst_136 = arith.constant 1.024000e+03 : f32
    %199 = vector.broadcast %cst_136 : f32 to vector<8x1xf32>
    %200 = arith.divf %198, %199 : vector<8x1xf32>
    %201 = vector.broadcast %200 : vector<8x1xf32> to vector<8x1024xf32>
    %202 = arith.subf %196, %201 : vector<8x1024xf32>
    %203 = arith.mulf %202, %202 : vector<8x1024xf32>
    %cst_137 = arith.constant dense<0.000000e+00> : vector<8xf32>
    %204 = vector.multi_reduction <add>, %203, %cst_137 [1] : vector<8x1024xf32> to vector<8xf32>
    %205 = vector.shape_cast %204 : vector<8xf32> to vector<8x1xf32>
    %cst_138 = arith.constant 1.024000e+03 : f32
    %206 = vector.broadcast %cst_138 : f32 to vector<8x1xf32>
    %207 = arith.divf %205, %206 : vector<8x1xf32>
    %cst_139 = arith.constant 9.99999974E-6 : f32
    %208 = vector.broadcast %cst_139 : f32 to vector<8x1xf32>
    %209 = arith.addf %207, %208 : vector<8x1xf32>
    %210 = math.rsqrt %209 : vector<8x1xf32>
    %211 = vector.broadcast %210 : vector<8x1xf32> to vector<8x1024xf32>
    %212 = arith.mulf %202, %211 : vector<8x1024xf32>
    %cst_140 = arith.constant 0.000000e+00 : f32
    %213 = vector.broadcast %cst_140 : f32 to vector<8x1024xf32>
    %214 = arith.maximumf %212, %213 : vector<8x1024xf32>
    %c0_141 = arith.constant 0 : index
    %c0_142 = arith.constant 0 : index
    %c0_143 = arith.constant 0 : index
    %215 = vector.load %arg6[%c0_141, %c0_142, %c0_143] : memref<1x8x1024xf32, #tpu.memory_space<vmem>>, vector<1x8x1024xf32>
    %216 = vector.shape_cast %215 : vector<1x8x1024xf32> to vector<8x1024xf32>
    %217 = vector.shape_cast %214 : vector<8x1024xf32> to vector<1x8x1024xf32>
    tpu.vector_store %arg6[%c0_141, %c0_142, %c0_143], %217 {strides = array<i32>} : memref<1x8x1024xf32, #tpu.memory_space<vmem>>, vector<1x8x1024xf32>,
    return
  }
  func.func @transform_0(%arg0: i32) -> (i32, i32, i32) {
    %c0_i32 = arith.constant 0 : i32
    %c0_i32_0 = arith.constant 0 : i32
    %c0_i32_1 = arith.constant 0 : i32
    return %arg0, %c0_i32, %c0_i32_0 : i32, i32, i32
  }
  func.func @transform_1(%arg0: i32) -> (i32, i32) {
    %c0_i32 = arith.constant 0 : i32
    %c0_i32_0 = arith.constant 0 : i32
    %c0_i32_1 = arith.constant 0 : i32
    return %c0_i32, %c0_i32_0 : i32, i32
  }
  func.func @transform_2(%arg0: i32) -> (i32, i32) {
    %c0_i32 = arith.constant 0 : i32
    %c0_i32_0 = arith.constant 0 : i32
    %c0_i32_1 = arith.constant 0 : i32
    return %c0_i32, %c0_i32_0 : i32, i32
  }
  func.func @transform_3(%arg0: i32) -> (i32, i32, i32) {
    %c0_i32 = arith.constant 0 : i32
    %c0_i32_0 = arith.constant 0 : i32
    %c0_i32_1 = arith.constant 0 : i32
    %c0_i32_2 = arith.constant 0 : i32
    return %c0_i32, %c0_i32_0, %c0_i32_1 : i32, i32, i32
  }
  func.func @transform_4(%arg0: i32) -> (i32, i32, i32) {
    %c0_i32 = arith.constant 0 : i32
    %c0_i32_0 = arith.constant 0 : i32
    %c0_i32_1 = arith.constant 0 : i32
    %c0_i32_2 = arith.constant 0 : i32
    return %c0_i32, %c0_i32_0, %c0_i32_1 : i32, i32, i32
  }
  func.func @transform_5(%arg0: i32) -> (i32, i32, i32) {
    %c0_i32 = arith.constant 0 : i32
    %c0_i32_0 = arith.constant 0 : i32
    %c0_i32_1 = arith.constant 0 : i32
    return %arg0, %c0_i32, %c0_i32_0 : i32, i32, i32
  }
}

</mosaic_0001>

<llo_original>
// kernel: upsample_conv_forward.1
$region0: #{upsample_conv_forward.1}
  #allocation0 [shape = 'u32[]', space=smem, size = 0x4, offset = 0x4, fixed_abs, tag = 'smem constant byte address 0x4 - core index']
  #allocation1 [shape = 'u32[144,128]{1,0:T(1,128)}', space=vmem, size = 0x12000, scoped, tag = 'internal scratch']
  #allocation2 [shape = 'bf16[8,1280]{1,0:T(8,128)(2,1)}', space=vmem, size = 0x5000, scoped, tag = 'scratch operand']
  %s0 = inlined_call_operand.vmem [shape: f32[2,64,16], index: 0, kind: input, shape index: {}]
  %s1 = inlined_call_operand.hbm [shape: f32[16,32], index: 1, kind: input, shape index: {}]
  %s2 = inlined_call_operand.vmem [shape: f32[32,16], index: 2, kind: input, shape index: {}]
  %s3 = inlined_call_operand.vmem [shape: bf16[9,8,4], index: 3, kind: input, shape index: {}]
  %s4 = inlined_call_operand.vmem [shape: bf16[9,8,8], index: 4, kind: input, shape index: {}]
  %s5 = inlined_call_operand.vmem [shape: f32[2,8,1024], index: 5, kind: output, shape index: {}]
  %s6 = sld [smem:[#allocation0]]
  $region57: #{upsample_conv_forward.1} parent=0
    _
  %s8 = ssub.s32 1, %s6
  %s9 = scalar_select 0, %s8, %s6
  $region1: #{upsample_conv_forward.1} parent=0
    #allocation3 [shape = 'u8[8192]{0}', space=vmem, size = 0x2000, scoped, tag = 'input window, operand 1, single buffered']
    #allocation4 [shape = 's32[2]{0}', space=sflag, size = 0x8, scoped, tag = 'scoped memory for upsample_conv_forward.1']
    %10 = vsyncpa [#allocation4], 0
    loop: start=0, step=1, limit=4
    $region2: #{upsample_conv_forward.1} parent=1 // loop_pre_header
      _
    $region3: #{upsample_conv_forward.1} parent=1 // loop_header
      %s12 = sphi 0, %s16
      %p13 = scmp.ge.s32.totalorder %s12, 4
      %s22 = sphi 0, %s24
      %s25 = sphi 0, %s22
      %s26 = sphi 0, %s25
      %s42 = sphi 0, %s26
      %s46 = sphi 0, %s46
      %s48 = sphi 0, %s46
      %s49 = sphi 0, %s48
      %s63 = sphi 0, %s49
      %s67 = sphi 0, %s67
      %s69 = sphi 0, %s67
      %s70 = sphi 0, %s69
      %s84 = sphi 0, %s70
      %s88 = sphi 0, %s88
      %s90 = sphi 0, %s88
      %s91 = sphi 0, %s90
      %s105 = sphi 0, %s91
      %s109 = sphi 0, %s109
      %s111 = sphi 0, %s109
      %s112 = sphi 0, %s111
      %s126 = sphi 0, %s112
      %s132 = sphi 0, %s134
      %s135 = sphi 0, %s132
      %s136 = sphi 0, %s135
      %s152 = sphi 0, %s136
    $region4: #{upsample_conv_forward.1} parent=1 // loop_header_branch
      %15 = sbr.rel (%p13) target = $region8
    $region5: #{upsample_conv_forward.1} parent=1 // loop_body
      %s17 = ssub.s32 %s12, 1
      %s18 = ssub.s32 %s12, 2
      %s19 = sadd.s32 %s12, 1
      %s20 = ssub.s32 %s12, %s19
      %p21 = scmp.eq.s32.totalorder %s20, 0
      %s23 = sadd.s32 %s22, 1
      %s24 = scalar_select %p21, %s22, %s23
      %p27 = pneg %p21
      %p28 = scmp.eq.s32.totalorder %s12, 1
      %p29 = por %p27, %p28
      %p30 = scmp.ne.s32.totalorder %s22, %s25
      %p31 = scmp.eq.s32.totalorder %s12, 0
      %p32 = por %p30, %p31
      %p33 = scmp.ne.s32.totalorder %s22, %s25
      %p34 = scmp.eq.s32.totalorder %s17, 1
      %p35 = por %p33, %p34
      %p36 = scmp.ne.s32.totalorder %s25, %s26
      %p37 = scmp.eq.s32.totalorder %s17, 0
      %p38 = por %p36, %p37
      %p39 = scmp.ne.s32.totalorder %s25, %s26
      %p40 = scmp.eq.s32.totalorder %s18, 1
      %p41 = por %p39, %p40
      %p43 = scmp.ne.s32.totalorder %s26, %s42
      %p44 = scmp.eq.s32.totalorder %s18, 0
      %p45 = por %p43, %p44
      %s47 = sadd.s32 %s46, 1
      %p50 = scmp.eq.s32.totalorder %s12, 1
      %p51 = scmp.ne.s32.totalorder %s46, %s48
      %p52 = scmp.eq.s32.totalorder %s12, 0
      %p53 = por %p51, %p52
      %p54 = scmp.ne.s32.totalorder %s46, %s48
      %p55 = scmp.eq.s32.totalorder %s17, 1
      %p56 = por %p54, %p55
      %p57 = scmp.ne.s32.totalorder %s48, %s49
      %p58 = scmp.eq.s32.totalorder %s17, 0
      %p59 = por %p57, %p58
      %p60 = scmp.ne.s32.totalorder %s48, %s49
      %p61 = scmp.eq.s32.totalorder %s18, 1
      %p62 = por %p60, %p61
      %p64 = scmp.ne.s32.totalorder %s49, %s63
      %p65 = scmp.eq.s32.totalorder %s18, 0
      %p66 = por %p64, %p65
      %s68 = sadd.s32 %s67, 1
      %p71 = scmp.eq.s32.totalorder %s12, 1
      %p72 = scmp.ne.s32.totalorder %s67, %s69
      %p73 = scmp.eq.s32.totalorder %s12, 0
      %p74 = por %p72, %p73
      %p75 = scmp.ne.s32.totalorder %s67, %s69
      %p76 = scmp.eq.s32.totalorder %s17, 1
      %p77 = por %p75, %p76
      %p78 = scmp.ne.s32.totalorder %s69, %s70
      %p79 = scmp.eq.s32.totalorder %s17, 0
      %p80 = por %p78, %p79
      %p81 = scmp.ne.s32.totalorder %s69, %s70
      %p82 = scmp.eq.s32.totalorder %s18, 1
      %p83 = por %p81, %p82
      %p85 = scmp.ne.s32.totalorder %s70, %s84
      %p86 = scmp.eq.s32.totalorder %s18, 0
      %p87 = por %p85, %p86
      %s89 = sadd.s32 %s88, 1
      %p92 = scmp.eq.s32.totalorder %s12, 1
      %p93 = scmp.ne.s32.totalorder %s88, %s90
      %p94 = scmp.eq.s32.totalorder %s12, 0
      %p95 = por %p93, %p94
      %p96 = scmp.ne.s32.totalorder %s88, %s90
      %p97 = scmp.eq.s32.totalorder %s17, 1
      %p98 = por %p96, %p97
      %p99 = scmp.ne.s32.totalorder %s90, %s91
      %p100 = scmp.eq.s32.totalorder %s17, 0
      %p101 = por %p99, %p100
      %p102 = scmp.ne.s32.totalorder %s90, %s91
      %p103 = scmp.eq.s32.totalorder %s18, 1
      %p104 = por %p102, %p103
      %p106 = scmp.ne.s32.totalorder %s91, %s105
      %p107 = scmp.eq.s32.totalorder %s18, 0
      %p108 = por %p106, %p107
      %s110 = sadd.s32 %s109, 1
      %p113 = scmp.eq.s32.totalorder %s12, 1
      %p114 = scmp.ne.s32.totalorder %s109, %s111
      %p115 = scmp.eq.s32.totalorder %s12, 0
      %p116 = por %p114, %p115
      %p117 = scmp.ne.s32.totalorder %s109, %s111
      %p118 = scmp.eq.s32.totalorder %s17, 1
      %p119 = por %p117, %p118
      %p120 = scmp.ne.s32.totalorder %s111, %s112
      %p121 = scmp.eq.s32.totalorder %s17, 0
      %p122 = por %p120, %p121
      %p123 = scmp.ne.s32.totalorder %s111, %s112
      %p124 = scmp.eq.s32.totalorder %s18, 1
      %p125 = por %p123, %p124
      %p127 = scmp.ne.s32.totalorder %s112, %s126
      %p128 = scmp.eq.s32.totalorder %s18, 0
      %p129 = por %p127, %p128
      %s130 = ssub.s32 %s12, %s19
      %p131 = scmp.eq.s32.totalorder %s130, 0
      %s133 = sadd.s32 %s132, 1
      %s134 = scalar_select %p131, %s132, %s133
      %p137 = pneg %p131
      %p138 = scmp.eq.s32.totalorder %s12, 1
      %p139 = por %p137, %p138
      %p140 = scmp.ne.s32.totalorder %s132, %s135
      %p141 = scmp.eq.s32.totalorder %s12, 0
      %p142 = por %p140, %p141
      %p143 = scmp.ne.s32.totalorder %s132, %s135
      %p144 = scmp.eq.s32.totalorder %s17, 1
      %p145 = por %p143, %p144
      %p146 = scmp.ne.s32.totalorder %s135, %s136
      %p147 = scmp.eq.s32.totalorder %s17, 0
      %p148 = por %p146, %p147
      %p149 = scmp.ne.s32.totalorder %s135, %s136
      %p150 = scmp.eq.s32.totalorder %s18, 1
      %p151 = por %p149, %p150
      %p153 = scmp.ne.s32.totalorder %s136, %s152
      %p154 = scmp.eq.s32.totalorder %s18, 0
      %p155 = por %p153, %p154
      %p156 = scmp.le.s32.totalorder 1, %s12
      %p157 = scmp.lt.s32.totalorder %s12, 3
      %p158 = pnand %p156, %p157
      %p159 = pneg %p158
      // Predicated region
      $region9: #{upsample_conv_forward.1} parent=5 // pred_check
        _
      $region10: #{upsample_conv_forward.1} parent=5 // pred_check_branch
        %161 = sbr.rel (%p158) target = $region12
      $region11: #{upsample_conv_forward.1} parent=5 // pred_region
        %s162 = ssub.s32 %s12, 1
        // Predicated region
        $region13: #{upsample_conv_forward.1} parent=11 // pred_check
          %p163 = pneg %p59
        $region14: #{upsample_conv_forward.1} parent=11 // pred_check_branch
          %165 = sbr.rel (%p163) target = $region16
        $region15: #{upsample_conv_forward.1} parent=11 // pred_region
          %s167 = ssub.s32 256, 256
          %168 = vsyncadd [#allocation4], %s167
          %s169 = sshll.u32 [#allocation3], 4
          %s170 = int_to_ptr.vmem [resolvable:$true] %s169
          %175 = dma.hbm_to_vmem [thread:$0]  %s1, 256, %s170, [#allocation4], 128, 128, 8
        $region16: #{upsample_conv_forward.1} parent=11 // pred_fallthru
          _
        // Predicated region
        $region17: #{upsample_conv_forward.1} parent=11 // pred_check
          %p176 = pneg %p80
        $region18: #{upsample_conv_forward.1} parent=11 // pred_check_branch
          %178 = sbr.rel (%p176) target = $region20
        $region19: #{upsample_conv_forward.1} parent=11 // pred_region
          _
        $region20: #{upsample_conv_forward.1} parent=11 // pred_fallthru
          _
        // Predicated region
        $region21: #{upsample_conv_forward.1} parent=11 // pred_check
          %p179 = pneg %p101
        $region22: #{upsample_conv_forward.1} parent=11 // pred_check_branch
          %181 = sbr.rel (%p179) target = $region24
        $region23: #{upsample_conv_forward.1} parent=11 // pred_region
          _
        $region24: #{upsample_conv_forward.1} parent=11 // pred_fallthru
          _
        // Predicated region
        $region25: #{upsample_conv_forward.1} parent=11 // pred_check
          %p182 = pneg %p122
        $region26: #{upsample_conv_forward.1} parent=11 // pred_check_branch
          %184 = sbr.rel (%p182) target = $region28
        $region27: #{upsample_conv_forward.1} parent=11 // pred_region
          _
        $region28: #{upsample_conv_forward.1} parent=11 // pred_fallthru
          _
      $region12: #{upsample_conv_forward.1} parent=5 // pred_fallthru
        _
      %p185 = scmp.lt.s32.totalorder %s12, 2
      // Predicated region
      $region29: #{upsample_conv_forward.1} parent=5 // pred_check
        %p186 = pneg %p185
      $region30: #{upsample_conv_forward.1} parent=5 // pred_check_branch
        %188 = sbr.rel (%p186) target = $region32
      $region31: #{upsample_conv_forward.1} parent=5 // pred_region
        // Predicated region
        $region33: #{upsample_conv_forward.1} parent=31 // pred_check
          %p189 = pneg %p32
        $region34: #{upsample_conv_forward.1} parent=31 // pred_check_branch
          %191 = sbr.rel (%p189) target = $region36
        $region35: #{upsample_conv_forward.1} parent=31 // pred_region
          %p192 = scmp.lt.s32.totalorder %s12, 1
          %s193 = scalar_select %p192, %s12, 1
          %s194 = smul.addr %s193, 8
          %s195 = smul.addr %s194, 8
          %s196 = scalar_lea.vmem %s0, %s195
        $region36: #{upsample_conv_forward.1} parent=31 // pred_fallthru
          _
      $region32: #{upsample_conv_forward.1} parent=5 // pred_fallthru
        _
      %p197 = scmp.le.s32.totalorder 1, %s12
      %p198 = scmp.lt.s32.totalorder %s12, 3
      %p199 = pnand %p197, %p198
      %p200 = pneg %p199
      // Predicated region
      $region37: #{upsample_conv_forward.1} parent=5 // pred_check
        _
      $region38: #{upsample_conv_forward.1} parent=5 // pred_check_branch
        %202 = sbr.rel (%p199) target = $region40
      $region39: #{upsample_conv_forward.1} parent=5 // pred_region
        %s203 = ssub.s32 %s12, 1
        // Predicated region
        $region41: #{upsample_conv_forward.1} parent=39 // pred_check
          %p204 = pneg %p59
        $region42: #{upsample_conv_forward.1} parent=39 // pred_check_branch
          %206 = sbr.rel (%p204) target = $region44
        $region43: #{upsample_conv_forward.1} parent=39 // pred_region
          %207 = dma.done [#allocation4], 256
        $region44: #{upsample_conv_forward.1} parent=39 // pred_fallthru
          _
        %p208 = scmp.lt.s32.totalorder %s17, 1
        %s209 = scalar_select %p208, %s17, 1
        %s210 = smul.addr %s209, 8
        %s211 = smul.addr %s210, 8
        %s212 = scalar_lea.vmem %s0, %s211
        %p213 = pneg %p38
        %p214 = pneg %p35
        %p215 = pneg %p59
        %p216 = pneg %p56
        %p217 = pneg %p80
        %p218 = pneg %p77
        %p219 = pneg %p101
        %p220 = pneg %p98
        %p221 = pneg %p122
        %p222 = pneg %p119
        %p223 = pneg %p148
        %p224 = pneg %p145
        %p225 = scmp.lt.s32.totalorder %s17, 1
        %s226 = scalar_select %p225, %s17, 1
        %s227 = smul.addr %s226, 8
        %s228 = smul.addr %s227, 8
        %s229 = scalar_lea.vmem %s5, %s228
        %p230 = scmp.lt.s32.totalorder %s17, 1
        %s231 = scalar_select %p230, %s17, 1
        %s232 = smul.addr %s231, 8
        %s233 = smul.addr %s232, 8
        %s234 = scalar_lea.vmem %s0, %s233
        %p235 = scmp.lt.s32.totalorder %s17, 1
        %s236 = scalar_select %p235, %s17, 1
        %s237 = smul.addr %s236, 8
        %s238 = smul.addr %s237, 8
        %s239 = scalar_lea.vmem %s5, %s238
        %v243 = vld [vmem:[%s234] sm:$0xff]
        %v244 = vld [vmem:[%s234 + $0x8] sm:$0xff]
        %v245 = vld [vmem:[%s234 + $0x10] sm:$0xff]
        %v246 = vld [vmem:[%s234 + $0x18] sm:$0xff]
        %v247 = vld [vmem:[%s234 + $0x20] sm:$0xff]
        %v248 = vld [vmem:[%s234 + $0x28] sm:$0xff]
        %v249 = vld [vmem:[%s234 + $0x30] sm:$0xff]
        %v250 = vld [vmem:[%s234 + $0x38] sm:$0xff]
        %v251 = vld [vmem:[#allocation3] sm:$0xff]
        %v252 = vld [vmem:[#allocation3 + $0x8] sm:$0xff]
        %vm253 = vcmask 130048
        %v255 = vsel %vm253, %v243, 0
        %v258 = vsel %vm253, %v244, 0
        %v261 = vsel %vm253, %v245, 0
        %v264 = vsel %vm253, %v246, 0
        %v267 = vsel %vm253, %v247, 0
        %v270 = vsel %vm253, %v248, 0
        %v273 = vsel %vm253, %v249, 0
        %v276 = vsel %vm253, %v250, 0
        %278 = vmatprep.subr.mxu0 0.0
        %279 = vmatpush1.msra.mxu0 %v251
        %280 = vmatprep.subr.mxu0 0.0
        %281 = vmatpush1.msra.mxu0 %v252
        %282 = vmatprep.subr.mxu0 0.0
        %283 = vmatpush1.msra.mxu0 0.0
        %284 = vmatprep.subr.mxu0 0.0
        %285 = vmatpush1.msra.mxu0 0.0
        %286 = vmatprep.subr.mxu0 0.0
        %287 = vmatpush1.msra.mxu0 0.0
        %288 = vmatprep.subr.mxu0 0.0
        %289 = vmatpush1.msra.mxu0 0.0
        %290 = vmatprep.subr.mxu0 0.0
        %291 = vmatpush1.msra.mxu0 0.0
        %292 = vmatprep.subr.mxu0 0.0
        %293 = vmatpush1.msra.mxu0 0.0
        %294 = vmatprep.subr.mxu0 0.0
        %295 = vmatpush1.msra.mxu0 0.0
        %296 = vmatprep.subr.mxu0 0.0
        %297 = vmatpush1.msra.mxu0 0.0
        %298 = vmatprep.subr.mxu0 0.0
        %299 = vmatpush1.msra.mxu0 0.0
        %300 = vmatprep.subr.mxu0 0.0
        %301 = vmatpush1.msra.mxu0 0.0
        %302 = vmatprep.subr.mxu0 0.0
        %303 = vmatpush1.msra.mxu0 0.0
        %304 = vmatprep.subr.mxu0 0.0
        %305 = vmatpush1.msra.mxu0 0.0
        %306 = vmatprep.subr.mxu0 0.0
        %307 = vmatpush1.msra.mxu0 0.0
        %308 = vmatprep.subr.mxu0 0.0
        %309 = vmatpush1.msra.mxu0 0.0
        %310 = vmatprep.subr.mxu0 0.0
        %311 = vmatpush1.msra.mxu0 0.0
        %312 = vmatprep.subr.mxu0 0.0
        %313 = vmatpush1.msra.mxu0 0.0
        %314 = vmatprep.subr.mxu0 0.0
        %315 = vmatpush1.msra.mxu0 0.0
        %316 = vmatprep.subr.mxu0 0.0
        %317 = vmatpush1.msra.mxu0 0.0
        %318 = vmatprep.subr.mxu0 0.0
        %319 = vmatpush1.msra.mxu0 0.0
        %320 = vmatprep.subr.mxu0 0.0
        %321 = vmatpush1.msra.mxu0 0.0
        %322 = vmatprep.subr.mxu0 0.0
        %323 = vmatpush1.msra.mxu0 0.0
        %324 = vmatprep.subr.mxu0 0.0
        %325 = vmatpush1.msra.mxu0 0.0
        %326 = vmatprep.subr.mxu0 0.0
        %327 = vmatpush1.msra.mxu0 0.0
        %328 = vmatprep.subr.mxu0 0.0
        %329 = vmatpush1.msra.mxu0 0.0
        %330 = vmatprep.subr.mxu0 0.0
        %331 = vmatpush1.msra.mxu0 0.0
        %332 = vmatprep.subr.mxu0 0.0
        %333 = vmatpush1.msra.mxu0 0.0
        %334 = vmatprep.subr.mxu0 0.0
        %335 = vmatpush1.msra.mxu0 0.0
        %336 = vmatprep.subr.mxu0 0.0
        %337 = vmatpush1.msra.mxu0 0.0
        %338 = vmatprep.subr.mxu0 0.0
        %339 = vmatpush1.msra.mxu0 0.0
        %340 = vmatprep.subr.mxu0 0.0
        %341 = vmatpush1.msra.mxu0 0.0
        %342 = vmatprep.mubr.f32.mxu0 0.0
        %343 = vmatmul.mubr.f32.gmra.mrb[0].mxu0 %v255
        %v344 = vpop.f32.mrb[0].mxu0
        %v345 = vadd.f32 0.0, %v344
        %v346 = vpop.f32.mrb[0].mxu0
        %347 = vmatprep.mubr.f32.mxu0 0.0
        %348 = vmatmul.mubr.f32.gmra.mrb[0].mxu0 %v258
        %v349 = vpop.f32.mrb[0].mxu0
        %v350 = vadd.f32 0.0, %v349
        %v351 = vpop.f32.mrb[0].mxu0
        %352 = vmatprep.mubr.f32.mxu0 0.0
        %353 = vmatmul.mubr.f32.gmra.mrb[0].mxu0 %v261
        %v354 = vpop.f32.mrb[0].mxu0
        %v355 = vadd.f32 0.0, %v354
        %v356 = vpop.f32.mrb[0].mxu0
        %357 = vmatprep.mubr.f32.mxu0 0.0
        %358 = vmatmul.mubr.f32.gmra.mrb[0].mxu0 %v264
        %v359 = vpop.f32.mrb[0].mxu0
        %v360 = vadd.f32 0.0, %v359
        %v361 = vpop.f32.mrb[0].mxu0
        %362 = vmatprep.mubr.f32.mxu0 0.0
        %363 = vmatmul.mubr.f32.gmra.mrb[0].mxu0 %v267
        %v364 = vpop.f32.mrb[0].mxu0
        %v365 = vadd.f32 0.0, %v364
        %v366 = vpop.f32.mrb[0].mxu0
        %367 = vmatprep.mubr.f32.mxu0 0.0
        %368 = vmatmul.mubr.f32.gmra.mrb[0].mxu0 %v270
        %v369 = vpop.f32.mrb[0].mxu0
        %v370 = vadd.f32 0.0, %v369
        %v371 = vpop.f32.mrb[0].mxu0
        %372 = vmatprep.mubr.f32.mxu0 0.0
        %373 = vmatmul.mubr.f32.gmra.mrb[0].mxu0 %v273
        %v374 = vpop.f32.mrb[0].mxu0
        %v375 = vadd.f32 0.0, %v374
        %v376 = vpop.f32.mrb[0].mxu0
        %377 = vmatprep.mubr.f32.mxu0 0.0
        %378 = vmatmul.mubr.f32.gmra.mrb[0].mxu0 %v276
        %v379 = vpop.f32.mrb[0].mxu0
        %v380 = vadd.f32 0.0, %v379
        %v381 = vpop.f32.mrb[0].mxu0
        %382 = vdwg.mxu0
        %v383 = vld [vmem:[%s2] sm:$0xff]
        %v384 = vld [vmem:[%s2 + $0x8] sm:$0xff]
        %v385 = vld [vmem:[%s2 + $0x10] sm:$0xff]
        %v386 = vld [vmem:[%s2 + $0x18] sm:$0xff]
        %v388 = vsel %vm253, %v383, 0
        %v391 = vsel %vm253, %v384, 0
        %v394 = vsel %vm253, %v385, 0
        %v397 = vsel %vm253, %v386, 0
        %399 = vmatprep.subr.mxu0 0.0
        %400 = vmatpush1.msra.mxu0 %v345
        %401 = vmatprep.subr.mxu0 0.0
        %402 = vmatpush1.msra.mxu0 %v350
        %403 = vmatprep.subr.mxu0 0.0
        %404 = vmatpush1.msra.mxu0 0.0
        %405 = vmatprep.subr.mxu0 0.0
        %406 = vmatpush1.msra.mxu0 0.0
        %407 = vmatprep.subr.mxu0 0.0
        %408 = vmatpush1.msra.mxu0 0.0
        %409 = vmatprep.subr.mxu0 0.0
        %410 = vmatpush1.msra.mxu0 0.0
        %411 = vmatprep.subr.mxu0 0.0
        %412 = vmatpush1.msra.mxu0 0.0
        %413 = vmatprep.subr.mxu0 0.0
        %414 = vmatpush1.msra.mxu0 0.0
        %415 = vmatprep.subr.mxu0 0.0
        %416 = vmatpush1.msra.mxu0 0.0
        %417 = vmatprep.subr.mxu0 0.0
        %418 = vmatpush1.msra.mxu0 0.0
        %419 = vmatprep.subr.mxu0 0.0
        %420 = vmatpush1.msra.mxu0 0.0
        %421 = vmatprep.subr.mxu0 0.0
        %422 = vmatpush1.msra.mxu0 0.0
        %423 = vmatprep.subr.mxu0 0.0
        %424 = vmatpush1.msra.mxu0 0.0
        %425 = vmatprep.subr.mxu0 0.0
        %426 = vmatpush1.msra.mxu0 0.0
        %427 = vmatprep.subr.mxu0 0.0
        %428 = vmatpush1.msra.mxu0 0.0
        %429 = vmatprep.subr.mxu0 0.0
        %430 = vmatpush1.msra.mxu0 0.0
        %431 = vmatprep.subr.mxu0 0.0
        %432 = vmatpush1.msra.mxu0 0.0
        %433 = vmatprep.subr.mxu0 0.0
        %434 = vmatpush1.msra.mxu0 0.0
        %435 = vmatprep.subr.mxu0 0.0
        %436 = vmatpush1.msra.mxu0 0.0
        %437 = vmatprep.subr.mxu0 0.0
        %438 = vmatpush1.msra.mxu0 0.0
        %439 = vmatprep.subr.mxu0 0.0
        %440 = vmatpush1.msra.mxu0 0.0
        %441 = vmatprep.subr.mxu0 0.0
        %442 = vmatpush1.msra.mxu0 0.0
        %443 = vmatprep.subr.mxu0 0.0
        %444 = vmatpush1.msra.mxu0 0.0
        %445 = vmatprep.subr.mxu0 0.0
        %446 = vmatpush1.msra.mxu0 0.0
        %447 = vmatprep.subr.mxu0 0.0
        %448 = vmatpush1.msra.mxu0 0.0
        %449 = vmatprep.subr.mxu0 0.0
        %450 = vmatpush1.msra.mxu0 0.0
        %451 = vmatprep.subr.mxu0 0.0
        %452 = vmatpush1.msra.mxu0 0.0
        %453 = vmatprep.subr.mxu0 0.0
        %454 = vmatpush1.msra.mxu0 0.0
        %455 = vmatprep.subr.mxu0 0.0
        %456 = vmatpush1.msra.mxu0 0.0
        %457 = vmatprep.subr.mxu0 0.0
        %458 = vmatpush1.msra.mxu0 0.0
        %459 = vmatprep.subr.mxu0 0.0
        %460 = vmatpush1.msra.mxu0 0.0
        %461 = vmatprep.subr.mxu0 0.0
        %462 = vmatpush1.msra.mxu0 0.0
        %463 = vmatprep.mubr.f32.mxu0 0.0
        %464 = vmatmul.mubr.f32.gmra.mrb[0].mxu0 %v388
        %v465 = vpop.f32.mrb[0].mxu0
        %v466 = vadd.f32 0.0, %v465
        %v467 = vpop.f32.mrb[0].mxu0
        %468 = vmatprep.mubr.f32.mxu0 0.0
        %469 = vmatmul.mubr.f32.gmra.mrb[0].mxu0 %v391
        %v470 = vpop.f32.mrb[0].mxu0
        %v471 = vadd.f32 0.0, %v470
        %v472 = vpop.f32.mrb[0].mxu0
        %473 = vmatprep.mubr.f32.mxu0 0.0
        %474 = vmatmul.mubr.f32.gmra.mrb[0].mxu0 %v394
        %v475 = vpop.f32.mrb[0].mxu0
        %v476 = vadd.f32 0.0, %v475
        %v477 = vpop.f32.mrb[0].mxu0
        %478 = vmatprep.mubr.f32.mxu0 0.0
        %479 = vmatmul.mubr.f32.gmra.mrb[0].mxu0 %v397
        %v480 = vpop.f32.mrb[0].mxu0
        %v481 = vadd.f32 0.0, %v480
        %v482 = vpop.f32.mrb[0].mxu0
        %483 = vdwg.mxu0
        %484 = vmatprep.subr.mxu0 0.0
        %485 = vmatpush1.msra.mxu0 %v355
        %486 = vmatprep.subr.mxu0 0.0
        %487 = vmatpush1.msra.mxu0 %v360
        %488 = vmatprep.subr.mxu0 0.0
        %489 = vmatpush1.msra.mxu0 0.0
        %490 = vmatprep.subr.mxu0 0.0
        %491 = vmatpush1.msra.mxu0 0.0
        %492 = vmatprep.subr.mxu0 0.0
        %493 = vmatpush1.msra.mxu0 0.0
        %494 = vmatprep.subr.mxu0 0.0
        %495 = vmatpush1.msra.mxu0 0.0
        %496 = vmatprep.subr.mxu0 0.0
        %497 = vmatpush1.msra.mxu0 0.0
        %498 = vmatprep.subr.mxu0 0.0
        %499 = vmatpush1.msra.mxu0 0.0
        %500 = vmatprep.subr.mxu0 0.0
        %501 = vmatpush1.msra.mxu0 0.0
        %502 = vmatprep.subr.mxu0 0.0
        %503 = vmatpush1.msra.mxu0 0.0
        %504 = vmatprep.subr.mxu0 0.0
        %505 = vmatpush1.msra.mxu0 0.0
        %506 = vmatprep.subr.mxu0 0.0
        %507 = vmatpush1.msra.mxu0 0.0
        %508 = vmatprep.subr.mxu0 0.0
        %509 = vmatpush1.msra.mxu0 0.0
        %510 = vmatprep.subr.mxu0 0.0
        %511 = vmatpush1.msra.mxu0 0.0
        %512 = vmatprep.subr.mxu0 0.0
        %513 = vmatpush1.msra.mxu0 0.0
        %514 = vmatprep.subr.mxu0 0.0
        %515 = vmatpush1.msra.mxu0 0.0
        %516 = vmatprep.subr.mxu0 0.0
        %517 = vmatpush1.msra.mxu0 0.0
        %518 = vmatprep.subr.mxu0 0.0
        %519 = vmatpush1.msra.mxu0 0.0
        %520 = vmatprep.subr.mxu0 0.0
        %521 = vmatpush1.msra.mxu0 0.0
        %522 = vmatprep.subr.mxu0 0.0
        %523 = vmatpush1.msra.mxu0 0.0
        %524 = vmatprep.subr.mxu0 0.0
        %525 = vmatpush1.msra.mxu0 0.0
        %526 = vmatprep.subr.mxu0 0.0
        %527 = vmatpush1.msra.mxu0 0.0
        %528 = vmatprep.subr.mxu0 0.0
        %529 = vmatpush1.msra.mxu0 0.0
        %530 = vmatprep.subr.mxu0 0.0
        %531 = vmatpush1.msra.mxu0 0.0
        %532 = vmatprep.subr.mxu0 0.0
        %533 = vmatpush1.msra.mxu0 0.0
        %534 = vmatprep.subr.mxu0 0.0
        %535 = vmatpush1.msra.mxu0 0.0
        %536 = vmatprep.subr.mxu0 0.0
        %537 = vmatpush1.msra.mxu0 0.0
        %538 = vmatprep.subr.mxu0 0.0
        %539 = vmatpush1.msra.mxu0 0.0
        %540 = vmatprep.subr.mxu0 0.0
        %541 = vmatpush1.msra.mxu0 0.0
        %542 = vmatprep.subr.mxu0 0.0
        %543 = vmatpush1.msra.mxu0 0.0
        %544 = vmatprep.subr.mxu0 0.0
        %545 = vmatpush1.msra.mxu0 0.0
        %546 = vmatprep.subr.mxu0 0.0
        %547 = vmatpush1.msra.mxu0 0.0
        %548 = vmatprep.mubr.f32.mxu0 0.0
        %549 = vmatmul.mubr.f32.gmra.mrb[0].mxu0 %v388
        %v550 = vpop.f32.mrb[0].mxu0
        %v551 = vadd.f32 0.0, %v550
        %v552 = vpop.f32.mrb[0].mxu0
        %553 = vmatprep.mubr.f32.mxu0 0.0
        %554 = vmatmul.mubr.f32.gmra.mrb[0].mxu0 %v391
        %v555 = vpop.f32.mrb[0].mxu0
        %v556 = vadd.f32 0.0, %v555
        %v557 = vpop.f32.mrb[0].mxu0
        %558 = vmatprep.mubr.f32.mxu0 0.0
        %559 = vmatmul.mubr.f32.gmra.mrb[0].mxu0 %v394
        %v560 = vpop.f32.mrb[0].mxu0
        %v561 = vadd.f32 0.0, %v560
        %v562 = vpop.f32.mrb[0].mxu0
        %563 = vmatprep.mubr.f32.mxu0 0.0
        %564 = vmatmul.mubr.f32.gmra.mrb[0].mxu0 %v397
        %v565 = vpop.f32.mrb[0].mxu0
        %v566 = vadd.f32 0.0, %v565
        %v567 = vpop.f32.mrb[0].mxu0
        %568 = vdwg.mxu0
        %569 = vmatprep.subr.mxu0 0.0
        %570 = vmatpush1.msra.mxu0 %v365
        %571 = vmatprep.subr.mxu0 0.0
        %572 = vmatpush1.msra.mxu0 %v370
        %573 = vmatprep.subr.mxu0 0.0
        %574 = vmatpush1.msra.mxu0 0.0
        %575 = vmatprep.subr.mxu0 0.0
        %576 = vmatpush1.msra.mxu0 0.0
        %577 = vmatprep.subr.mxu0 0.0
        %578 = vmatpush1.msra.mxu0 0.0
        %579 = vmatprep.subr.mxu0 0.0
        %580 = vmatpush1.msra.mxu0 0.0
        %581 = vmatprep.subr.mxu0 0.0
        %582 = vmatpush1.msra.mxu0 0.0
        %583 = vmatprep.subr.mxu0 0.0
        %584 = vmatpush1.msra.mxu0 0.0
        %585 = vmatprep.subr.mxu0 0.0
        %586 = vmatpush1.msra.mxu0 0.0
        %587 = vmatprep.subr.mxu0 0.0
        %588 = vmatpush1.msra.mxu0 0.0
        %589 = vmatprep.subr.mxu0 0.0
        %590 = vmatpush1.msra.mxu0 0.0
        %591 = vmatprep.subr.mxu0 0.0
        %592 = vmatpush1.msra.mxu0 0.0
        %593 = vmatprep.subr.mxu0 0.0
        %594 = vmatpush1.msra.mxu0 0.0
        %595 = vmatprep.subr.mxu0 0.0
        %596 = vmatpush1.msra.mxu0 0.0
        %597 = vmatprep.subr.mxu0 0.0
        %598 = vmatpush1.msra.mxu0 0.0
        %599 = vmatprep.subr.mxu0 0.0
        %600 = vmatpush1.msra.mxu0 0.0
        %601 = vmatprep.subr.mxu0 0.0
        %602 = vmatpush1.msra.mxu0 0.0
        %603 = vmatprep.subr.mxu0 0.0
        %604 = vmatpush1.msra.mxu0 0.0
        %605 = vmatprep.subr.mxu0 0.0
        %606 = vmatpush1.msra.mxu0 0.0
        %607 = vmatprep.subr.mxu0 0.0
        %608 = vmatpush1.msra.mxu0 0.0
        %609 = vmatprep.subr.mxu0 0.0
        %610 = vmatpush1.msra.mxu0 0.0
        %611 = vmatprep.subr.mxu0 0.0
        %612 = vmatpush1.msra.mxu0 0.0
        %613 = vmatprep.subr.mxu0 0.0
        %614 = vmatpush1.msra.mxu0 0.0
        %615 = vmatprep.subr.mxu0 0.0
        %616 = vmatpush1.msra.mxu0 0.0
        %617 = vmatprep.subr.mxu0 0.0
        %618 = vmatpush1.msra.mxu0 0.0
        %619 = vmatprep.subr.mxu0 0.0
        %620 = vmatpush1.msra.mxu0 0.0
        %621 = vmatprep.subr.mxu0 0.0
        %622 = vmatpush1.msra.mxu0 0.0
        %623 = vmatprep.subr.mxu0 0.0
        %624 = vmatpush1.msra.mxu0 0.0
        %625 = vmatprep.subr.mxu0 0.0
        %626 = vmatpush1.msra.mxu0 0.0
        %627 = vmatprep.subr.mxu0 0.0
        %628 = vmatpush1.msra.mxu0 0.0
        %629 = vmatprep.subr.mxu0 0.0
        %630 = vmatpush1.msra.mxu0 0.0
        %631 = vmatprep.subr.mxu0 0.0
        %632 = vmatpush1.msra.mxu0 0.0
        %633 = vmatprep.mubr.f32.mxu0 0.0
        %634 = vmatmul.mubr.f32.gmra.mrb[0].mxu0 %v388
        %v635 = vpop.f32.mrb[0].mxu0
        %v636 = vadd.f32 0.0, %v635
        %v637 = vpop.f32.mrb[0].mxu0
        %638 = vmatprep.mubr.f32.mxu0 0.0
        %639 = vmatmul.mubr.f32.gmra.mrb[0].mxu0 %v391
        %v640 = vpop.f32.mrb[0].mxu0
        %v641 = vadd.f32 0.0, %v640
        %v642 = vpop.f32.mrb[0].mxu0
        %643 = vmatprep.mubr.f32.mxu0 0.0
        %644 = vmatmul.mubr.f32.gmra.mrb[0].mxu0 %v394
        %v645 = vpop.f32.mrb[0].mxu0
        %v646 = vadd.f32 0.0, %v645
        %v647 = vpop.f32.mrb[0].mxu0
        %648 = vmatprep.mubr.f32.mxu0 0.0
        %649 = vmatmul.mubr.f32.gmra.mrb[0].mxu0 %v397
        %v650 = vpop.f32.mrb[0].mxu0
        %v651 = vadd.f32 0.0, %v650
        %v652 = vpop.f32.mrb[0].mxu0
        %653 = vdwg.mxu0
        %654 = vmatprep.subr.mxu0 0.0
        %655 = vmatpush1.msra.mxu0 %v375
        %656 = vmatprep.subr.mxu0 0.0
        %657 = vmatpush1.msra.mxu0 %v380
        %658 = vmatprep.subr.mxu0 0.0
        %659 = vmatpush1.msra.mxu0 0.0
        %660 = vmatprep.subr.mxu0 0.0
        %661 = vmatpush1.msra.mxu0 0.0
        %662 = vmatprep.subr.mxu0 0.0
        %663 = vmatpush1.msra.mxu0 0.0
        %664 = vmatprep.subr.mxu0 0.0
        %665 = vmatpush1.msra.mxu0 0.0
        %666 = vmatprep.subr.mxu0 0.0
        %667 = vmatpush1.msra.mxu0 0.0
        %668 = vmatprep.subr.mxu0 0.0
        %669 = vmatpush1.msra.mxu0 0.0
        %670 = vmatprep.subr.mxu0 0.0
        %671 = vmatpush1.msra.mxu0 0.0
        %672 = vmatprep.subr.mxu0 0.0
        %673 = vmatpush1.msra.mxu0 0.0
        %674 = vmatprep.subr.mxu0 0.0
        %675 = vmatpush1.msra.mxu0 0.0
        %676 = vmatprep.subr.mxu0 0.0
        %677 = vmatpush1.msra.mxu0 0.0
        %678 = vmatprep.subr.mxu0 0.0
        %679 = vmatpush1.msra.mxu0 0.0
        %680 = vmatprep.subr.mxu0 0.0
        %681 = vmatpush1.msra.mxu0 0.0
        %682 = vmatprep.subr.mxu0 0.0
        %683 = vmatpush1.msra.mxu0 0.0
        %684 = vmatprep.subr.mxu0 0.0
        %685 = vmatpush1.msra.mxu0 0.0
        %686 = vmatprep.subr.mxu0 0.0
        %687 = vmatpush1.msra.mxu0 0.0
        %688 = vmatprep.subr.mxu0 0.0
        %689 = vmatpush1.msra.mxu0 0.0
        %690 = vmatprep.subr.mxu0 0.0
        %691 = vmatpush1.msra.mxu0 0.0
        %692 = vmatprep.subr.mxu0 0.0
        %693 = vmatpush1.msra.mxu0 0.0
        %694 = vmatprep.subr.mxu0 0.0
        %695 = vmatpush1.msra.mxu0 0.0
        %696 = vmatprep.subr.mxu0 0.0
        %697 = vmatpush1.msra.mxu0 0.0
        %698 = vmatprep.subr.mxu0 0.0
        %699 = vmatpush1.msra.mxu0 0.0
        %700 = vmatprep.subr.mxu0 0.0
        %701 = vmatpush1.msra.mxu0 0.0
        %702 = vmatprep.subr.mxu0 0.0
        %703 = vmatpush1.msra.mxu0 0.0
        %704 = vmatprep.subr.mxu0 0.0
        %705 = vmatpush1.msra.mxu0 0.0
        %706 = vmatprep.subr.mxu0 0.0
        %707 = vmatpush1.msra.mxu0 0.0
        %708 = vmatprep.subr.mxu0 0.0
        %709 = vmatpush1.msra.mxu0 0.0
        %710 = vmatprep.subr.mxu0 0.0
        %711 = vmatpush1.msra.mxu0 0.0
        %712 = vmatprep.subr.mxu0 0.0
        %713 = vmatpush1.msra.mxu0 0.0
        %714 = vmatprep.subr.mxu0 0.0
        %715 = vmatpush1.msra.mxu0 0.0
        %716 = vmatprep.subr.mxu0 0.0
        %717 = vmatpush1.msra.mxu0 0.0
        %718 = vmatprep.mubr.f32.mxu0 0.0
        %719 = vmatmul.mubr.f32.gmra.mrb[0].mxu0 %v388
        %v720 = vpop.f32.mrb[0].mxu0
        %v721 = vadd.f32 0.0, %v720
        %v722 = vpop.f32.mrb[0].mxu0
        %723 = vmatprep.mubr.f32.mxu0 0.0
        %724 = vmatmul.mubr.f32.gmra.mrb[0].mxu0 %v391
        %v725 = vpop.f32.mrb[0].mxu0
        %v726 = vadd.f32 0.0, %v725
        %v727 = vpop.f32.mrb[0].mxu0
        %728 = vmatprep.mubr.f32.mxu0 0.0
        %729 = vmatmul.mubr.f32.gmra.mrb[0].mxu0 %v394
        %v730 = vpop.f32.mrb[0].mxu0
        %v731 = vadd.f32 0.0, %v730
        %v732 = vpop.f32.mrb[0].mxu0
        %733 = vmatprep.mubr.f32.mxu0 0.0
        %734 = vmatmul.mubr.f32.gmra.mrb[0].mxu0 %v397
        %v735 = vpop.f32.mrb[0].mxu0
        %v736 = vadd.f32 0.0, %v735
        %v737 = vpop.f32.mrb[0].mxu0
        %738 = vdwg.mxu0
        %v739 = vcombine.low %v466, %v636
        %v740 = vcombine.high %v466, %v636
        %v742 = vunpack.c.l.s4 1983009808
        %v743 = vunpack.c.0.s8 %v742
        %v744 = vlaneseq
        %v745 = vshrl.u32 %v744, 7
        %v746 = vsub.s32 %v743, %v745
        %v747 = vrot.slane %v739, %v746
        %v749 = vunpack.c.l.s4 1983009808
        %v750 = vunpack.c.0.s8 %v749
        %v751 = vlaneseq
        %v752 = vshrl.u32 %v751, 7
        %v753 = vsub.s32 %v750, %v752
        %v754 = vrot.slane %v740, %v753
        %v755 = vcombine.low %v551, %v721
        %v756 = vcombine.high %v551, %v721
        %v758 = vunpack.c.l.s4 1983009808
        %v759 = vunpack.c.0.s8 %v758
        %v760 = vlaneseq
        %v761 = vshrl.u32 %v760, 7
        %v762 = vsub.s32 %v759, %v761
        %v763 = vrot.slane %v755, %v762
        %v765 = vunpack.c.l.s4 1983009808
        %v766 = vunpack.c.0.s8 %v765
        %v767 = vlaneseq
        %v768 = vshrl.u32 %v767, 7
        %v769 = vsub.s32 %v766, %v768
        %v770 = vrot.slane %v756, %v769
        %v771 = vcombine.low %v747, %v763
        %v772 = vcombine.high %v747, %v763
        %v774 = vunpack.c.l.s4 1934713408
        %v775 = vunpack.c.0.s8 %v774
        %v776 = vlaneseq
        %v777 = vshrl.u32 %v776, 7
        %v778 = vsub.s32 %v775, %v777
        %v779 = vrot.slane %v771, %v778
        %v781 = vunpack.c.l.s4 1934713408
        %v782 = vunpack.c.0.s8 %v781
        %v783 = vlaneseq
        %v784 = vshrl.u32 %v783, 7
        %v785 = vsub.s32 %v782, %v784
        %v786 = vrot.slane %v772, %v785
        %v787 = vcombine.low %v754, %v770
        %v788 = vcombine.high %v754, %v770
        %v790 = vunpack.c.l.s4 1934713408
        %v791 = vunpack.c.0.s8 %v790
        %v792 = vlaneseq
        %v793 = vshrl.u32 %v792, 7
        %v794 = vsub.s32 %v791, %v793
        %v795 = vrot.slane %v787, %v794
        %v797 = vunpack.c.l.s4 1934713408
        %v798 = vunpack.c.0.s8 %v797
        %v799 = vlaneseq
        %v800 = vshrl.u32 %v799, 7
        %v801 = vsub.s32 %v798, %v800
        %v802 = vrot.slane %v788, %v801
        %v803 = vcombine.high %v779, 0.0
        %v804 = vcombine.high %v786, 0.0
        %v805 = vcombine.high %v795, 0.0
        %v806 = vcombine.high %v802, 0.0
        %v807 = vcombine.low %v471, %v641
        %v808 = vcombine.high %v471, %v641
        %v810 = vunpack.c.l.s4 1983009808
        %v811 = vunpack.c.0.s8 %v810
        %v812 = vlaneseq
        %v813 = vshrl.u32 %v812, 7
        %v814 = vsub.s32 %v811, %v813
        %v815 = vrot.slane %v807, %v814
        %v817 = vunpack.c.l.s4 1983009808
        %v818 = vunpack.c.0.s8 %v817
        %v819 = vlaneseq
        %v820 = vshrl.u32 %v819, 7
        %v821 = vsub.s32 %v818, %v820
        %v822 = vrot.slane %v808, %v821
        %v823 = vcombine.low %v556, %v726
        %v824 = vcombine.high %v556, %v726
        %v826 = vunpack.c.l.s4 1983009808
        %v827 = vunpack.c.0.s8 %v826
        %v828 = vlaneseq
        %v829 = vshrl.u32 %v828, 7
        %v830 = vsub.s32 %v827, %v829
        %v831 = vrot.slane %v823, %v830
        %v833 = vunpack.c.l.s4 1983009808
        %v834 = vunpack.c.0.s8 %v833
        %v835 = vlaneseq
        %v836 = vshrl.u32 %v835, 7
        %v837 = vsub.s32 %v834, %v836
        %v838 = vrot.slane %v824, %v837
        %v839 = vcombine.low %v815, %v831
        %v840 = vcombine.high %v815, %v831
        %v842 = vunpack.c.l.s4 1934713408
        %v843 = vunpack.c.0.s8 %v842
        %v844 = vlaneseq
        %v845 = vshrl.u32 %v844, 7
        %v846 = vsub.s32 %v843, %v845
        %v847 = vrot.slane %v839, %v846
        %v849 = vunpack.c.l.s4 1934713408
        %v850 = vunpack.c.0.s8 %v849
        %v851 = vlaneseq
        %v852 = vshrl.u32 %v851, 7
        %v853 = vsub.s32 %v850, %v852
        %v854 = vrot.slane %v840, %v853
        %v855 = vcombine.low %v822, %v838
        %v856 = vcombine.high %v822, %v838
        %v858 = vunpack.c.l.s4 1934713408
        %v859 = vunpack.c.0.s8 %v858
        %v860 = vlaneseq
        %v861 = vshrl.u32 %v860, 7
        %v862 = vsub.s32 %v859, %v861
        %v863 = vrot.slane %v855, %v862
        %v865 = vunpack.c.l.s4 1934713408
        %v866 = vunpack.c.0.s8 %v865
        %v867 = vlaneseq
        %v868 = vshrl.u32 %v867, 7
        %v869 = vsub.s32 %v866, %v868
        %v870 = vrot.slane %v856, %v869
        %v871 = vcombine.high %v847, 0.0
        %v872 = vcombine.high %v854, 0.0
        %v873 = vcombine.high %v863, 0.0
        %v874 = vcombine.high %v870, 0.0
        %v875 = vcombine.low %v476, %v646
        %v876 = vcombine.high %v476, %v646
        %v878 = vunpack.c.l.s4 1983009808
        %v879 = vunpack.c.0.s8 %v878
        %v880 = vlaneseq
        %v881 = vshrl.u32 %v880, 7
        %v882 = vsub.s32 %v879, %v881
        %v883 = vrot.slane %v875, %v882
        %v885 = vunpack.c.l.s4 1983009808
        %v886 = vunpack.c.0.s8 %v885
        %v887 = vlaneseq
        %v888 = vshrl.u32 %v887, 7
        %v889 = vsub.s32 %v886, %v888
        %v890 = vrot.slane %v876, %v889
        %v891 = vcombine.low %v561, %v731
        %v892 = vcombine.high %v561, %v731
        %v894 = vunpack.c.l.s4 1983009808
        %v895 = vunpack.c.0.s8 %v894
        %v896 = vlaneseq
        %v897 = vshrl.u32 %v896, 7
        %v898 = vsub.s32 %v895, %v897
        %v899 = vrot.slane %v891, %v898
        %v901 = vunpack.c.l.s4 1983009808
        %v902 = vunpack.c.0.s8 %v901
        %v903 = vlaneseq
        %v904 = vshrl.u32 %v903, 7
        %v905 = vsub.s32 %v902, %v904
        %v906 = vrot.slane %v892, %v905
        %v907 = vcombine.low %v883, %v899
        %v908 = vcombine.high %v883, %v899
        %v910 = vunpack.c.l.s4 1934713408
        %v911 = vunpack.c.0.s8 %v910
        %v912 = vlaneseq
        %v913 = vshrl.u32 %v912, 7
        %v914 = vsub.s32 %v911, %v913
        %v915 = vrot.slane %v907, %v914
        %v917 = vunpack.c.l.s4 1934713408
        %v918 = vunpack.c.0.s8 %v917
        %v919 = vlaneseq
        %v920 = vshrl.u32 %v919, 7
        %v921 = vsub.s32 %v918, %v920
        %v922 = vrot.slane %v908, %v921
        %v923 = vcombine.low %v890, %v906
        %v924 = vcombine.high %v890, %v906
        %v926 = vunpack.c.l.s4 1934713408
        %v927 = vunpack.c.0.s8 %v926
        %v928 = vlaneseq
        %v929 = vshrl.u32 %v928, 7
        %v930 = vsub.s32 %v927, %v929
        %v931 = vrot.slane %v923, %v930
        %v933 = vunpack.c.l.s4 1934713408
        %v934 = vunpack.c.0.s8 %v933
        %v935 = vlaneseq
        %v936 = vshrl.u32 %v935, 7
        %v937 = vsub.s32 %v934, %v936
        %v938 = vrot.slane %v924, %v937
        %v939 = vcombine.high %v915, 0.0
        %v940 = vcombine.high %v922, 0.0
        %v941 = vcombine.high %v931, 0.0
        %v942 = vcombine.high %v938, 0.0
        %v943 = vcombine.low %v481, %v651
        %v944 = vcombine.high %v481, %v651
        %v946 = vunpack.c.l.s4 1983009808
        %v947 = vunpack.c.0.s8 %v946
        %v948 = vlaneseq
        %v949 = vshrl.u32 %v948, 7
        %v950 = vsub.s32 %v947, %v949
        %v951 = vrot.slane %v943, %v950
        %v953 = vunpack.c.l.s4 1983009808
        %v954 = vunpack.c.0.s8 %v953
        %v955 = vlaneseq
        %v956 = vshrl.u32 %v955, 7
        %v957 = vsub.s32 %v954, %v956
        %v958 = vrot.slane %v944, %v957
        %v959 = vcombine.low %v566, %v736
        %v960 = vcombine.high %v566, %v736
        %v962 = vunpack.c.l.s4 1983009808
        %v963 = vunpack.c.0.s8 %v962
        %v964 = vlaneseq
        %v965 = vshrl.u32 %v964, 7
        %v966 = vsub.s32 %v963, %v965
        %v967 = vrot.slane %v959, %v966
        %v969 = vunpack.c.l.s4 1983009808
        %v970 = vunpack.c.0.s8 %v969
        %v971 = vlaneseq
        %v972 = vshrl.u32 %v971, 7
        %v973 = vsub.s32 %v970, %v972
        %v974 = vrot.slane %v960, %v973
        %v975 = vcombine.low %v951, %v967
        %v976 = vcombine.high %v951, %v967
        %v978 = vunpack.c.l.s4 1934713408
        %v979 = vunpack.c.0.s8 %v978
        %v980 = vlaneseq
        %v981 = vshrl.u32 %v980, 7
        %v982 = vsub.s32 %v979, %v981
        %v983 = vrot.slane %v975, %v982
        %v985 = vunpack.c.l.s4 1934713408
        %v986 = vunpack.c.0.s8 %v985
        %v987 = vlaneseq
        %v988 = vshrl.u32 %v987, 7
        %v989 = vsub.s32 %v986, %v988
        %v990 = vrot.slane %v976, %v989
        %v991 = vcombine.low %v958, %v974
        %v992 = vcombine.high %v958, %v974
        %v994 = vunpack.c.l.s4 1934713408
        %v995 = vunpack.c.0.s8 %v994
        %v996 = vlaneseq
        %v997 = vshrl.u32 %v996, 7
        %v998 = vsub.s32 %v995, %v997
        %v999 = vrot.slane %v991, %v998
        %v1001 = vunpack.c.l.s4 1934713408
        %v1002 = vunpack.c.0.s8 %v1001
        %v1003 = vlaneseq
        %v1004 = vshrl.u32 %v1003, 7
        %v1005 = vsub.s32 %v1002, %v1004
        %v1006 = vrot.slane %v992, %v1005
        %v1007 = vcombine.high %v983, 0.0
        %v1008 = vcombine.high %v990, 0.0
        %v1009 = vcombine.high %v999, 0.0
        %v1010 = vcombine.high %v1006, 0.0
        %1012 = vrot.lane.b32.xlu0 %v803, 32
        %v1013 = vpop.permute.xlu0 %1012
        %1016 = vrot.lane.b32.xlu0 %v786, 64
        %v1017 = vpop.permute.xlu0 %1016
        %1020 = vrot.lane.b32.xlu0 %v804, 96
        %v1021 = vpop.permute.xlu0 %1020
        %1024 = vrot.lane.b32.xlu0 %v805, 32
        %v1025 = vpop.permute.xlu0 %1024
        %1028 = vrot.lane.b32.xlu0 %v802, 64
        %v1029 = vpop.permute.xlu0 %1028
        %1032 = vrot.lane.b32.xlu0 %v806, 96
        %v1033 = vpop.permute.xlu0 %1032
        %1036 = vrot.lane.b32.xlu0 %v871, 32
        %v1037 = vpop.permute.xlu0 %1036
        %1040 = vrot.lane.b32.xlu0 %v854, 64
        %v1041 = vpop.permute.xlu0 %1040
        %1044 = vrot.lane.b32.xlu0 %v872, 96
        %v1045 = vpop.permute.xlu0 %1044
        %1048 = vrot.lane.b32.xlu0 %v873, 32
        %v1049 = vpop.permute.xlu0 %1048
        %1052 = vrot.lane.b32.xlu0 %v870, 64
        %v1053 = vpop.permute.xlu0 %1052
        %1056 = vrot.lane.b32.xlu0 %v874, 96
        %v1057 = vpop.permute.xlu0 %1056
        %1060 = vrot.lane.b32.xlu0 %v939, 32
        %v1061 = vpop.permute.xlu0 %1060
        %1064 = vrot.lane.b32.xlu0 %v922, 64
        %v1065 = vpop.permute.xlu0 %1064
        %1068 = vrot.lane.b32.xlu0 %v940, 96
        %v1069 = vpop.permute.xlu0 %1068
        %1072 = vrot.lane.b32.xlu0 %v941, 32
        %v1073 = vpop.permute.xlu0 %1072
        %1076 = vrot.lane.b32.xlu0 %v938, 64
        %v1077 = vpop.permute.xlu0 %1076
        %1080 = vrot.lane.b32.xlu0 %v942, 96
        %v1081 = vpop.permute.xlu0 %1080
        %1084 = vrot.lane.b32.xlu0 %v1007, 32
        %v1085 = vpop.permute.xlu0 %1084
        %1088 = vrot.lane.b32.xlu0 %v990, 64
        %v1089 = vpop.permute.xlu0 %1088
        %1092 = vrot.lane.b32.xlu0 %v1008, 96
        %v1093 = vpop.permute.xlu0 %1092
        %1096 = vrot.lane.b32.xlu0 %v1009, 32
        %v1097 = vpop.permute.xlu0 %1096
        %1100 = vrot.lane.b32.xlu0 %v1006, 64
        %v1101 = vpop.permute.xlu0 %1100
        %1104 = vrot.lane.b32.xlu0 %v1010, 96
        %v1105 = vpop.permute.xlu0 %1104
        %vm1107 = vcmask 261120
        %v1108 = vsel %vm1107, %v779, %v1013
        %vm1109 = vcmask 523264
        %v1110 = vsel %vm1109, %v1108, %v1017
        %vm1111 = vcmask 785408
        %v1112 = vsel %vm1111, %v1110, %v1021
        %v1113 = vsel %vm1107, %v795, %v1025
        %v1114 = vsel %vm1109, %v1113, %v1029
        %v1115 = vsel %vm1111, %v1114, %v1033
        %v1116 = vsel %vm1107, %v847, %v1037
        %v1117 = vsel %vm1109, %v1116, %v1041
        %v1118 = vsel %vm1111, %v1117, %v1045
        %v1119 = vsel %vm1107, %v863, %v1049
        %v1120 = vsel %vm1109, %v1119, %v1053
        %v1121 = vsel %vm1111, %v1120, %v1057
        %v1122 = vsel %vm1107, %v915, %v1061
        %v1123 = vsel %vm1109, %v1122, %v1065
        %v1124 = vsel %vm1111, %v1123, %v1069
        %v1125 = vsel %vm1107, %v931, %v1073
        %v1126 = vsel %vm1109, %v1125, %v1077
        %v1127 = vsel %vm1111, %v1126, %v1081
        %v1128 = vsel %vm1107, %v983, %v1085
        %v1129 = vsel %vm1109, %v1128, %v1089
        %v1130 = vsel %vm1111, %v1129, %v1093
        %v1131 = vsel %vm1107, %v999, %v1097
        %v1132 = vsel %vm1109, %v1131, %v1101
        %v1133 = vsel %vm1111, %v1132, %v1105
        %v1134 = vlaneseq
        %v1135 = vand.u32 %v1134, 127
        %v1136 = vadd.s32 %v1135, 128
        %v1137 = vadd.s32 %v1135, 256
        %v1138 = vadd.s32 %v1135, 384
        %v1139 = vadd.s32 %v1135, 512
        %v1140 = vadd.s32 %v1135, 640
        %v1141 = vadd.s32 %v1135, 768
        %v1142 = vadd.s32 %v1135, 896
        %vm1143 = vcmp.lt.s32.totalorder %v1135, 0
        %v1144 = vsub.s32 0, %v1135
        %v1145 = vsel %vm1143, %v1144, %v1135
        %v1146 = vshrl.u32 %v1145, 5
        %v1147 = vand.u32 %v1145, 31
        %v1148 = vsub.s32 0, %v1147
        %v1149 = vsel %vm1143, %v1148, %v1147
        %vm1150 = vcmp.lt.s32.totalorder %v1136, 0
        %v1151 = vsub.s32 0, %v1136
        %v1152 = vsel %vm1150, %v1151, %v1136
        %v1153 = vshrl.u32 %v1152, 5
        %v1154 = vand.u32 %v1152, 31
        %v1155 = vsub.s32 0, %v1154
        %v1156 = vsel %vm1150, %v1155, %v1154
        %vm1157 = vcmp.lt.s32.totalorder %v1137, 0
        %v1158 = vsub.s32 0, %v1137
        %v1159 = vsel %vm1157, %v1158, %v1137
        %v1160 = vshrl.u32 %v1159, 5
        %v1161 = vand.u32 %v1159, 31
        %v1162 = vsub.s32 0, %v1161
        %v1163 = vsel %vm1157, %v1162, %v1161
        %vm1164 = vcmp.lt.s32.totalorder %v1138, 0
        %v1165 = vsub.s32 0, %v1138
        %v1166 = vsel %vm1164, %v1165, %v1138
        %v1167 = vshrl.u32 %v1166, 5
        %v1168 = vand.u32 %v1166, 31
        %v1169 = vsub.s32 0, %v1168
        %v1170 = vsel %vm1164, %v1169, %v1168
        %vm1171 = vcmp.lt.s32.totalorder %v1139, 0
        %v1172 = vsub.s32 0, %v1139
        %v1173 = vsel %vm1171, %v1172, %v1139
        %v1174 = vshrl.u32 %v1173, 5
        %v1175 = vand.u32 %v1173, 31
        %v1176 = vsub.s32 0, %v1175
        %v1177 = vsel %vm1171, %v1176, %v1175
        %vm1178 = vcmp.lt.s32.totalorder %v1140, 0
        %v1179 = vsub.s32 0, %v1140
        %v1180 = vsel %vm1178, %v1179, %v1140
        %v1181 = vshrl.u32 %v1180, 5
        %v1182 = vand.u32 %v1180, 31
        %v1183 = vsub.s32 0, %v1182
        %v1184 = vsel %vm1178, %v1183, %v1182
        %vm1185 = vcmp.lt.s32.totalorder %v1141, 0
        %v1186 = vsub.s32 0, %v1141
        %v1187 = vsel %vm1185, %v1186, %v1141
        %v1188 = vshrl.u32 %v1187, 5
        %v1189 = vand.u32 %v1187, 31
        %v1190 = vsub.s32 0, %v1189
        %v1191 = vsel %vm1185, %v1190, %v1189
        %vm1192 = vcmp.lt.s32.totalorder %v1142, 0
        %v1193 = vsub.s32 0, %v1142
        %v1194 = vsel %vm1192, %v1193, %v1142
        %v1195 = vshrl.u32 %v1194, 5
        %v1196 = vand.u32 %v1194, 31
        %v1197 = vsub.s32 0, %v1196
        %v1198 = vsel %vm1192, %v1197, %v1196
        %vm1199 = vcmp.ne.s32.totalorder %v1149, 0
        %vm1200 = vcmp.ne.s32.totalorder %v1156, 0
        %vm1201 = vcmp.ne.s32.totalorder %v1163, 0
        %vm1202 = vcmp.ne.s32.totalorder %v1170, 0
        %vm1203 = vcmp.ne.s32.totalorder %v1177, 0
        %vm1204 = vcmp.ne.s32.totalorder %v1184, 0
        %vm1205 = vcmp.ne.s32.totalorder %v1191, 0
        %vm1206 = vcmp.ne.s32.totalorder %v1198, 0
        %vm1207 = vcmp.lt.s32.totalorder %v1149, 0
        %vm1208 = vcmp.lt.s32.totalorder %v1156, 0
        %vm1209 = vcmp.lt.s32.totalorder %v1163, 0
        %vm1210 = vcmp.lt.s32.totalorder %v1170, 0
        %vm1211 = vcmp.lt.s32.totalorder %v1177, 0
        %vm1212 = vcmp.lt.s32.totalorder %v1184, 0
        %vm1213 = vcmp.lt.s32.totalorder %v1191, 0
        %vm1214 = vcmp.lt.s32.totalorder %v1198, 0
        %vm1215 = vmand %vm1207, %vm1199
        %vm1216 = vmand %vm1208, %vm1200
        %vm1217 = vmand %vm1209, %vm1201
        %vm1218 = vmand %vm1210, %vm1202
        %vm1219 = vmand %vm1211, %vm1203
        %vm1220 = vmand %vm1212, %vm1204
        %vm1221 = vmand %vm1213, %vm1205
        %vm1222 = vmand %vm1214, %vm1206
        %v1223 = vadd.s32 %v1149, 32
        %v1224 = vadd.s32 %v1156, 32
        %v1225 = vadd.s32 %v1163, 32
        %v1226 = vadd.s32 %v1170, 32
        %v1227 = vadd.s32 %v1177, 32
        %v1228 = vadd.s32 %v1184, 32
        %v1229 = vadd.s32 %v1191, 32
        %v1230 = vadd.s32 %v1198, 32
        %v1231 = vsel %vm1215, %v1223, %v1149
        %v1232 = vsel %vm1216, %v1224, %v1156
        %v1233 = vsel %vm1217, %v1225, %v1163
        %v1234 = vsel %vm1218, %v1226, %v1170
        %v1235 = vsel %vm1219, %v1227, %v1177
        %v1236 = vsel %vm1220, %v1228, %v1184
        %v1237 = vsel %vm1221, %v1229, %v1191
        %v1238 = vsel %vm1222, %v1230, %v1198
        %vm1239 = vcmp.ge.s32.totalorder %v1231, 1
        %vm1240 = vcmp.ge.s32.totalorder %v1232, 1
        %vm1241 = vcmp.ge.s32.totalorder %v1233, 1
        %vm1242 = vcmp.ge.s32.totalorder %v1234, 1
        %vm1243 = vcmp.ge.s32.totalorder %v1235, 1
        %vm1244 = vcmp.ge.s32.totalorder %v1236, 1
        %vm1245 = vcmp.ge.s32.totalorder %v1237, 1
        %vm1246 = vcmp.ge.s32.totalorder %v1238, 1
        %vm1247 = vcmp.le.s32.totalorder %v1231, 30
        %vm1248 = vcmp.le.s32.totalorder %v1232, 30
        %vm1249 = vcmp.le.s32.totalorder %v1233, 30
        %vm1250 = vcmp.le.s32.totalorder %v1234, 30
        %vm1251 = vcmp.le.s32.totalorder %v1235, 30
        %vm1252 = vcmp.le.s32.totalorder %v1236, 30
        %vm1253 = vcmp.le.s32.totalorder %v1237, 30
        %vm1254 = vcmp.le.s32.totalorder %v1238, 30
        %1255 = vst [vmem:[#allocation2] sm:$0x3] 0
        %1256 = vst [vmem:[#allocation2 + $0x24] sm:$0x3] 0
        %v1257 = vpack.c.bf16 %v1112, %v1112
        %v1258 = vpack.c.bf16 %v1115, %v1115
        %v1259 = vpack.c.bf16 %v1118, %v1118
        %v1260 = vpack.c.bf16 %v1121, %v1121
        %v1261 = vpack.c.bf16 %v1124, %v1124
        %v1262 = vpack.c.bf16 %v1127, %v1127
        %v1263 = vpack.c.bf16 %v1130, %v1130
        %v1264 = vpack.c.bf16 %v1133, %v1133
        %v1273 = vunpack.c.l.b16 %v1257
        %v1274 = vunpack.c.l.b16 %v1258
        %v1275 = vunpack.c.l.b16 %v1259
        %v1276 = vunpack.c.l.b16 %v1260
        %v1277 = vunpack.c.l.b16 %v1261
        %v1278 = vunpack.c.l.b16 %v1262
        %v1279 = vunpack.c.l.b16 %v1263
        %v1280 = vunpack.c.l.b16 %v1264
        %v1281 = vpack.c.b16 %v1274, %v1273
        %v1282 = vpack.c.b16 %v1276, %v1275
        %v1283 = vpack.c.b16 %v1278, %v1277
        %v1284 = vpack.c.b16 %v1280, %v1279
        %1289 = vst [vmem:[#allocation2 + $0x4] sm:$0x33] %v1281
        %1290 = vst [vmem:[#allocation2 + $0xc] sm:$0x33] %v1282
        %1291 = vst [vmem:[#allocation2 + $0x14] sm:$0x33] %v1283
        %1292 = vst [vmem:[#allocation2 + $0x1c] sm:$0x33] %v1284
        %v1293 = vld [vmem:[#allocation2] sm:$0x33]
        %v1294 = vld [vmem:[#allocation2 + $0x8] sm:$0x33]
        %v1295 = vld [vmem:[#allocation2 + $0x10] sm:$0x33]
        %v1296 = vld [vmem:[#allocation2 + $0x18] sm:$0x33]
        %v1297 = vld [vmem:[#allocation2 + $0x20] sm:$0x3]
        %v1298 = vsel %vm1239, 1, 0
        %v1299 = vsel %vm1240, 1, 0
        %v1300 = vsel %vm1241, 1, 0
        %v1301 = vsel %vm1242, 1, 0
        %v1302 = vsel %vm1243, 1, 0
        %v1303 = vsel %vm1244, 1, 0
        %v1304 = vsel %vm1245, 1, 0
        %v1305 = vsel %vm1246, 1, 0
        %vm1306 = vcmp.eq.s32.totalorder %v1298, 1
        %vm1307 = vcmp.eq.s32.totalorder %v1299, 1
        %vm1308 = vcmp.eq.s32.totalorder %v1300, 1
        %vm1309 = vcmp.eq.s32.totalorder %v1301, 1
        %vm1310 = vcmp.eq.s32.totalorder %v1302, 1
        %vm1311 = vcmp.eq.s32.totalorder %v1303, 1
        %vm1312 = vcmp.eq.s32.totalorder %v1304, 1
        %vm1313 = vcmp.eq.s32.totalorder %v1305, 1
        %vm1314 = vmpackc.low %vm1307, %vm1306
        %vm1315 = vmpackc.low %vm1309, %vm1308
        %vm1316 = vmpackc.low %vm1311, %vm1310
        %vm1317 = vmpackc.low %vm1313, %vm1312
        %v1318 = vsel %vm1314, 65537, 0
        %v1319 = vsel %vm1315, 65537, 0
        %v1320 = vsel %vm1316, 65537, 0
        %v1321 = vsel %vm1317, 65537, 0
        %1322 = vrot.lane.b32.xlu0 %v1318, 95
        %v1323 = vpop.permute.xlu0 %1322
        %1324 = vrot.lane.b32.xlu0 %v1319, 95
        %v1325 = vpop.permute.xlu0 %1324
        %1326 = vrot.lane.b32.xlu0 %v1320, 95
        %v1327 = vpop.permute.xlu0 %1326
        %1328 = vrot.lane.b32.xlu0 %v1321, 95
        %v1329 = vpop.permute.xlu0 %1328
        %v1330 = vrot.slane %v1323, 4
        %v1331 = vrot.slane %v1325, 4
        %v1332 = vrot.slane %v1327, 4
        %v1333 = vrot.slane %v1329, 4
        %vm1334 = vcmask 777216
        %v1335 = vsel %vm1334, %v1330, %v1323
        %vm1336 = vcmask 1043456
        %v1337 = vsel %vm1336, %v1330, %v1331
        %v1338 = vsel %vm1334, %v1337, %v1325
        %v1339 = vsel %vm1336, %v1331, %v1332
        %v1340 = vsel %vm1334, %v1339, %v1327
        %v1341 = vsel %vm1336, %v1332, %v1333
        %v1342 = vsel %vm1334, %v1341, %v1329
        %vm1343 = vcmp.ne.s16.totalorder %v1335, 0
        %vm1344 = vcmp.ne.s16.totalorder %v1338, 0
        %vm1345 = vcmp.ne.s16.totalorder %v1340, 0
        %vm1346 = vcmp.ne.s16.totalorder %v1342, 0
        %vm1347 = vcmp.ne.s16.totalorder %v1333, 0
        %v1348 = vsel %vm1343, %v1293, 0
        %v1349 = vsel %vm1344, %v1294, 0
        %v1350 = vsel %vm1345, %v1295, 0
        %v1351 = vsel %vm1346, %v1296, 0
        %v1352 = vsel %vm1347, %v1297, 0
        %v1353 = vld [vmem:[%s3] sm:$0xf]
        %s1354 = scalar_lea.vmem %s3, 4
        %v1355 = vld [vmem:[%s1354] sm:$0xf]
        %v1361 = vunpack.c.l.b16 %v1293
        %v1362 = vunpack.c.h.b16 %v1293
        %v1363 = vunpack.c.l.b16 %v1294
        %v1364 = vunpack.c.h.b16 %v1294
        %v1365 = vunpack.c.l.b16 %v1295
        %v1366 = vunpack.c.h.b16 %v1295
        %v1367 = vunpack.c.l.b16 %v1296
        %v1368 = vunpack.c.h.b16 %v1296
        %v1369 = vunpack.c.l.b16 %v1297
        %v1370 = vpack.c.b16 %v1361, %v1361
        %v1371 = vpack.c.b16 %v1362, %v1362
        %v1372 = vpack.c.b16 %v1363, %v1363
        %v1373 = vpack.c.b16 %v1364, %v1364
        %v1374 = vpack.c.b16 %v1365, %v1365
        %v1375 = vpack.c.b16 %v1366, %v1366
        %v1376 = vpack.c.b16 %v1367, %v1367
        %v1377 = vpack.c.b16 %v1368, %v1368
        %v1378 = vpack.c.b16 %v1369, %v1369
        %1379 = vrot.lane.b32.xlu0 %v1370, 32
        %v1380 = vpop.permute.xlu0 %1379
        %1381 = vrot.lane.b32.xlu0 %v1371, 32
        %v1382 = vpop.permute.xlu0 %1381
        %1383 = vrot.lane.b32.xlu0 %v1372, 32
        %v1384 = vpop.permute.xlu0 %1383
        %1385 = vrot.lane.b32.xlu0 %v1373, 32
        %v1386 = vpop.permute.xlu0 %1385
        %1387 = vrot.lane.b32.xlu0 %v1374, 32
        %v1388 = vpop.permute.xlu0 %1387
        %1389 = vrot.lane.b32.xlu0 %v1375, 32
        %v1390 = vpop.permute.xlu0 %1389
        %1391 = vrot.lane.b32.xlu0 %v1376, 32
        %v1392 = vpop.permute.xlu0 %1391
        %1393 = vrot.lane.b32.xlu0 %v1377, 32
        %v1394 = vpop.permute.xlu0 %1393
        %1395 = vrot.lane.b32.xlu0 %v1378, 32
        %v1396 = vpop.permute.xlu0 %1395
        %vm1397 = vcmask 261120
        %v1398 = vsel %vm1397, %v1380, %v1382
        %v1399 = vsel %vm1397, %v1382, %v1384
        %v1400 = vsel %vm1397, %v1384, %v1386
        %v1401 = vsel %vm1397, %v1386, %v1388
        %v1402 = vsel %vm1397, %v1388, %v1390
        %v1403 = vsel %vm1397, %v1390, %v1392
        %v1404 = vsel %vm1397, %v1392, %v1394
        %v1405 = vsel %vm1397, %v1394, %v1396
        %vm1406 = vcmask 31744
        %v1408 = vsel %vm1406, %v1355, 0
        %vm1410 = vcmask 1041408
        %v1412 = vsel %vm1410, %v1398, 0
        %v1415 = vsel %vm1410, %v1399, 0
        %v1418 = vsel %vm1410, %v1400, 0
        %v1421 = vsel %vm1410, %v1401, 0
        %v1424 = vsel %vm1410, %v1402, 0
        %v1427 = vsel %vm1410, %v1403, 0
        %v1430 = vsel %vm1410, %v1404, 0
        %v1433 = vsel %vm1410, %v1405, 0
        %1435 = vmatprep.subr.bf16.mxu0 %v1415
        %1436 = vmatpush1.bf16.msra.mxu0 %v1412
        %1437 = vmatprep.subr.bf16.mxu0 0
        %1438 = vmatpush1.bf16.msra.mxu0 0
        %1439 = vmatprep.subr.bf16.mxu0 0
        %1440 = vmatpush1.bf16.msra.mxu0 0
        %1441 = vmatprep.subr.bf16.mxu0 0
        %1442 = vmatpush1.bf16.msra.mxu0 0
        %1443 = vmatprep.subr.bf16.mxu0 0
        %1444 = vmatpush1.bf16.msra.mxu0 0
        %1445 = vmatprep.subr.bf16.mxu0 0
        %1446 = vmatpush1.bf16.msra.mxu0 0
        %1447 = vmatprep.subr.bf16.mxu0 0
        %1448 = vmatpush1.bf16.msra.mxu0 0
        %1449 = vmatprep.subr.bf16.mxu0 0
        %1450 = vmatpush1.bf16.msra.mxu0 0
        %1451 = vmatprep.subr.bf16.mxu0 0
        %1452 = vmatpush1.bf16.msra.mxu0 0
        %1453 = vmatprep.subr.bf16.mxu0 0
        %1454 = vmatpush1.bf16.msra.mxu0 0
        %1455 = vmatprep.subr.bf16.mxu0 0
        %1456 = vmatpush1.bf16.msra.mxu0 0
        %1457 = vmatprep.subr.bf16.mxu0 0
        %1458 = vmatpush1.bf16.msra.mxu0 0
        %1459 = vmatprep.subr.bf16.mxu0 0
        %1460 = vmatpush1.bf16.msra.mxu0 0
        %1461 = vmatprep.subr.bf16.mxu0 0
        %1462 = vmatpush1.bf16.msra.mxu0 0
        %1463 = vmatprep.subr.bf16.mxu0 0
        %1464 = vmatpush1.bf16.msra.mxu0 0
        %1465 = vmatprep.subr.bf16.mxu0 0
        %1466 = vmatpush1.bf16.msra.mxu0 0
        %1467 = vmatprep.mubr.bf16.mxu0 0
        %1468 = vmatmul.mubr.bf16.gmra.mrb[0].mxu0 %v1408
        %v1469 = vpop.f32.mrb[0].mxu0
        %v1470 = vadd.f32 0.0, %v1469
        %v1471 = vpop.f32.mrb[0].mxu0
        %v1472 = vadd.f32 0.0, %v1471
        %v1473 = vpop.f32.mrb[0].mxu0
        %v1474 = vpop.f32.mrb[0].mxu0
        %1475 = vdwg.mxu0
        %1476 = vmatprep.subr.bf16.mxu0 %v1421
        %1477 = vmatpush1.bf16.msra.mxu0 %v1418
        %1478 = vmatprep.subr.bf16.mxu0 0
        %1479 = vmatpush1.bf16.msra.mxu0 0
        %1480 = vmatprep.subr.bf16.mxu0 0
        %1481 = vmatpush1.bf16.msra.mxu0 0
        %1482 = vmatprep.subr.bf16.mxu0 0
        %1483 = vmatpush1.bf16.msra.mxu0 0
        %1484 = vmatprep.subr.bf16.mxu0 0
        %1485 = vmatpush1.bf16.msra.mxu0 0
        %1486 = vmatprep.subr.bf16.mxu0 0
        %1487 = vmatpush1.bf16.msra.mxu0 0
        %1488 = vmatprep.subr.bf16.mxu0 0
        %1489 = vmatpush1.bf16.msra.mxu0 0
        %1490 = vmatprep.subr.bf16.mxu0 0
        %1491 = vmatpush1.bf16.msra.mxu0 0
        %1492 = vmatprep.subr.bf16.mxu0 0
        %1493 = vmatpush1.bf16.msra.mxu0 0
        %1494 = vmatprep.subr.bf16.mxu0 0
        %1495 = vmatpush1.bf16.msra.mxu0 0
        %1496 = vmatprep.subr.bf16.mxu0 0
        %1497 = vmatpush1.bf16.msra.mxu0 0
        %1498 = vmatprep.subr.bf16.mxu0 0
        %1499 = vmatpush1.bf16.msra.mxu0 0
        %1500 = vmatprep.subr.bf16.mxu0 0
        %1501 = vmatpush1.bf16.msra.mxu0 0
        %1502 = vmatprep.subr.bf16.mxu0 0
        %1503 = vmatpush1.bf16.msra.mxu0 0
        %1504 = vmatprep.subr.bf16.mxu0 0
        %1505 = vmatpush1.bf16.msra.mxu0 0
        %1506 = vmatprep.subr.bf16.mxu0 0
        %1507 = vmatpush1.bf16.msra.mxu0 0
        %1508 = vmatprep.mubr.bf16.mxu0 0
        %1509 = vmatmul.mubr.bf16.gmra.mrb[0].mxu0 %v1408
        %v1510 = vpop.f32.mrb[0].mxu0
        %v1511 = vadd.f32 0.0, %v1510
        %v1512 = vpop.f32.mrb[0].mxu0
        %v1513 = vadd.f32 0.0, %v1512
        %v1514 = vpop.f32.mrb[0].mxu0
        %v1515 = vpop.f32.mrb[0].mxu0
        %1516 = vdwg.mxu0
        %1517 = vmatprep.subr.bf16.mxu0 %v1427
        %1518 = vmatpush1.bf16.msra.mxu0 %v1424
        %1519 = vmatprep.subr.bf16.mxu0 0
        %1520 = vmatpush1.bf16.msra.mxu0 0
        %1521 = vmatprep.subr.bf16.mxu0 0
        %1522 = vmatpush1.bf16.msra.mxu0 0
        %1523 = vmatprep.subr.bf16.mxu0 0
        %1524 = vmatpush1.bf16.msra.mxu0 0
        %1525 = vmatprep.subr.bf16.mxu0 0
        %1526 = vmatpush1.bf16.msra.mxu0 0
        %1527 = vmatprep.subr.bf16.mxu0 0
        %1528 = vmatpush1.bf16.msra.mxu0 0
        %1529 = vmatprep.subr.bf16.mxu0 0
        %1530 = vmatpush1.bf16.msra.mxu0 0
        %1531 = vmatprep.subr.bf16.mxu0 0
        %1532 = vmatpush1.bf16.msra.mxu0 0
        %1533 = vmatprep.subr.bf16.mxu0 0
        %1534 = vmatpush1.bf16.msra.mxu0 0
        %1535 = vmatprep.subr.bf16.mxu0 0
        %1536 = vmatpush1.bf16.msra.mxu0 0
        %1537 = vmatprep.subr.bf16.mxu0 0
        %1538 = vmatpush1.bf16.msra.mxu0 0
        %1539 = vmatprep.subr.bf16.mxu0 0
        %1540 = vmatpush1.bf16.msra.mxu0 0
        %1541 = vmatprep.subr.bf16.mxu0 0
        %1542 = vmatpush1.bf16.msra.mxu0 0
        %1543 = vmatprep.subr.bf16.mxu0 0
        %1544 = vmatpush1.bf16.msra.mxu0 0
        %1545 = vmatprep.subr.bf16.mxu0 0
        %1546 = vmatpush1.bf16.msra.mxu0 0
        %1547 = vmatprep.subr.bf16.mxu0 0
        %1548 = vmatpush1.bf16.msra.mxu0 0
        %1549 = vmatprep.mubr.bf16.mxu0 0
        %1550 = vmatmul.mubr.bf16.gmra.mrb[0].mxu0 %v1408
        %v1551 = vpop.f32.mrb[0].mxu0
        %v1552 = vadd.f32 0.0, %v1551
        %v1553 = vpop.f32.mrb[0].mxu0
        %v1554 = vadd.f32 0.0, %v1553
        %v1555 = vpop.f32.mrb[0].mxu0
        %v1556 = vpop.f32.mrb[0].mxu0
        %1557 = vdwg.mxu0
        %1558 = vmatprep.subr.bf16.mxu0 %v1433
        %1559 = vmatpush1.bf16.msra.mxu0 %v1430
        %1560 = vmatprep.subr.bf16.mxu0 0
        %1561 = vmatpush1.bf16.msra.mxu0 0
        %1562 = vmatprep.subr.bf16.mxu0 0
        %1563 = vmatpush1.bf16.msra.mxu0 0
        %1564 = vmatprep.subr.bf16.mxu0 0
        %1565 = vmatpush1.bf16.msra.mxu0 0
        %1566 = vmatprep.subr.bf16.mxu0 0
        %1567 = vmatpush1.bf16.msra.mxu0 0
        %1568 = vmatprep.subr.bf16.mxu0 0
        %1569 = vmatpush1.bf16.msra.mxu0 0
        %1570 = vmatprep.subr.bf16.mxu0 0
        %1571 = vmatpush1.bf16.msra.mxu0 0
        %1572 = vmatprep.subr.bf16.mxu0 0
        %1573 = vmatpush1.bf16.msra.mxu0 0
        %1574 = vmatprep.subr.bf16.mxu0 0
        %1575 = vmatpush1.bf16.msra.mxu0 0
        %1576 = vmatprep.subr.bf16.mxu0 0
        %1577 = vmatpush1.bf16.msra.mxu0 0
        %1578 = vmatprep.subr.bf16.mxu0 0
        %1579 = vmatpush1.bf16.msra.mxu0 0
        %1580 = vmatprep.subr.bf16.mxu0 0
        %1581 = vmatpush1.bf16.msra.mxu0 0
        %1582 = vmatprep.subr.bf16.mxu0 0
        %1583 = vmatpush1.bf16.msra.mxu0 0
        %1584 = vmatprep.subr.bf16.mxu0 0
        %1585 = vmatpush1.bf16.msra.mxu0 0
        %1586 = vmatprep.subr.bf16.mxu0 0
        %1587 = vmatpush1.bf16.msra.mxu0 0
        %1588 = vmatprep.subr.bf16.mxu0 0
        %1589 = vmatpush1.bf16.msra.mxu0 0
        %1590 = vmatprep.mubr.bf16.mxu0 0
        %1591 = vmatmul.mubr.bf16.gmra.mrb[0].mxu0 %v1408
        %v1592 = vpop.f32.mrb[0].mxu0
        %v1593 = vadd.f32 0.0, %v1592
        %v1594 = vpop.f32.mrb[0].mxu0
        %v1595 = vadd.f32 0.0, %v1594
        %v1596 = vpop.f32.mrb[0].mxu0
        %v1597 = vpop.f32.mrb[0].mxu0
        %1598 = vdwg.mxu0
        %v1604 = vunpack.c.l.b16 %v1348
        %v1605 = vunpack.c.h.b16 %v1348
        %v1606 = vunpack.c.l.b16 %v1349
        %v1607 = vunpack.c.h.b16 %v1349
        %v1608 = vunpack.c.l.b16 %v1350
        %v1609 = vunpack.c.h.b16 %v1350
        %v1610 = vunpack.c.l.b16 %v1351
        %v1611 = vunpack.c.h.b16 %v1351
        %v1612 = vunpack.c.l.b16 %v1352
        %v1613 = vpack.c.b16 %v1604, %v1604
        %v1614 = vpack.c.b16 %v1605, %v1605
        %v1615 = vpack.c.b16 %v1606, %v1606
        %v1616 = vpack.c.b16 %v1607, %v1607
        %v1617 = vpack.c.b16 %v1608, %v1608
        %v1618 = vpack.c.b16 %v1609, %v1609
        %v1619 = vpack.c.b16 %v1610, %v1610
        %v1620 = vpack.c.b16 %v1611, %v1611
        %v1621 = vpack.c.b16 %v1612, %v1612
        %1622 = vrot.lane.b32.xlu0 %v1613, 33
        %v1623 = vpop.permute.xlu0 %1622
        %1624 = vrot.lane.b32.xlu0 %v1614, 33
        %v1625 = vpop.permute.xlu0 %1624
        %1626 = vrot.lane.b32.xlu0 %v1615, 33
        %v1627 = vpop.permute.xlu0 %1626
        %1628 = vrot.lane.b32.xlu0 %v1616, 33
        %v1629 = vpop.permute.xlu0 %1628
        %1630 = vrot.lane.b32.xlu0 %v1617, 33
        %v1631 = vpop.permute.xlu0 %1630
        %1632 = vrot.lane.b32.xlu0 %v1618, 33
        %v1633 = vpop.permute.xlu0 %1632
        %1634 = vrot.lane.b32.xlu0 %v1619, 33
        %v1635 = vpop.permute.xlu0 %1634
        %1636 = vrot.lane.b32.xlu0 %v1620, 33
        %v1637 = vpop.permute.xlu0 %1636
        %1638 = vrot.lane.b32.xlu0 %v1621, 33
        %v1639 = vpop.permute.xlu0 %1638
        %vm1640 = vcmask 269312
        %v1641 = vsel %vm1640, %v1623, %v1625
        %v1642 = vsel %vm1640, %v1625, %v1627
        %v1643 = vsel %vm1640, %v1627, %v1629
        %v1644 = vsel %vm1640, %v1629, %v1631
        %v1645 = vsel %vm1640, %v1631, %v1633
        %v1646 = vsel %vm1640, %v1633, %v1635
        %v1647 = vsel %vm1640, %v1635, %v1637
        %v1648 = vsel %vm1640, %v1637, %v1639
        %v1650 = vsel %vm1406, %v1353, 0
        %v1653 = vsel %vm1410, %v1641, 0
        %v1656 = vsel %vm1410, %v1642, 0
        %v1659 = vsel %vm1410, %v1643, 0
        %v1662 = vsel %vm1410, %v1644, 0
        %v1665 = vsel %vm1410, %v1645, 0
        %v1668 = vsel %vm1410, %v1646, 0
        %v1671 = vsel %vm1410, %v1647, 0
        %v1674 = vsel %vm1410, %v1648, 0
        %1676 = vmatprep.subr.bf16.mxu0 %v1656
        %1677 = vmatpush1.bf16.msra.mxu0 %v1653
        %1678 = vmatprep.subr.bf16.mxu0 0
        %1679 = vmatpush1.bf16.msra.mxu0 0
        %1680 = vmatprep.subr.bf16.mxu0 0
        %1681 = vmatpush1.bf16.msra.mxu0 0
        %1682 = vmatprep.subr.bf16.mxu0 0
        %1683 = vmatpush1.bf16.msra.mxu0 0
        %1684 = vmatprep.subr.bf16.mxu0 0
        %1685 = vmatpush1.bf16.msra.mxu0 0
        %1686 = vmatprep.subr.bf16.mxu0 0
        %1687 = vmatpush1.bf16.msra.mxu0 0
        %1688 = vmatprep.subr.bf16.mxu0 0
        %1689 = vmatpush1.bf16.msra.mxu0 0
        %1690 = vmatprep.subr.bf16.mxu0 0
        %1691 = vmatpush1.bf16.msra.mxu0 0
        %1692 = vmatprep.subr.bf16.mxu0 0
        %1693 = vmatpush1.bf16.msra.mxu0 0
        %1694 = vmatprep.subr.bf16.mxu0 0
        %1695 = vmatpush1.bf16.msra.mxu0 0
        %1696 = vmatprep.subr.bf16.mxu0 0
        %1697 = vmatpush1.bf16.msra.mxu0 0
        %1698 = vmatprep.subr.bf16.mxu0 0
        %1699 = vmatpush1.bf16.msra.mxu0 0
        %1700 = vmatprep.subr.bf16.mxu0 0
        %1701 = vmatpush1.bf16.msra.mxu0 0
        %1702 = vmatprep.subr.bf16.mxu0 0
        %1703 = vmatpush1.bf16.msra.mxu0 0
        %1704 = vmatprep.subr.bf16.mxu0 0
        %1705 = vmatpush1.bf16.msra.mxu0 0
        %1706 = vmatprep.subr.bf16.mxu0 0
        %1707 = vmatpush1.bf16.msra.mxu0 0
        %1708 = vmatprep.mubr.bf16.mxu0 0
        %1709 = vmatmul.mubr.bf16.gmra.mrb[0].mxu0 %v1650
        %v1710 = vpop.f32.mrb[0].mxu0
        %v1711 = vadd.f32 %v1470, %v1710
        %v1712 = vpop.f32.mrb[0].mxu0
        %v1713 = vadd.f32 %v1472, %v1712
        %v1714 = vpop.f32.mrb[0].mxu0
        %v1715 = vpop.f32.mrb[0].mxu0
        %1716 = vdwg.mxu0
        %1717 = vmatprep.subr.bf16.mxu0 %v1662
        %1718 = vmatpush1.bf16.msra.mxu0 %v1659
        %1719 = vmatprep.subr.bf16.mxu0 0
        %1720 = vmatpush1.bf16.msra.mxu0 0
        %1721 = vmatprep.subr.bf16.mxu0 0
        %1722 = vmatpush1.bf16.msra.mxu0 0
        %1723 = vmatprep.subr.bf16.mxu0 0
        %1724 = vmatpush1.bf16.msra.mxu0 0
        %1725 = vmatprep.subr.bf16.mxu0 0
        %1726 = vmatpush1.bf16.msra.mxu0 0
        %1727 = vmatprep.subr.bf16.mxu0 0
        %1728 = vmatpush1.bf16.msra.mxu0 0
        %1729 = vmatprep.subr.bf16.mxu0 0
        %1730 = vmatpush1.bf16.msra.mxu0 0
        %1731 = vmatprep.subr.bf16.mxu0 0
        %1732 = vmatpush1.bf16.msra.mxu0 0
        %1733 = vmatprep.subr.bf16.mxu0 0
        %1734 = vmatpush1.bf16.msra.mxu0 0
        %1735 = vmatprep.subr.bf16.mxu0 0
        %1736 = vmatpush1.bf16.msra.mxu0 0
        %1737 = vmatprep.subr.bf16.mxu0 0
        %1738 = vmatpush1.bf16.msra.mxu0 0
        %1739 = vmatprep.subr.bf16.mxu0 0
        %1740 = vmatpush1.bf16.msra.mxu0 0
        %1741 = vmatprep.subr.bf16.mxu0 0
        %1742 = vmatpush1.bf16.msra.mxu0 0
        %1743 = vmatprep.subr.bf16.mxu0 0
        %1744 = vmatpush1.bf16.msra.mxu0 0
        %1745 = vmatprep.subr.bf16.mxu0 0
        %1746 = vmatpush1.bf16.msra.mxu0 0
        %1747 = vmatprep.subr.bf16.mxu0 0
        %1748 = vmatpush1.bf16.msra.mxu0 0
        %1749 = vmatprep.mubr.bf16.mxu0 0
        %1750 = vmatmul.mubr.bf16.gmra.mrb[0].mxu0 %v1650
        %v1751 = vpop.f32.mrb[0].mxu0
        %v1752 = vadd.f32 %v1511, %v1751
        %v1753 = vpop.f32.mrb[0].mxu0
        %v1754 = vadd.f32 %v1513, %v1753
        %v1755 = vpop.f32.mrb[0].mxu0
        %v1756 = vpop.f32.mrb[0].mxu0
        %1757 = vdwg.mxu0
        %1758 = vmatprep.subr.bf16.mxu0 %v1668
        %1759 = vmatpush1.bf16.msra.mxu0 %v1665
        %1760 = vmatprep.subr.bf16.mxu0 0
        %1761 = vmatpush1.bf16.msra.mxu0 0
        %1762 = vmatprep.subr.bf16.mxu0 0
        %1763 = vmatpush1.bf16.msra.mxu0 0
        %1764 = vmatprep.subr.bf16.mxu0 0
        %1765 = vmatpush1.bf16.msra.mxu0 0
        %1766 = vmatprep.subr.bf16.mxu0 0
        %1767 = vmatpush1.bf16.msra.mxu0 0
        %1768 = vmatprep.subr.bf16.mxu0 0
        %1769 = vmatpush1.bf16.msra.mxu0 0
        %1770 = vmatprep.subr.bf16.mxu0 0
        %1771 = vmatpush1.bf16.msra.mxu0 0
        %1772 = vmatprep.subr.bf16.mxu0 0
        %1773 = vmatpush1.bf16.msra.mxu0 0
        %1774 = vmatprep.subr.bf16.mxu0 0
        %1775 = vmatpush1.bf16.msra.mxu0 0
        %1776 = vmatprep.subr.bf16.mxu0 0
        %1777 = vmatpush1.bf16.msra.mxu0 0
        %1778 = vmatprep.subr.bf16.mxu0 0
        %1779 = vmatpush1.bf16.msra.mxu0 0
        %1780 = vmatprep.subr.bf16.mxu0 0
        %1781 = vmatpush1.bf16.msra.mxu0 0
        %1782 = vmatprep.subr.bf16.mxu0 0
        %1783 = vmatpush1.bf16.msra.mxu0 0
        %1784 = vmatprep.subr.bf16.mxu0 0
        %1785 = vmatpush1.bf16.msra.mxu0 0
        %1786 = vmatprep.subr.bf16.mxu0 0
        %1787 = vmatpush1.bf16.msra.mxu0 0
        %1788 = vmatprep.subr.bf16.mxu0 0
        %1789 = vmatpush1.bf16.msra.mxu0 0
        %1790 = vmatprep.mubr.bf16.mxu0 0
        %1791 = vmatmul.mubr.bf16.gmra.mrb[0].mxu0 %v1650
        %v1792 = vpop.f32.mrb[0].mxu0
        %v1793 = vadd.f32 %v1552, %v1792
        %v1794 = vpop.f32.mrb[0].mxu0
        %v1795 = vadd.f32 %v1554, %v1794
        %v1796 = vpop.f32.mrb[0].mxu0
        %v1797 = vpop.f32.mrb[0].mxu0
        %1798 = vdwg.mxu0
        %1799 = vmatprep.subr.bf16.mxu0 %v1674
        %1800 = vmatpush1.bf16.msra.mxu0 %v1671
        %1801 = vmatprep.subr.bf16.mxu0 0
        %1802 = vmatpush1.bf16.msra.mxu0 0
        %1803 = vmatprep.subr.bf16.mxu0 0
        %1804 = vmatpush1.bf16.msra.mxu0 0
        %1805 = vmatprep.subr.bf16.mxu0 0
        %1806 = vmatpush1.bf16.msra.mxu0 0
        %1807 = vmatprep.subr.bf16.mxu0 0
        %1808 = vmatpush1.bf16.msra.mxu0 0
        %1809 = vmatprep.subr.bf16.mxu0 0
        %1810 = vmatpush1.bf16.msra.mxu0 0
        %1811 = vmatprep.subr.bf16.mxu0 0
        %1812 = vmatpush1.bf16.msra.mxu0 0
        %1813 = vmatprep.subr.bf16.mxu0 0
        %1814 = vmatpush1.bf16.msra.mxu0 0
        %1815 = vmatprep.subr.bf16.mxu0 0
        %1816 = vmatpush1.bf16.msra.mxu0 0
        %1817 = vmatprep.subr.bf16.mxu0 0
        %1818 = vmatpush1.bf16.msra.mxu0 0
        %1819 = vmatprep.subr.bf16.mxu0 0
        %1820 = vmatpush1.bf16.msra.mxu0 0
        %1821 = vmatprep.subr.bf16.mxu0 0
        %1822 = vmatpush1.bf16.msra.mxu0 0
        %1823 = vmatprep.subr.bf16.mxu0 0
        %1824 = vmatpush1.bf16.msra.mxu0 0
        %1825 = vmatprep.subr.bf16.mxu0 0
        %1826 = vmatpush1.bf16.msra.mxu0 0
        %1827 = vmatprep.subr.bf16.mxu0 0
        %1828 = vmatpush1.bf16.msra.mxu0 0
        %1829 = vmatprep.subr.bf16.mxu0 0
        %1830 = vmatpush1.bf16.msra.mxu0 0
        %1831 = vmatprep.mubr.bf16.mxu0 0
        %1832 = vmatmul.mubr.bf16.gmra.mrb[0].mxu0 %v1650
        %v1833 = vpop.f32.mrb[0].mxu0
        %v1834 = vadd.f32 %v1593, %v1833
        %v1835 = vpop.f32.mrb[0].mxu0
        %v1836 = vadd.f32 %v1595, %v1835
        %v1837 = vpop.f32.mrb[0].mxu0
        %v1838 = vpop.f32.mrb[0].mxu0
        %1839 = vdwg.mxu0
        %v1840 = vsel %vm1247, 1, 0
        %v1841 = vsel %vm1248, 1, 0
        %v1842 = vsel %vm1249, 1, 0
        %v1843 = vsel %vm1250, 1, 0
        %v1844 = vsel %vm1251, 1, 0
        %v1845 = vsel %vm1252, 1, 0
        %v1846 = vsel %vm1253, 1, 0
        %v1847 = vsel %vm1254, 1, 0
        %vm1848 = vcmp.eq.s32.totalorder %v1840, 1
        %vm1849 = vcmp.eq.s32.totalorder %v1841, 1
        %vm1850 = vcmp.eq.s32.totalorder %v1842, 1
        %vm1851 = vcmp.eq.s32.totalorder %v1843, 1
        %vm1852 = vcmp.eq.s32.totalorder %v1844, 1
        %vm1853 = vcmp.eq.s32.totalorder %v1845, 1
        %vm1854 = vcmp.eq.s32.totalorder %v1846, 1
        %vm1855 = vcmp.eq.s32.totalorder %v1847, 1
        %vm1856 = vmpackc.low %vm1849, %vm1848
        %vm1857 = vmpackc.low %vm1851, %vm1850
        %vm1858 = vmpackc.low %vm1853, %vm1852
        %vm1859 = vmpackc.low %vm1855, %vm1854
        %v1860 = vsel %vm1856, 65537, 0
        %v1861 = vsel %vm1857, 65537, 0
        %v1862 = vsel %vm1858, 65537, 0
        %v1863 = vsel %vm1859, 65537, 0
        %1864 = vrot.lane.b32.xlu0 %v1860, 97
        %v1865 = vpop.permute.xlu0 %1864
        %1866 = vrot.lane.b32.xlu0 %v1861, 97
        %v1867 = vpop.permute.xlu0 %1866
        %1868 = vrot.lane.b32.xlu0 %v1862, 97
        %v1869 = vpop.permute.xlu0 %1868
        %1870 = vrot.lane.b32.xlu0 %v1863, 97
        %v1871 = vpop.permute.xlu0 %1870
        %v1872 = vrot.slane %v1865, 4
        %v1873 = vrot.slane %v1867, 4
        %v1874 = vrot.slane %v1869, 4
        %v1875 = vrot.slane %v1871, 4
        %vm1876 = vcmask 793600
        %v1877 = vsel %vm1876, %v1872, %v1865
        %v1878 = vsel %vm1336, %v1872, %v1873
        %v1879 = vsel %vm1876, %v1878, %v1867
        %v1880 = vsel %vm1336, %v1873, %v1874
        %v1881 = vsel %vm1876, %v1880, %v1869
        %v1882 = vsel %vm1336, %v1874, %v1875
        %v1883 = vsel %vm1876, %v1882, %v1871
        %vm1884 = vcmp.ne.s16.totalorder %v1877, 0
        %vm1885 = vcmp.ne.s16.totalorder %v1879, 0
        %vm1886 = vcmp.ne.s16.totalorder %v1881, 0
        %vm1887 = vcmp.ne.s16.totalorder %v1883, 0
        %vm1888 = vcmp.ne.s16.totalorder %v1875, 0
        %v1889 = vsel %vm1884, %v1293, 0
        %v1890 = vsel %vm1885, %v1294, 0
        %v1891 = vsel %vm1886, %v1295, 0
        %v1892 = vsel %vm1887, %v1296, 0
        %v1893 = vsel %vm1888, %v1297, 0
        %s1894 = scalar_lea.vmem %s3, 8
        %v1895 = vld [vmem:[%s1894] sm:$0xf]
        %v1901 = vunpack.c.l.b16 %v1889
        %v1902 = vunpack.c.h.b16 %v1889
        %v1903 = vunpack.c.l.b16 %v1890
        %v1904 = vunpack.c.h.b16 %v1890
        %v1905 = vunpack.c.l.b16 %v1891
        %v1906 = vunpack.c.h.b16 %v1891
        %v1907 = vunpack.c.l.b16 %v1892
        %v1908 = vunpack.c.h.b16 %v1892
        %v1909 = vunpack.c.l.b16 %v1893
        %v1910 = vpack.c.b16 %v1901, %v1901
        %v1911 = vpack.c.b16 %v1902, %v1902
        %v1912 = vpack.c.b16 %v1903, %v1903
        %v1913 = vpack.c.b16 %v1904, %v1904
        %v1914 = vpack.c.b16 %v1905, %v1905
        %v1915 = vpack.c.b16 %v1906, %v1906
        %v1916 = vpack.c.b16 %v1907, %v1907
        %v1917 = vpack.c.b16 %v1908, %v1908
        %v1918 = vpack.c.b16 %v1909, %v1909
        %1919 = vrot.lane.b32.xlu0 %v1910, 31
        %v1920 = vpop.permute.xlu0 %1919
        %1921 = vrot.lane.b32.xlu0 %v1911, 31
        %v1922 = vpop.permute.xlu0 %1921
        %1923 = vrot.lane.b32.xlu0 %v1912, 31
        %v1924 = vpop.permute.xlu0 %1923
        %1925 = vrot.lane.b32.xlu0 %v1913, 31
        %v1926 = vpop.permute.xlu0 %1925
        %1927 = vrot.lane.b32.xlu0 %v1914, 31
        %v1928 = vpop.permute.xlu0 %1927
        %1929 = vrot.lane.b32.xlu0 %v1915, 31
        %v1930 = vpop.permute.xlu0 %1929
        %1931 = vrot.lane.b32.xlu0 %v1916, 31
        %v1932 = vpop.permute.xlu0 %1931
        %1933 = vrot.lane.b32.xlu0 %v1917, 31
        %v1934 = vpop.permute.xlu0 %1933
        %1935 = vrot.lane.b32.xlu0 %v1918, 31
        %v1936 = vpop.permute.xlu0 %1935
        %vm1937 = vcmask 252928
        %v1938 = vsel %vm1937, %v1920, %v1922
        %v1939 = vsel %vm1937, %v1922, %v1924
        %v1940 = vsel %vm1937, %v1924, %v1926
        %v1941 = vsel %vm1937, %v1926, %v1928
        %v1942 = vsel %vm1937, %v1928, %v1930
        %v1943 = vsel %vm1937, %v1930, %v1932
        %v1944 = vsel %vm1937, %v1932, %v1934
        %v1945 = vsel %vm1937, %v1934, %v1936
        %v1947 = vsel %vm1406, %v1895, 0
        %v1950 = vsel %vm1410, %v1938, 0
        %v1953 = vsel %vm1410, %v1939, 0
        %v1956 = vsel %vm1410, %v1940, 0
        %v1959 = vsel %vm1410, %v1941, 0
        %v1962 = vsel %vm1410, %v1942, 0
        %v1965 = vsel %vm1410, %v1943, 0
        %v1968 = vsel %vm1410, %v1944, 0
        %v1971 = vsel %vm1410, %v1945, 0
        %1973 = vmatprep.subr.bf16.mxu0 %v1953
        %1974 = vmatpush1.bf16.msra.mxu0 %v1950
        %1975 = vmatprep.subr.bf16.mxu0 0
        %1976 = vmatpush1.bf16.msra.mxu0 0
        %1977 = vmatprep.subr.bf16.mxu0 0
        %1978 = vmatpush1.bf16.msra.mxu0 0
        %1979 = vmatprep.subr.bf16.mxu0 0
        %1980 = vmatpush1.bf16.msra.mxu0 0
        %1981 = vmatprep.subr.bf16.mxu0 0
        %1982 = vmatpush1.bf16.msra.mxu0 0
        %1983 = vmatprep.subr.bf16.mxu0 0
        %1984 = vmatpush1.bf16.msra.mxu0 0
        %1985 = vmatprep.subr.bf16.mxu0 0
        %1986 = vmatpush1.bf16.msra.mxu0 0
        %1987 = vmatprep.subr.bf16.mxu0 0
        %1988 = vmatpush1.bf16.msra.mxu0 0
        %1989 = vmatprep.subr.bf16.mxu0 0
        %1990 = vmatpush1.bf16.msra.mxu0 0
        %1991 = vmatprep.subr.bf16.mxu0 0
        %1992 = vmatpush1.bf16.msra.mxu0 0
        %1993 = vmatprep.subr.bf16.mxu0 0
        %1994 = vmatpush1.bf16.msra.mxu0 0
        %1995 = vmatprep.subr.bf16.mxu0 0
        %1996 = vmatpush1.bf16.msra.mxu0 0
        %1997 = vmatprep.subr.bf16.mxu0 0
        %1998 = vmatpush1.bf16.msra.mxu0 0
        %1999 = vmatprep.subr.bf16.mxu0 0
        %2000 = vmatpush1.bf16.msra.mxu0 0
        %2001 = vmatprep.subr.bf16.mxu0 0
        %2002 = vmatpush1.bf16.msra.mxu0 0
        %2003 = vmatprep.subr.bf16.mxu0 0
        %2004 = vmatpush1.bf16.msra.mxu0 0
        %2005 = vmatprep.mubr.bf16.mxu0 0
        %2006 = vmatmul.mubr.bf16.gmra.mrb[0].mxu0 %v1947
        %v2007 = vpop.f32.mrb[0].mxu0
        %v2008 = vadd.f32 0.0, %v2007
        %v2009 = vpop.f32.mrb[0].mxu0
        %v2010 = vadd.f32 0.0, %v2009
        %v2011 = vpop.f32.mrb[0].mxu0
        %v2012 = vpop.f32.mrb[0].mxu0
        %2013 = vdwg.mxu0
        %2014 = vmatprep.subr.bf16.mxu0 %v1959
        %2015 = vmatpush1.bf16.msra.mxu0 %v1956
        %2016 = vmatprep.subr.bf16.mxu0 0
        %2017 = vmatpush1.bf16.msra.mxu0 0
        %2018 = vmatprep.subr.bf16.mxu0 0
        %2019 = vmatpush1.bf16.msra.mxu0 0
        %2020 = vmatprep.subr.bf16.mxu0 0
        %2021 = vmatpush1.bf16.msra.mxu0 0
        %2022 = vmatprep.subr.bf16.mxu0 0
        %2023 = vmatpush1.bf16.msra.mxu0 0
        %2024 = vmatprep.subr.bf16.mxu0 0
        %2025 = vmatpush1.bf16.msra.mxu0 0
        %2026 = vmatprep.subr.bf16.mxu0 0
        %2027 = vmatpush1.bf16.msra.mxu0 0
        %2028 = vmatprep.subr.bf16.mxu0 0
        %2029 = vmatpush1.bf16.msra.mxu0 0
        %2030 = vmatprep.subr.bf16.mxu0 0
        %2031 = vmatpush1.bf16.msra.mxu0 0
        %2032 = vmatprep.subr.bf16.mxu0 0
        %2033 = vmatpush1.bf16.msra.mxu0 0
        %2034 = vmatprep.subr.bf16.mxu0 0
        %2035 = vmatpush1.bf16.msra.mxu0 0
        %2036 = vmatprep.subr.bf16.mxu0 0
        %2037 = vmatpush1.bf16.msra.mxu0 0
        %2038 = vmatprep.subr.bf16.mxu0 0
        %2039 = vmatpush1.bf16.msra.mxu0 0
        %2040 = vmatprep.subr.bf16.mxu0 0
        %2041 = vmatpush1.bf16.msra.mxu0 0
        %2042 = vmatprep.subr.bf16.mxu0 0
        %2043 = vmatpush1.bf16.msra.mxu0 0
        %2044 = vmatprep.subr.bf16.mxu0 0
        %2045 = vmatpush1.bf16.msra.mxu0 0
        %2046 = vmatprep.mubr.bf16.mxu0 0
        %2047 = vmatmul.mubr.bf16.gmra.mrb[0].mxu0 %v1947
        %v2048 = vpop.f32.mrb[0].mxu0
        %v2049 = vadd.f32 0.0, %v2048
        %v2050 = vpop.f32.mrb[0].mxu0
        %v2051 = vadd.f32 0.0, %v2050
        %v2052 = vpop.f32.mrb[0].mxu0
        %v2053 = vpop.f32.mrb[0].mxu0
        %2054 = vdwg.mxu0
        %2055 = vmatprep.subr.bf16.mxu0 %v1965
        %2056 = vmatpush1.bf16.msra.mxu0 %v1962
        %2057 = vmatprep.subr.bf16.mxu0 0
        %2058 = vmatpush1.bf16.msra.mxu0 0
        %2059 = vmatprep.subr.bf16.mxu0 0
        %2060 = vmatpush1.bf16.msra.mxu0 0
        %2061 = vmatprep.subr.bf16.mxu0 0
        %2062 = vmatpush1.bf16.msra.mxu0 0
        %2063 = vmatprep.subr.bf16.mxu0 0
        %2064 = vmatpush1.bf16.msra.mxu0 0
        %2065 = vmatprep.subr.bf16.mxu0 0
        %2066 = vmatpush1.bf16.msra.mxu0 0
        %2067 = vmatprep.subr.bf16.mxu0 0
        %2068 = vmatpush1.bf16.msra.mxu0 0
        %2069 = vmatprep.subr.bf16.mxu0 0
        %2070 = vmatpush1.bf16.msra.mxu0 0
        %2071 = vmatprep.subr.bf16.mxu0 0
        %2072 = vmatpush1.bf16.msra.mxu0 0
        %2073 = vmatprep.subr.bf16.mxu0 0
        %2074 = vmatpush1.bf16.msra.mxu0 0
        %2075 = vmatprep.subr.bf16.mxu0 0
        %2076 = vmatpush1.bf16.msra.mxu0 0
        %2077 = vmatprep.subr.bf16.mxu0 0
        %2078 = vmatpush1.bf16.msra.mxu0 0
        %2079 = vmatprep.subr.bf16.mxu0 0
        %2080 = vmatpush1.bf16.msra.mxu0 0
        %2081 = vmatprep.subr.bf16.mxu0 0
        %2082 = vmatpush1.bf16.msra.mxu0 0
        %2083 = vmatprep.subr.bf16.mxu0 0
        %2084 = vmatpush1.bf16.msra.mxu0 0
        %2085 = vmatprep.subr.bf16.mxu0 0
        %2086 = vmatpush1.bf16.msra.mxu0 0
        %2087 = vmatprep.mubr.bf16.mxu0 0
        %2088 = vmatmul.mubr.bf16.gmra.mrb[0].mxu0 %v1947
        %v2089 = vpop.f32.mrb[0].mxu0
        %v2090 = vadd.f32 0.0, %v2089
        %v2091 = vpop.f32.mrb[0].mxu0
        %v2092 = vadd.f32 0.0, %v2091
        %v2093 = vpop.f32.mrb[0].mxu0
        %v2094 = vpop.f32.mrb[0].mxu0
        %2095 = vdwg.mxu0
        %2096 = vmatprep.subr.bf16.mxu0 %v1971
        %2097 = vmatpush1.bf16.msra.mxu0 %v1968
        %2098 = vmatprep.subr.bf16.mxu0 0
        %2099 = vmatpush1.bf16.msra.mxu0 0
        %2100 = vmatprep.subr.bf16.mxu0 0
        %2101 = vmatpush1.bf16.msra.mxu0 0
        %2102 = vmatprep.subr.bf16.mxu0 0
        %2103 = vmatpush1.bf16.msra.mxu0 0
        %2104 = vmatprep.subr.bf16.mxu0 0
        %2105 = vmatpush1.bf16.msra.mxu0 0
        %2106 = vmatprep.subr.bf16.mxu0 0
        %2107 = vmatpush1.bf16.msra.mxu0 0
        %2108 = vmatprep.subr.bf16.mxu0 0
        %2109 = vmatpush1.bf16.msra.mxu0 0
        %2110 = vmatprep.subr.bf16.mxu0 0
        %2111 = vmatpush1.bf16.msra.mxu0 0
        %2112 = vmatprep.subr.bf16.mxu0 0
        %2113 = vmatpush1.bf16.msra.mxu0 0
        %2114 = vmatprep.subr.bf16.mxu0 0
        %2115 = vmatpush1.bf16.msra.mxu0 0
        %2116 = vmatprep.subr.bf16.mxu0 0
        %2117 = vmatpush1.bf16.msra.mxu0 0
        %2118 = vmatprep.subr.bf16.mxu0 0
        %2119 = vmatpush1.bf16.msra.mxu0 0
        %2120 = vmatprep.subr.bf16.mxu0 0
        %2121 = vmatpush1.bf16.msra.mxu0 0
        %2122 = vmatprep.subr.bf16.mxu0 0
        %2123 = vmatpush1.bf16.msra.mxu0 0
        %2124 = vmatprep.subr.bf16.mxu0 0
        %2125 = vmatpush1.bf16.msra.mxu0 0
        %2126 = vmatprep.subr.bf16.mxu0 0
        %2127 = vmatpush1.bf16.msra.mxu0 0
        %2128 = vmatprep.mubr.bf16.mxu0 0
        %2129 = vmatmul.mubr.bf16.gmra.mrb[0].mxu0 %v1947
        %v2130 = vpop.f32.mrb[0].mxu0
        %v2131 = vadd.f32 0.0, %v2130
        %v2132 = vpop.f32.mrb[0].mxu0
        %v2133 = vadd.f32 0.0, %v2132
        %v2134 = vpop.f32.mrb[0].mxu0
        %v2135 = vpop.f32.mrb[0].mxu0
        %2136 = vdwg.mxu0
        %v2137 = vadd.f32 %v1711, %v2008
        %v2138 = vadd.f32 %v1713, %v2010
        %v2139 = vadd.f32 %v1752, %v2049
        %v2140 = vadd.f32 %v1754, %v2051
        %v2141 = vadd.f32 %v1793, %v2090
        %v2142 = vadd.f32 %v1795, %v2092
        %v2143 = vadd.f32 %v1834, %v2131
        %v2144 = vadd.f32 %v1836, %v2133
        %2145 = vrot.lane.b32.xlu0 %v1318, 127
        %v2146 = vpop.permute.xlu0 %2145
        %2147 = vrot.lane.b32.xlu0 %v1319, 127
        %v2148 = vpop.permute.xlu0 %2147
        %2149 = vrot.lane.b32.xlu0 %v1320, 127
        %v2150 = vpop.permute.xlu0 %2149
        %2151 = vrot.lane.b32.xlu0 %v1321, 127
        %v2152 = vpop.permute.xlu0 %2151
        %v2153 = vrot.slane %v2146, 4
        %v2154 = vrot.slane %v2148, 4
        %v2155 = vrot.slane %v2150, 4
        %v2156 = vrot.slane %v2152, 4
        %vm2157 = vcmask 1039360
        %v2158 = vsel %vm2157, %v2153, %v2146
        %v2159 = vsel %vm1336, %v2153, %v2154
        %v2160 = vsel %vm2157, %v2159, %v2148
        %v2161 = vsel %vm1336, %v2154, %v2155
        %v2162 = vsel %vm2157, %v2161, %v2150
        %v2163 = vsel %vm1336, %v2155, %v2156
        %v2164 = vsel %vm2157, %v2163, %v2152
        %vm2165 = vcmp.ne.s16.totalorder %v2158, 0
        %vm2166 = vcmp.ne.s16.totalorder %v2160, 0
        %vm2167 = vcmp.ne.s16.totalorder %v2162, 0
        %vm2168 = vcmp.ne.s16.totalorder %v2164, 0
        %vm2169 = vcmp.ne.s16.totalorder %v2156, 0
        %v2170 = vsel %vm2165, %v1293, 0
        %v2171 = vsel %vm2166, %v1294, 0
        %v2172 = vsel %vm2167, %v1295, 0
        %v2173 = vsel %vm2168, %v1296, 0
        %v2174 = vsel %vm2169, %v1297, 0
        %s2175 = scalar_lea.vmem %s3, 12
        %v2176 = vld [vmem:[%s2175] sm:$0xf]
        %v2182 = vunpack.c.l.b16 %v2170
        %v2183 = vunpack.c.h.b16 %v2170
        %v2184 = vunpack.c.l.b16 %v2171
        %v2185 = vunpack.c.h.b16 %v2171
        %v2186 = vunpack.c.l.b16 %v2172
        %v2187 = vunpack.c.h.b16 %v2172
        %v2188 = vunpack.c.l.b16 %v2173
        %v2189 = vunpack.c.h.b16 %v2173
        %v2190 = vunpack.c.l.b16 %v2174
        %v2191 = vpack.c.b16 %v2182, %v2182
        %v2192 = vpack.c.b16 %v2183, %v2183
        %v2193 = vpack.c.b16 %v2184, %v2184
        %v2194 = vpack.c.b16 %v2185, %v2185
        %v2195 = vpack.c.b16 %v2186, %v2186
        %v2196 = vpack.c.b16 %v2187, %v2187
        %v2197 = vpack.c.b16 %v2188, %v2188
        %v2198 = vpack.c.b16 %v2189, %v2189
        %v2199 = vpack.c.b16 %v2190, %v2190
        %2200 = vrot.lane.b32.xlu0 %v2191, 1
        %v2201 = vpop.permute.xlu0 %2200
        %2202 = vrot.lane.b32.xlu0 %v2192, 1
        %v2203 = vpop.permute.xlu0 %2202
        %2204 = vrot.lane.b32.xlu0 %v2193, 1
        %v2205 = vpop.permute.xlu0 %2204
        %2206 = vrot.lane.b32.xlu0 %v2194, 1
        %v2207 = vpop.permute.xlu0 %2206
        %2208 = vrot.lane.b32.xlu0 %v2195, 1
        %v2209 = vpop.permute.xlu0 %2208
        %2210 = vrot.lane.b32.xlu0 %v2196, 1
        %v2211 = vpop.permute.xlu0 %2210
        %2212 = vrot.lane.b32.xlu0 %v2197, 1
        %v2213 = vpop.permute.xlu0 %2212
        %2214 = vrot.lane.b32.xlu0 %v2198, 1
        %v2215 = vpop.permute.xlu0 %2214
        %2216 = vrot.lane.b32.xlu0 %v2199, 1
        %v2217 = vpop.permute.xlu0 %2216
        %vm2218 = vcmask 7168
        %v2219 = vsel %vm2218, %v2201, %v2203
        %v2220 = vsel %vm2218, %v2203, %v2205
        %v2221 = vsel %vm2218, %v2205, %v2207
        %v2222 = vsel %vm2218, %v2207, %v2209
        %v2223 = vsel %vm2218, %v2209, %v2211
        %v2224 = vsel %vm2218, %v2211, %v2213
        %v2225 = vsel %vm2218, %v2213, %v2215
        %v2226 = vsel %vm2218, %v2215, %v2217
        %v2228 = vsel %vm1406, %v2176, 0
        %v2231 = vsel %vm1410, %v2219, 0
        %v2234 = vsel %vm1410, %v2220, 0
        %v2237 = vsel %vm1410, %v2221, 0
        %v2240 = vsel %vm1410, %v2222, 0
        %v2243 = vsel %vm1410, %v2223, 0
        %v2246 = vsel %vm1410, %v2224, 0
        %v2249 = vsel %vm1410, %v2225, 0
        %v2252 = vsel %vm1410, %v2226, 0
        %2254 = vmatprep.subr.bf16.mxu0 %v2234
        %2255 = vmatpush1.bf16.msra.mxu0 %v2231
        %2256 = vmatprep.subr.bf16.mxu0 0
        %2257 = vmatpush1.bf16.msra.mxu0 0
        %2258 = vmatprep.subr.bf16.mxu0 0
        %2259 = vmatpush1.bf16.msra.mxu0 0
        %2260 = vmatprep.subr.bf16.mxu0 0
        %2261 = vmatpush1.bf16.msra.mxu0 0
        %2262 = vmatprep.subr.bf16.mxu0 0
        %2263 = vmatpush1.bf16.msra.mxu0 0
        %2264 = vmatprep.subr.bf16.mxu0 0
        %2265 = vmatpush1.bf16.msra.mxu0 0
        %2266 = vmatprep.subr.bf16.mxu0 0
        %2267 = vmatpush1.bf16.msra.mxu0 0
        %2268 = vmatprep.subr.bf16.mxu0 0
        %2269 = vmatpush1.bf16.msra.mxu0 0
        %2270 = vmatprep.subr.bf16.mxu0 0
        %2271 = vmatpush1.bf16.msra.mxu0 0
        %2272 = vmatprep.subr.bf16.mxu0 0
        %2273 = vmatpush1.bf16.msra.mxu0 0
        %2274 = vmatprep.subr.bf16.mxu0 0
        %2275 = vmatpush1.bf16.msra.mxu0 0
        %2276 = vmatprep.subr.bf16.mxu0 0
        %2277 = vmatpush1.bf16.msra.mxu0 0
        %2278 = vmatprep.subr.bf16.mxu0 0
        %2279 = vmatpush1.bf16.msra.mxu0 0
        %2280 = vmatprep.subr.bf16.mxu0 0
        %2281 = vmatpush1.bf16.msra.mxu0 0
        %2282 = vmatprep.subr.bf16.mxu0 0
        %2283 = vmatpush1.bf16.msra.mxu0 0
        %2284 = vmatprep.subr.bf16.mxu0 0
        %2285 = vmatpush1.bf16.msra.mxu0 0
        %2286 = vmatprep.mubr.bf16.mxu0 0
        %2287 = vmatmul.mubr.bf16.gmra.mrb[0].mxu0 %v2228
        %v2288 = vpop.f32.mrb[0].mxu0
        %v2289 = vadd.f32 0.0, %v2288
        %v2290 = vpop.f32.mrb[0].mxu0
        %v2291 = vadd.f32 0.0, %v2290
        %v2292 = vpop.f32.mrb[0].mxu0
        %v2293 = vpop.f32.mrb[0].mxu0
        %2294 = vdwg.mxu0
        %2295 = vmatprep.subr.bf16.mxu0 %v2240
        %2296 = vmatpush1.bf16.msra.mxu0 %v2237
        %2297 = vmatprep.subr.bf16.mxu0 0
        %2298 = vmatpush1.bf16.msra.mxu0 0
        %2299 = vmatprep.subr.bf16.mxu0 0
        %2300 = vmatpush1.bf16.msra.mxu0 0
        %2301 = vmatprep.subr.bf16.mxu0 0
        %2302 = vmatpush1.bf16.msra.mxu0 0
        %2303 = vmatprep.subr.bf16.mxu0 0
        %2304 = vmatpush1.bf16.msra.mxu0 0
        %2305 = vmatprep.subr.bf16.mxu0 0
        %2306 = vmatpush1.bf16.msra.mxu0 0
        %2307 = vmatprep.subr.bf16.mxu0 0
        %2308 = vmatpush1.bf16.msra.mxu0 0
        %2309 = vmatprep.subr.bf16.mxu0 0
        %2310 = vmatpush1.bf16.msra.mxu0 0
        %2311 = vmatprep.subr.bf16.mxu0 0
        %2312 = vmatpush1.bf16.msra.mxu0 0
        %2313 = vmatprep.subr.bf16.mxu0 0
        %2314 = vmatpush1.bf16.msra.mxu0 0
        %2315 = vmatprep.subr.bf16.mxu0 0
        %2316 = vmatpush1.bf16.msra.mxu0 0
        %2317 = vmatprep.subr.bf16.mxu0 0
        %2318 = vmatpush1.bf16.msra.mxu0 0
        %2319 = vmatprep.subr.bf16.mxu0 0
        %2320 = vmatpush1.bf16.msra.mxu0 0
        %2321 = vmatprep.subr.bf16.mxu0 0
        %2322 = vmatpush1.bf16.msra.mxu0 0
        %2323 = vmatprep.subr.bf16.mxu0 0
        %2324 = vmatpush1.bf16.msra.mxu0 0
        %2325 = vmatprep.subr.bf16.mxu0 0
        %2326 = vmatpush1.bf16.msra.mxu0 0
        %2327 = vmatprep.mubr.bf16.mxu0 0
        %2328 = vmatmul.mubr.bf16.gmra.mrb[0].mxu0 %v2228
        %v2329 = vpop.f32.mrb[0].mxu0
        %v2330 = vadd.f32 0.0, %v2329
        %v2331 = vpop.f32.mrb[0].mxu0
        %v2332 = vadd.f32 0.0, %v2331
        %v2333 = vpop.f32.mrb[0].mxu0
        %v2334 = vpop.f32.mrb[0].mxu0
        %2335 = vdwg.mxu0
        %2336 = vmatprep.subr.bf16.mxu0 %v2246
        %2337 = vmatpush1.bf16.msra.mxu0 %v2243
        %2338 = vmatprep.subr.bf16.mxu0 0
        %2339 = vmatpush1.bf16.msra.mxu0 0
        %2340 = vmatprep.subr.bf16.mxu0 0
        %2341 = vmatpush1.bf16.msra.mxu0 0
        %2342 = vmatprep.subr.bf16.mxu0 0
        %2343 = vmatpush1.bf16.msra.mxu0 0
        %2344 = vmatprep.subr.bf16.mxu0 0
        %2345 = vmatpush1.bf16.msra.mxu0 0
        %2346 = vmatprep.subr.bf16.mxu0 0
        %2347 = vmatpush1.bf16.msra.mxu0 0
        %2348 = vmatprep.subr.bf16.mxu0 0
        %2349 = vmatpush1.bf16.msra.mxu0 0
        %2350 = vmatprep.subr.bf16.mxu0 0
        %2351 = vmatpush1.bf16.msra.mxu0 0
        %2352 = vmatprep.subr.bf16.mxu0 0
        %2353 = vmatpush1.bf16.msra.mxu0 0
        %2354 = vmatprep.subr.bf16.mxu0 0
        %2355 = vmatpush1.bf16.msra.mxu0 0
        %2356 = vmatprep.subr.bf16.mxu0 0
        %2357 = vmatpush1.bf16.msra.mxu0 0
        %2358 = vmatprep.subr.bf16.mxu0 0
        %2359 = vmatpush1.bf16.msra.mxu0 0
        %2360 = vmatprep.subr.bf16.mxu0 0
        %2361 = vmatpush1.bf16.msra.mxu0 0
        %2362 = vmatprep.subr.bf16.mxu0 0
        %2363 = vmatpush1.bf16.msra.mxu0 0
        %2364 = vmatprep.subr.bf16.mxu0 0
        %2365 = vmatpush1.bf16.msra.mxu0 0
        %2366 = vmatprep.subr.bf16.mxu0 0
        %2367 = vmatpush1.bf16.msra.mxu0 0
        %2368 = vmatprep.mubr.bf16.mxu0 0
        %2369 = vmatmul.mubr.bf16.gmra.mrb[0].mxu0 %v2228
        %v2370 = vpop.f32.mrb[0].mxu0
        %v2371 = vadd.f32 0.0, %v2370
        %v2372 = vpop.f32.mrb[0].mxu0
        %v2373 = vadd.f32 0.0, %v2372
        %v2374 = vpop.f32.mrb[0].mxu0
        %v2375 = vpop.f32.mrb[0].mxu0
        %2376 = vdwg.mxu0
        %2377 = vmatprep.subr.bf16.mxu0 %v2252
        %2378 = vmatpush1.bf16.msra.mxu0 %v2249
        %2379 = vmatprep.subr.bf16.mxu0 0
        %2380 = vmatpush1.bf16.msra.mxu0 0
        %2381 = vmatprep.subr.bf16.mxu0 0
        %2382 = vmatpush1.bf16.msra.mxu0 0
        %2383 = vmatprep.subr.bf16.mxu0 0
        %2384 = vmatpush1.bf16.msra.mxu0 0
        %2385 = vmatprep.subr.bf16.mxu0 0
        %2386 = vmatpush1.bf16.msra.mxu0 0
        %2387 = vmatprep.subr.bf16.mxu0 0
        %2388 = vmatpush1.bf16.msra.mxu0 0
        %2389 = vmatprep.subr.bf16.mxu0 0
        %2390 = vmatpush1.bf16.msra.mxu0 0
        %2391 = vmatprep.subr.bf16.mxu0 0
        %2392 = vmatpush1.bf16.msra.mxu0 0
        %2393 = vmatprep.subr.bf16.mxu0 0
        %2394 = vmatpush1.bf16.msra.mxu0 0
        %2395 = vmatprep.subr.bf16.mxu0 0
        %2396 = vmatpush1.bf16.msra.mxu0 0
        %2397 = vmatprep.subr.bf16.mxu0 0
        %2398 = vmatpush1.bf16.msra.mxu0 0
        %2399 = vmatprep.subr.bf16.mxu0 0
        %2400 = vmatpush1.bf16.msra.mxu0 0
        %2401 = vmatprep.subr.bf16.mxu0 0
        %2402 = vmatpush1.bf16.msra.mxu0 0
        %2403 = vmatprep.subr.bf16.mxu0 0
        %2404 = vmatpush1.bf16.msra.mxu0 0
        %2405 = vmatprep.subr.bf16.mxu0 0
        %2406 = vmatpush1.bf16.msra.mxu0 0
        %2407 = vmatprep.subr.bf16.mxu0 0
        %2408 = vmatpush1.bf16.msra.mxu0 0
        %2409 = vmatprep.mubr.bf16.mxu0 0
        %2410 = vmatmul.mubr.bf16.gmra.mrb[0].mxu0 %v2228
        %v2411 = vpop.f32.mrb[0].mxu0
        %v2412 = vadd.f32 0.0, %v2411
        %v2413 = vpop.f32.mrb[0].mxu0
        %v2414 = vadd.f32 0.0, %v2413
        %v2415 = vpop.f32.mrb[0].mxu0
        %v2416 = vpop.f32.mrb[0].mxu0
        %2417 = vdwg.mxu0
        %v2418 = vadd.f32 %v2137, %v2289
        %v2419 = vadd.f32 %v2138, %v2291
        %v2420 = vadd.f32 %v2139, %v2330
        %v2421 = vadd.f32 %v2140, %v2332
        %v2422 = vadd.f32 %v2141, %v2371
        %v2423 = vadd.f32 %v2142, %v2373
        %v2424 = vadd.f32 %v2143, %v2412
        %v2425 = vadd.f32 %v2144, %v2414
        %v2426 = vld [vmem:[#allocation2 + $0x4] sm:$0x33]
        %v2427 = vld [vmem:[#allocation2 + $0xc] sm:$0x33]
        %v2428 = vld [vmem:[#allocation2 + $0x14] sm:$0x33]
        %v2429 = vld [vmem:[#allocation2 + $0x1c] sm:$0x33]
        %s2430 = scalar_lea.vmem %s3, 16
        %v2431 = vld [vmem:[%s2430] sm:$0xf]
        %v2436 = vunpack.c.l.b16 %v2426
        %v2437 = vunpack.c.h.b16 %v2426
        %v2438 = vunpack.c.l.b16 %v2427
        %v2439 = vunpack.c.h.b16 %v2427
        %v2440 = vunpack.c.l.b16 %v2428
        %v2441 = vunpack.c.h.b16 %v2428
        %v2442 = vunpack.c.l.b16 %v2429
        %v2443 = vunpack.c.h.b16 %v2429
        %v2444 = vpack.c.b16 %v2436, %v2436
        %v2445 = vpack.c.b16 %v2437, %v2437
        %v2446 = vpack.c.b16 %v2438, %v2438
        %v2447 = vpack.c.b16 %v2439, %v2439
        %v2448 = vpack.c.b16 %v2440, %v2440
        %v2449 = vpack.c.b16 %v2441, %v2441
        %v2450 = vpack.c.b16 %v2442, %v2442
        %v2451 = vpack.c.b16 %v2443, %v2443
        %v2453 = vsel %vm1406, %v2431, 0
        %v2456 = vsel %vm1410, %v2444, 0
        %v2459 = vsel %vm1410, %v2445, 0
        %v2462 = vsel %vm1410, %v2446, 0
        %v2465 = vsel %vm1410, %v2447, 0
        %v2468 = vsel %vm1410, %v2448, 0
        %v2471 = vsel %vm1410, %v2449, 0
        %v2474 = vsel %vm1410, %v2450, 0
        %v2477 = vsel %vm1410, %v2451, 0
        %2479 = vmatprep.subr.bf16.mxu0 %v2459
        %2480 = vmatpush1.bf16.msra.mxu0 %v2456
        %2481 = vmatprep.subr.bf16.mxu0 0
        %2482 = vmatpush1.bf16.msra.mxu0 0
        %2483 = vmatprep.subr.bf16.mxu0 0
        %2484 = vmatpush1.bf16.msra.mxu0 0
        %2485 = vmatprep.subr.bf16.mxu0 0
        %2486 = vmatpush1.bf16.msra.mxu0 0
        %2487 = vmatprep.subr.bf16.mxu0 0
        %2488 = vmatpush1.bf16.msra.mxu0 0
        %2489 = vmatprep.subr.bf16.mxu0 0
        %2490 = vmatpush1.bf16.msra.mxu0 0
        %2491 = vmatprep.subr.bf16.mxu0 0
        %2492 = vmatpush1.bf16.msra.mxu0 0
        %2493 = vmatprep.subr.bf16.mxu0 0
        %2494 = vmatpush1.bf16.msra.mxu0 0
        %2495 = vmatprep.subr.bf16.mxu0 0
        %2496 = vmatpush1.bf16.msra.mxu0 0
        %2497 = vmatprep.subr.bf16.mxu0 0
        %2498 = vmatpush1.bf16.msra.mxu0 0
        %2499 = vmatprep.subr.bf16.mxu0 0
        %2500 = vmatpush1.bf16.msra.mxu0 0
        %2501 = vmatprep.subr.bf16.mxu0 0
        %2502 = vmatpush1.bf16.msra.mxu0 0
        %2503 = vmatprep.subr.bf16.mxu0 0
        %2504 = vmatpush1.bf16.msra.mxu0 0
        %2505 = vmatprep.subr.bf16.mxu0 0
        %2506 = vmatpush1.bf16.msra.mxu0 0
        %2507 = vmatprep.subr.bf16.mxu0 0
        %2508 = vmatpush1.bf16.msra.mxu0 0
        %2509 = vmatprep.subr.bf16.mxu0 0
        %2510 = vmatpush1.bf16.msra.mxu0 0
        %2511 = vmatprep.mubr.bf16.mxu0 0
        %2512 = vmatmul.mubr.bf16.gmra.mrb[0].mxu0 %v2453
        %v2513 = vpop.f32.mrb[0].mxu0
        %v2514 = vadd.f32 0.0, %v2513
        %v2515 = vpop.f32.mrb[0].mxu0
        %v2516 = vadd.f32 0.0, %v2515
        %v2517 = vpop.f32.mrb[0].mxu0
        %v2518 = vpop.f32.mrb[0].mxu0
        %2519 = vdwg.mxu0
        %2520 = vmatprep.subr.bf16.mxu0 %v2465
        %2521 = vmatpush1.bf16.msra.mxu0 %v2462
        %2522 = vmatprep.subr.bf16.mxu0 0
        %2523 = vmatpush1.bf16.msra.mxu0 0
        %2524 = vmatprep.subr.bf16.mxu0 0
        %2525 = vmatpush1.bf16.msra.mxu0 0
        %2526 = vmatprep.subr.bf16.mxu0 0
        %2527 = vmatpush1.bf16.msra.mxu0 0
        %2528 = vmatprep.subr.bf16.mxu0 0
        %2529 = vmatpush1.bf16.msra.mxu0 0
        %2530 = vmatprep.subr.bf16.mxu0 0
        %2531 = vmatpush1.bf16.msra.mxu0 0
        %2532 = vmatprep.subr.bf16.mxu0 0
        %2533 = vmatpush1.bf16.msra.mxu0 0
        %2534 = vmatprep.subr.bf16.mxu0 0
        %2535 = vmatpush1.bf16.msra.mxu0 0
        %2536 = vmatprep.subr.bf16.mxu0 0
        %2537 = vmatpush1.bf16.msra.mxu0 0
        %2538 = vmatprep.subr.bf16.mxu0 0
        %2539 = vmatpush1.bf16.msra.mxu0 0
        %2540 = vmatprep.subr.bf16.mxu0 0
        %2541 = vmatpush1.bf16.msra.mxu0 0
        %2542 = vmatprep.subr.bf16.mxu0 0
        %2543 = vmatpush1.bf16.msra.mxu0 0
        %2544 = vmatprep.subr.bf16.mxu0 0
        %2545 = vmatpush1.bf16.msra.mxu0 0
        %2546 = vmatprep.subr.bf16.mxu0 0
        %2547 = vmatpush1.bf16.msra.mxu0 0
        %2548 = vmatprep.subr.bf16.mxu0 0
        %2549 = vmatpush1.bf16.msra.mxu0 0
        %2550 = vmatprep.subr.bf16.mxu0 0
        %2551 = vmatpush1.bf16.msra.mxu0 0
        %2552 = vmatprep.mubr.bf16.mxu0 0
        %2553 = vmatmul.mubr.bf16.gmra.mrb[0].mxu0 %v2453
        %v2554 = vpop.f32.mrb[0].mxu0
        %v2555 = vadd.f32 0.0, %v2554
        %v2556 = vpop.f32.mrb[0].mxu0
        %v2557 = vadd.f32 0.0, %v2556
        %v2558 = vpop.f32.mrb[0].mxu0
        %v2559 = vpop.f32.mrb[0].mxu0
        %2560 = vdwg.mxu0
        %2561 = vmatprep.subr.bf16.mxu0 %v2471
        %2562 = vmatpush1.bf16.msra.mxu0 %v2468
        %2563 = vmatprep.subr.bf16.mxu0 0
        %2564 = vmatpush1.bf16.msra.mxu0 0
        %2565 = vmatprep.subr.bf16.mxu0 0
        %2566 = vmatpush1.bf16.msra.mxu0 0
        %2567 = vmatprep.subr.bf16.mxu0 0
        %2568 = vmatpush1.bf16.msra.mxu0 0
        %2569 = vmatprep.subr.bf16.mxu0 0
        %2570 = vmatpush1.bf16.msra.mxu0 0
        %2571 = vmatprep.subr.bf16.mxu0 0
        %2572 = vmatpush1.bf16.msra.mxu0 0
        %2573 = vmatprep.subr.bf16.mxu0 0
        %2574 = vmatpush1.bf16.msra.mxu0 0
        %2575 = vmatprep.subr.bf16.mxu0 0
        %2576 = vmatpush1.bf16.msra.mxu0 0
        %2577 = vmatprep.subr.bf16.mxu0 0
        %2578 = vmatpush1.bf16.msra.mxu0 0
        %2579 = vmatprep.subr.bf16.mxu0 0
        %2580 = vmatpush1.bf16.msra.mxu0 0
        %2581 = vmatprep.subr.bf16.mxu0 0
        %2582 = vmatpush1.bf16.msra.mxu0 0
        %2583 = vmatprep.subr.bf16.mxu0 0
        %2584 = vmatpush1.bf16.msra.mxu0 0
        %2585 = vmatprep.subr.bf16.mxu0 0
        %2586 = vmatpush1.bf16.msra.mxu0 0
        %2587 = vmatprep.subr.bf16.mxu0 0
        %2588 = vmatpush1.bf16.msra.mxu0 0
        %2589 = vmatprep.subr.bf16.mxu0 0
        %2590 = vmatpush1.bf16.msra.mxu0 0
        %2591 = vmatprep.subr.bf16.mxu0 0
        %2592 = vmatpush1.bf16.msra.mxu0 0
        %2593 = vmatprep.mubr.bf16.mxu0 0
        %2594 = vmatmul.mubr.bf16.gmra.mrb[0].mxu0 %v2453
        %v2595 = vpop.f32.mrb[0].mxu0
        %v2596 = vadd.f32 0.0, %v2595
        %v2597 = vpop.f32.mrb[0].mxu0
        %v2598 = vadd.f32 0.0, %v2597
        %v2599 = vpop.f32.mrb[0].mxu0
        %v2600 = vpop.f32.mrb[0].mxu0
        %2601 = vdwg.mxu0
        %2602 = vmatprep.subr.bf16.mxu0 %v2477
        %2603 = vmatpush1.bf16.msra.mxu0 %v2474
        %2604 = vmatprep.subr.bf16.mxu0 0
        %2605 = vmatpush1.bf16.msra.mxu0 0
        %2606 = vmatprep.subr.bf16.mxu0 0
        %2607 = vmatpush1.bf16.msra.mxu0 0
        %2608 = vmatprep.subr.bf16.mxu0 0
        %2609 = vmatpush1.bf16.msra.mxu0 0
        %2610 = vmatprep.subr.bf16.mxu0 0
        %2611 = vmatpush1.bf16.msra.mxu0 0
        %2612 = vmatprep.subr.bf16.mxu0 0
        %2613 = vmatpush1.bf16.msra.mxu0 0
        %2614 = vmatprep.subr.bf16.mxu0 0
        %2615 = vmatpush1.bf16.msra.mxu0 0
        %2616 = vmatprep.subr.bf16.mxu0 0
        %2617 = vmatpush1.bf16.msra.mxu0 0
        %2618 = vmatprep.subr.bf16.mxu0 0
        %2619 = vmatpush1.bf16.msra.mxu0 0
        %2620 = vmatprep.subr.bf16.mxu0 0
        %2621 = vmatpush1.bf16.msra.mxu0 0
        %2622 = vmatprep.subr.bf16.mxu0 0
        %2623 = vmatpush1.bf16.msra.mxu0 0
        %2624 = vmatprep.subr.bf16.mxu0 0
        %2625 = vmatpush1.bf16.msra.mxu0 0
        %2626 = vmatprep.subr.bf16.mxu0 0
        %2627 = vmatpush1.bf16.msra.mxu0 0
        %2628 = vmatprep.subr.bf16.mxu0 0
        %2629 = vmatpush1.bf16.msra.mxu0 0
        %2630 = vmatprep.subr.bf16.mxu0 0
        %2631 = vmatpush1.bf16.msra.mxu0 0
        %2632 = vmatprep.subr.bf16.mxu0 0
        %2633 = vmatpush1.bf16.msra.mxu0 0
        %2634 = vmatprep.mubr.bf16.mxu0 0
        %2635 = vmatmul.mubr.bf16.gmra.mrb[0].mxu0 %v2453
        %v2636 = vpop.f32.mrb[0].mxu0
        %v2637 = vadd.f32 0.0, %v2636
        %v2638 = vpop.f32.mrb[0].mxu0
        %v2639 = vadd.f32 0.0, %v2638
        %v2640 = vpop.f32.mrb[0].mxu0
        %v2641 = vpop.f32.mrb[0].mxu0
        %2642 = vdwg.mxu0
        %v2643 = vadd.f32 %v2418, %v2514
        %v2644 = vadd.f32 %v2419, %v2516
        %v2645 = vadd.f32 %v2420, %v2555
        %v2646 = vadd.f32 %v2421, %v2557
        %v2647 = vadd.f32 %v2422, %v2596
        %v2648 = vadd.f32 %v2423, %v2598
        %v2649 = vadd.f32 %v2424, %v2637
        %v2650 = vadd.f32 %v2425, %v2639
        %v2651 = vld [vmem:[#allocation2 + $0x4] sm:$0x33]
        %v2652 = vld [vmem:[#allocation2 + $0xc] sm:$0x33]
        %v2653 = vld [vmem:[#allocation2 + $0x14] sm:$0x33]
        %v2654 = vld [vmem:[#allocation2 + $0x1c] sm:$0x33]
        %v2655 = vld [vmem:[#allocation2 + $0x24] sm:$0x3]
        %2656 = vrot.lane.b32.xlu0 %v1860, 1
        %v2657 = vpop.permute.xlu0 %2656
        %2658 = vrot.lane.b32.xlu0 %v1861, 1
        %v2659 = vpop.permute.xlu0 %2658
        %2660 = vrot.lane.b32.xlu0 %v1862, 1
        %v2661 = vpop.permute.xlu0 %2660
        %2662 = vrot.lane.b32.xlu0 %v1863, 1
        %v2663 = vpop.permute.xlu0 %2662
        %v2664 = vrot.slane %v2657, 4
        %v2665 = vrot.slane %v2659, 4
        %v2666 = vrot.slane %v2661, 4
        %v2667 = vrot.slane %v2663, 4
        %v2668 = vsel %vm2218, %v2664, %v2657
        %v2669 = vsel %vm1336, %v2664, %v2665
        %v2670 = vsel %vm2218, %v2669, %v2659
        %v2671 = vsel %vm1336, %v2665, %v2666
        %v2672 = vsel %vm2218, %v2671, %v2661
        %v2673 = vsel %vm1336, %v2666, %v2667
        %v2674 = vsel %vm2218, %v2673, %v2663
        %vm2675 = vcmp.ne.s16.totalorder %v2668, 0
        %vm2676 = vcmp.ne.s16.totalorder %v2670, 0
        %vm2677 = vcmp.ne.s16.totalorder %v2672, 0
        %vm2678 = vcmp.ne.s16.totalorder %v2674, 0
        %vm2679 = vcmp.ne.s16.totalorder %v2667, 0
        %v2680 = vsel %vm2675, %v2651, 0
        %v2681 = vsel %vm2676, %v2652, 0
        %v2682 = vsel %vm2677, %v2653, 0
        %v2683 = vsel %vm2678, %v2654, 0
        %v2684 = vsel %vm2679, %v2655, 0
        %s2685 = scalar_lea.vmem %s3, 20
        %v2686 = vld [vmem:[%s2685] sm:$0xf]
        %v2692 = vunpack.c.l.b16 %v2680
        %v2693 = vunpack.c.h.b16 %v2680
        %v2694 = vunpack.c.l.b16 %v2681
        %v2695 = vunpack.c.h.b16 %v2681
        %v2696 = vunpack.c.l.b16 %v2682
        %v2697 = vunpack.c.h.b16 %v2682
        %v2698 = vunpack.c.l.b16 %v2683
        %v2699 = vunpack.c.h.b16 %v2683
        %v2700 = vunpack.c.l.b16 %v2684
        %v2701 = vpack.c.b16 %v2692, %v2692
        %v2702 = vpack.c.b16 %v2693, %v2693
        %v2703 = vpack.c.b16 %v2694, %v2694
        %v2704 = vpack.c.b16 %v2695, %v2695
        %v2705 = vpack.c.b16 %v2696, %v2696
        %v2706 = vpack.c.b16 %v2697, %v2697
        %v2707 = vpack.c.b16 %v2698, %v2698
        %v2708 = vpack.c.b16 %v2699, %v2699
        %v2709 = vpack.c.b16 %v2700, %v2700
        %2710 = vrot.lane.b32.xlu0 %v2701, 127
        %v2711 = vpop.permute.xlu0 %2710
        %2712 = vrot.lane.b32.xlu0 %v2702, 127
        %v2713 = vpop.permute.xlu0 %2712
        %2714 = vrot.lane.b32.xlu0 %v2703, 127
        %v2715 = vpop.permute.xlu0 %2714
        %2716 = vrot.lane.b32.xlu0 %v2704, 127
        %v2717 = vpop.permute.xlu0 %2716
        %2718 = vrot.lane.b32.xlu0 %v2705, 127
        %v2719 = vpop.permute.xlu0 %2718
        %2720 = vrot.lane.b32.xlu0 %v2706, 127
        %v2721 = vpop.permute.xlu0 %2720
        %2722 = vrot.lane.b32.xlu0 %v2707, 127
        %v2723 = vpop.permute.xlu0 %2722
        %2724 = vrot.lane.b32.xlu0 %v2708, 127
        %v2725 = vpop.permute.xlu0 %2724
        %2726 = vrot.lane.b32.xlu0 %v2709, 127
        %v2727 = vpop.permute.xlu0 %2726
        %v2728 = vsel %vm2157, %v2711, %v2713
        %v2729 = vsel %vm2157, %v2713, %v2715
        %v2730 = vsel %vm2157, %v2715, %v2717
        %v2731 = vsel %vm2157, %v2717, %v2719
        %v2732 = vsel %vm2157, %v2719, %v2721
        %v2733 = vsel %vm2157, %v2721, %v2723
        %v2734 = vsel %vm2157, %v2723, %v2725
        %v2735 = vsel %vm2157, %v2725, %v2727
        %v2737 = vsel %vm1406, %v2686, 0
        %v2740 = vsel %vm1410, %v2728, 0
        %v2743 = vsel %vm1410, %v2729, 0
        %v2746 = vsel %vm1410, %v2730, 0
        %v2749 = vsel %vm1410, %v2731, 0
        %v2752 = vsel %vm1410, %v2732, 0
        %v2755 = vsel %vm1410, %v2733, 0
        %v2758 = vsel %vm1410, %v2734, 0
        %v2761 = vsel %vm1410, %v2735, 0
        %2763 = vmatprep.subr.bf16.mxu0 %v2743
        %2764 = vmatpush1.bf16.msra.mxu0 %v2740
        %2765 = vmatprep.subr.bf16.mxu0 0
        %2766 = vmatpush1.bf16.msra.mxu0 0
        %2767 = vmatprep.subr.bf16.mxu0 0
        %2768 = vmatpush1.bf16.msra.mxu0 0
        %2769 = vmatprep.subr.bf16.mxu0 0
        %2770 = vmatpush1.bf16.msra.mxu0 0
        %2771 = vmatprep.subr.bf16.mxu0 0
        %2772 = vmatpush1.bf16.msra.mxu0 0
        %2773 = vmatprep.subr.bf16.mxu0 0
        %2774 = vmatpush1.bf16.msra.mxu0 0
        %2775 = vmatprep.subr.bf16.mxu0 0
        %2776 = vmatpush1.bf16.msra.mxu0 0
        %2777 = vmatprep.subr.bf16.mxu0 0
        %2778 = vmatpush1.bf16.msra.mxu0 0
        %2779 = vmatprep.subr.bf16.mxu0 0
        %2780 = vmatpush1.bf16.msra.mxu0 0
        %2781 = vmatprep.subr.bf16.mxu0 0
        %2782 = vmatpush1.bf16.msra.mxu0 0
        %2783 = vmatprep.subr.bf16.mxu0 0
        %2784 = vmatpush1.bf16.msra.mxu0 0
        %2785 = vmatprep.subr.bf16.mxu0 0
        %2786 = vmatpush1.bf16.msra.mxu0 0
        %2787 = vmatprep.subr.bf16.mxu0 0
        %2788 = vmatpush1.bf16.msra.mxu0 0
        %2789 = vmatprep.subr.bf16.mxu0 0
        %2790 = vmatpush1.bf16.msra.mxu0 0
        %2791 = vmatprep.subr.bf16.mxu0 0
        %2792 = vmatpush1.bf16.msra.mxu0 0
        %2793 = vmatprep.subr.bf16.mxu0 0
        %2794 = vmatpush1.bf16.msra.mxu0 0
        %2795 = vmatprep.mubr.bf16.mxu0 0
        %2796 = vmatmul.mubr.bf16.gmra.mrb[0].mxu0 %v2737
        %v2797 = vpop.f32.mrb[0].mxu0
        %v2798 = vadd.f32 0.0, %v2797
        %v2799 = vpop.f32.mrb[0].mxu0
        %v2800 = vadd.f32 0.0, %v2799
        %v2801 = vpop.f32.mrb[0].mxu0
        %v2802 = vpop.f32.mrb[0].mxu0
        %2803 = vdwg.mxu0
        %2804 = vmatprep.subr.bf16.mxu0 %v2749
        %2805 = vmatpush1.bf16.msra.mxu0 %v2746
        %2806 = vmatprep.subr.bf16.mxu0 0
        %2807 = vmatpush1.bf16.msra.mxu0 0
        %2808 = vmatprep.subr.bf16.mxu0 0
        %2809 = vmatpush1.bf16.msra.mxu0 0
        %2810 = vmatprep.subr.bf16.mxu0 0
        %2811 = vmatpush1.bf16.msra.mxu0 0
        %2812 = vmatprep.subr.bf16.mxu0 0
        %2813 = vmatpush1.bf16.msra.mxu0 0
        %2814 = vmatprep.subr.bf16.mxu0 0
        %2815 = vmatpush1.bf16.msra.mxu0 0
        %2816 = vmatprep.subr.bf16.mxu0 0
        %2817 = vmatpush1.bf16.msra.mxu0 0
        %2818 = vmatprep.subr.bf16.mxu0 0
        %2819 = vmatpush1.bf16.msra.mxu0 0
        %2820 = vmatprep.subr.bf16.mxu0 0
        %2821 = vmatpush1.bf16.msra.mxu0 0
        %2822 = vmatprep.subr.bf16.mxu0 0
        %2823 = vmatpush1.bf16.msra.mxu0 0
        %2824 = vmatprep.subr.bf16.mxu0 0
        %2825 = vmatpush1.bf16.msra.mxu0 0
        %2826 = vmatprep.subr.bf16.mxu0 0
        %2827 = vmatpush1.bf16.msra.mxu0 0
        %2828 = vmatprep.subr.bf16.mxu0 0
        %2829 = vmatpush1.bf16.msra.mxu0 0
        %2830 = vmatprep.subr.bf16.mxu0 0
        %2831 = vmatpush1.bf16.msra.mxu0 0
        %2832 = vmatprep.subr.bf16.mxu0 0
        %2833 = vmatpush1.bf16.msra.mxu0 0
        %2834 = vmatprep.subr.bf16.mxu0 0
        %2835 = vmatpush1.bf16.msra.mxu0 0
        %2836 = vmatprep.mubr.bf16.mxu0 0
        %2837 = vmatmul.mubr.bf16.gmra.mrb[0].mxu0 %v2737
        %v2838 = vpop.f32.mrb[0].mxu0
        %v2839 = vadd.f32 0.0, %v2838
        %v2840 = vpop.f32.mrb[0].mxu0
        %v2841 = vadd.f32 0.0, %v2840
        %v2842 = vpop.f32.mrb[0].mxu0
        %v2843 = vpop.f32.mrb[0].mxu0
        %2844 = vdwg.mxu0
        %2845 = vmatprep.subr.bf16.mxu0 %v2755
        %2846 = vmatpush1.bf16.msra.mxu0 %v2752
        %2847 = vmatprep.subr.bf16.mxu0 0
        %2848 = vmatpush1.bf16.msra.mxu0 0
        %2849 = vmatprep.subr.bf16.mxu0 0
        %2850 = vmatpush1.bf16.msra.mxu0 0
        %2851 = vmatprep.subr.bf16.mxu0 0
        %2852 = vmatpush1.bf16.msra.mxu0 0
        %2853 = vmatprep.subr.bf16.mxu0 0
        %2854 = vmatpush1.bf16.msra.mxu0 0
        %2855 = vmatprep.subr.bf16.mxu0 0
        %2856 = vmatpush1.bf16.msra.mxu0 0
        %2857 = vmatprep.subr.bf16.mxu0 0
        %2858 = vmatpush1.bf16.msra.mxu0 0
        %2859 = vmatprep.subr.bf16.mxu0 0
        %2860 = vmatpush1.bf16.msra.mxu0 0
        %2861 = vmatprep.subr.bf16.mxu0 0
        %2862 = vmatpush1.bf16.msra.mxu0 0
        %2863 = vmatprep.subr.bf16.mxu0 0
        %2864 = vmatpush1.bf16.msra.mxu0 0
        %2865 = vmatprep.subr.bf16.mxu0 0
        %2866 = vmatpush1.bf16.msra.mxu0 0
        %2867 = vmatprep.subr.bf16.mxu0 0
        %2868 = vmatpush1.bf16.msra.mxu0 0
        %2869 = vmatprep.subr.bf16.mxu0 0
        %2870 = vmatpush1.bf16.msra.mxu0 0
        %2871 = vmatprep.subr.bf16.mxu0 0
        %2872 = vmatpush1.bf16.msra.mxu0 0
        %2873 = vmatprep.subr.bf16.mxu0 0
        %2874 = vmatpush1.bf16.msra.mxu0 0
        %2875 = vmatprep.subr.bf16.mxu0 0
        %2876 = vmatpush1.bf16.msra.mxu0 0
        %2877 = vmatprep.mubr.bf16.mxu0 0
        %2878 = vmatmul.mubr.bf16.gmra.mrb[0].mxu0 %v2737
        %v2879 = vpop.f32.mrb[0].mxu0
        %v2880 = vadd.f32 0.0, %v2879
        %v2881 = vpop.f32.mrb[0].mxu0
        %v2882 = vadd.f32 0.0, %v2881
        %v2883 = vpop.f32.mrb[0].mxu0
        %v2884 = vpop.f32.mrb[0].mxu0
        %2885 = vdwg.mxu0
        %2886 = vmatprep.subr.bf16.mxu0 %v2761
        %2887 = vmatpush1.bf16.msra.mxu0 %v2758
        %2888 = vmatprep.subr.bf16.mxu0 0
        %2889 = vmatpush1.bf16.msra.mxu0 0
        %2890 = vmatprep.subr.bf16.mxu0 0
        %2891 = vmatpush1.bf16.msra.mxu0 0
        %2892 = vmatprep.subr.bf16.mxu0 0
        %2893 = vmatpush1.bf16.msra.mxu0 0
        %2894 = vmatprep.subr.bf16.mxu0 0
        %2895 = vmatpush1.bf16.msra.mxu0 0
        %2896 = vmatprep.subr.bf16.mxu0 0
        %2897 = vmatpush1.bf16.msra.mxu0 0
        %2898 = vmatprep.subr.bf16.mxu0 0
        %2899 = vmatpush1.bf16.msra.mxu0 0
        %2900 = vmatprep.subr.bf16.mxu0 0
        %2901 = vmatpush1.bf16.msra.mxu0 0
        %2902 = vmatprep.subr.bf16.mxu0 0
        %2903 = vmatpush1.bf16.msra.mxu0 0
        %2904 = vmatprep.subr.bf16.mxu0 0
        %2905 = vmatpush1.bf16.msra.mxu0 0
        %2906 = vmatprep.subr.bf16.mxu0 0
        %2907 = vmatpush1.bf16.msra.mxu0 0
        %2908 = vmatprep.subr.bf16.mxu0 0
        %2909 = vmatpush1.bf16.msra.mxu0 0
        %2910 = vmatprep.subr.bf16.mxu0 0
        %2911 = vmatpush1.bf16.msra.mxu0 0
        %2912 = vmatprep.subr.bf16.mxu0 0
        %2913 = vmatpush1.bf16.msra.mxu0 0
        %2914 = vmatprep.subr.bf16.mxu0 0
        %2915 = vmatpush1.bf16.msra.mxu0 0
        %2916 = vmatprep.subr.bf16.mxu0 0
        %2917 = vmatpush1.bf16.msra.mxu0 0
        %2918 = vmatprep.mubr.bf16.mxu0 0
        %2919 = vmatmul.mubr.bf16.gmra.mrb[0].mxu0 %v2737
        %v2920 = vpop.f32.mrb[0].mxu0
        %v2921 = vadd.f32 0.0, %v2920
        %v2922 = vpop.f32.mrb[0].mxu0
        %v2923 = vadd.f32 0.0, %v2922
        %v2924 = vpop.f32.mrb[0].mxu0
        %v2925 = vpop.f32.mrb[0].mxu0
        %2926 = vdwg.mxu0
        %v2927 = vadd.f32 %v2643, %v2798
        %v2928 = vadd.f32 %v2644, %v2800
        %v2929 = vadd.f32 %v2645, %v2839
        %v2930 = vadd.f32 %v2646, %v2841
        %v2931 = vadd.f32 %v2647, %v2880
        %v2932 = vadd.f32 %v2648, %v2882
        %v2933 = vadd.f32 %v2649, %v2921
        %v2934 = vadd.f32 %v2650, %v2923
        %2935 = vrot.lane.b32.xlu0 %v1318, 31
        %v2936 = vpop.permute.xlu0 %2935
        %2937 = vrot.lane.b32.xlu0 %v1319, 31
        %v2938 = vpop.permute.xlu0 %2937
        %2939 = vrot.lane.b32.xlu0 %v1320, 31
        %v2940 = vpop.permute.xlu0 %2939
        %2941 = vrot.lane.b32.xlu0 %v1321, 31
        %v2942 = vpop.permute.xlu0 %2941
        %v2943 = vrot.slane %v2936, 4
        %v2944 = vrot.slane %v2938, 4
        %v2945 = vrot.slane %v2940, 4
        %v2946 = vrot.slane %v2942, 4
        %v2947 = vsel %vm1937, %v2943, %v2936
        %v2948 = vsel %vm1336, %v2943, %v2944
        %v2949 = vsel %vm1937, %v2948, %v2938
        %v2950 = vsel %vm1336, %v2944, %v2945
        %v2951 = vsel %vm1937, %v2950, %v2940
        %v2952 = vsel %vm1336, %v2945, %v2946
        %v2953 = vsel %vm1937, %v2952, %v2942
        %vm2954 = vcmp.ne.s16.totalorder %v2947, 0
        %vm2955 = vcmp.ne.s16.totalorder %v2949, 0
        %vm2956 = vcmp.ne.s16.totalorder %v2951, 0
        %vm2957 = vcmp.ne.s16.totalorder %v2953, 0
        %vm2958 = vcmp.ne.s16.totalorder %v2946, 0
        %v2959 = vsel %vm2954, %v2651, 0
        %v2960 = vsel %vm2955, %v2652, 0
        %v2961 = vsel %vm2956, %v2653, 0
        %v2962 = vsel %vm2957, %v2654, 0
        %v2963 = vsel %vm2958, %v2655, 0
        %s2964 = scalar_lea.vmem %s3, 24
        %v2965 = vld [vmem:[%s2964] sm:$0xf]
        %v2971 = vunpack.c.l.b16 %v2959
        %v2972 = vunpack.c.h.b16 %v2959
        %v2973 = vunpack.c.l.b16 %v2960
        %v2974 = vunpack.c.h.b16 %v2960
        %v2975 = vunpack.c.l.b16 %v2961
        %v2976 = vunpack.c.h.b16 %v2961
        %v2977 = vunpack.c.l.b16 %v2962
        %v2978 = vunpack.c.h.b16 %v2962
        %v2979 = vunpack.c.l.b16 %v2963
        %v2980 = vpack.c.b16 %v2971, %v2971
        %v2981 = vpack.c.b16 %v2972, %v2972
        %v2982 = vpack.c.b16 %v2973, %v2973
        %v2983 = vpack.c.b16 %v2974, %v2974
        %v2984 = vpack.c.b16 %v2975, %v2975
        %v2985 = vpack.c.b16 %v2976, %v2976
        %v2986 = vpack.c.b16 %v2977, %v2977
        %v2987 = vpack.c.b16 %v2978, %v2978
        %v2988 = vpack.c.b16 %v2979, %v2979
        %2989 = vrot.lane.b32.xlu0 %v2980, 97
        %v2990 = vpop.permute.xlu0 %2989
        %2991 = vrot.lane.b32.xlu0 %v2981, 97
        %v2992 = vpop.permute.xlu0 %2991
        %2993 = vrot.lane.b32.xlu0 %v2982, 97
        %v2994 = vpop.permute.xlu0 %2993
        %2995 = vrot.lane.b32.xlu0 %v2983, 97
        %v2996 = vpop.permute.xlu0 %2995
        %2997 = vrot.lane.b32.xlu0 %v2984, 97
        %v2998 = vpop.permute.xlu0 %2997
        %2999 = vrot.lane.b32.xlu0 %v2985, 97
        %v3000 = vpop.permute.xlu0 %2999
        %3001 = vrot.lane.b32.xlu0 %v2986, 97
        %v3002 = vpop.permute.xlu0 %3001
        %3003 = vrot.lane.b32.xlu0 %v2987, 97
        %v3004 = vpop.permute.xlu0 %3003
        %3005 = vrot.lane.b32.xlu0 %v2988, 97
        %v3006 = vpop.permute.xlu0 %3005
        %v3007 = vsel %vm1876, %v2990, %v2992
        %v3008 = vsel %vm1876, %v2992, %v2994
        %v3009 = vsel %vm1876, %v2994, %v2996
        %v3010 = vsel %vm1876, %v2996, %v2998
        %v3011 = vsel %vm1876, %v2998, %v3000
        %v3012 = vsel %vm1876, %v3000, %v3002
        %v3013 = vsel %vm1876, %v3002, %v3004
        %v3014 = vsel %vm1876, %v3004, %v3006
        %v3016 = vsel %vm1406, %v2965, 0
        %v3019 = vsel %vm1410, %v3007, 0
        %v3022 = vsel %vm1410, %v3008, 0
        %v3025 = vsel %vm1410, %v3009, 0
        %v3028 = vsel %vm1410, %v3010, 0
        %v3031 = vsel %vm1410, %v3011, 0
        %v3034 = vsel %vm1410, %v3012, 0
        %v3037 = vsel %vm1410, %v3013, 0
        %v3040 = vsel %vm1410, %v3014, 0
        %3042 = vmatprep.subr.bf16.mxu0 %v3022
        %3043 = vmatpush1.bf16.msra.mxu0 %v3019
        %3044 = vmatprep.subr.bf16.mxu0 0
        %3045 = vmatpush1.bf16.msra.mxu0 0
        %3046 = vmatprep.subr.bf16.mxu0 0
        %3047 = vmatpush1.bf16.msra.mxu0 0
        %3048 = vmatprep.subr.bf16.mxu0 0
        %3049 = vmatpush1.bf16.msra.mxu0 0
        %3050 = vmatprep.subr.bf16.mxu0 0
        %3051 = vmatpush1.bf16.msra.mxu0 0
        %3052 = vmatprep.subr.bf16.mxu0 0
        %3053 = vmatpush1.bf16.msra.mxu0 0
        %3054 = vmatprep.subr.bf16.mxu0 0
        %3055 = vmatpush1.bf16.msra.mxu0 0
        %3056 = vmatprep.subr.bf16.mxu0 0
        %3057 = vmatpush1.bf16.msra.mxu0 0
        %3058 = vmatprep.subr.bf16.mxu0 0
        %3059 = vmatpush1.bf16.msra.mxu0 0
        %3060 = vmatprep.subr.bf16.mxu0 0
        %3061 = vmatpush1.bf16.msra.mxu0 0
        %3062 = vmatprep.subr.bf16.mxu0 0
        %3063 = vmatpush1.bf16.msra.mxu0 0
        %3064 = vmatprep.subr.bf16.mxu0 0
        %3065 = vmatpush1.bf16.msra.mxu0 0
        %3066 = vmatprep.subr.bf16.mxu0 0
        %3067 = vmatpush1.bf16.msra.mxu0 0
        %3068 = vmatprep.subr.bf16.mxu0 0
        %3069 = vmatpush1.bf16.msra.mxu0 0
        %3070 = vmatprep.subr.bf16.mxu0 0
        %3071 = vmatpush1.bf16.msra.mxu0 0
        %3072 = vmatprep.subr.bf16.mxu0 0
        %3073 = vmatpush1.bf16.msra.mxu0 0
        %3074 = vmatprep.mubr.bf16.mxu0 0
        %3075 = vmatmul.mubr.bf16.gmra.mrb[0].mxu0 %v3016
        %v3076 = vpop.f32.mrb[0].mxu0
        %v3077 = vadd.f32 0.0, %v3076
        %v3078 = vpop.f32.mrb[0].mxu0
        %v3079 = vadd.f32 0.0, %v3078
        %v3080 = vpop.f32.mrb[0].mxu0
        %v3081 = vpop.f32.mrb[0].mxu0
        %3082 = vdwg.mxu0
        %3083 = vmatprep.subr.bf16.mxu0 %v3028
        %3084 = vmatpush1.bf16.msra.mxu0 %v3025
        %3085 = vmatprep.subr.bf16.mxu0 0
        %3086 = vmatpush1.bf16.msra.mxu0 0
        %3087 = vmatprep.subr.bf16.mxu0 0
        %3088 = vmatpush1.bf16.msra.mxu0 0
        %3089 = vmatprep.subr.bf16.mxu0 0
        %3090 = vmatpush1.bf16.msra.mxu0 0
        %3091 = vmatprep.subr.bf16.mxu0 0
        %3092 = vmatpush1.bf16.msra.mxu0 0
        %3093 = vmatprep.subr.bf16.mxu0 0
        %3094 = vmatpush1.bf16.msra.mxu0 0
        %3095 = vmatprep.subr.bf16.mxu0 0
        %3096 = vmatpush1.bf16.msra.mxu0 0
        %3097 = vmatprep.subr.bf16.mxu0 0
        %3098 = vmatpush1.bf16.msra.mxu0 0
        %3099 = vmatprep.subr.bf16.mxu0 0
        %3100 = vmatpush1.bf16.msra.mxu0 0
        %3101 = vmatprep.subr.bf16.mxu0 0
        %3102 = vmatpush1.bf16.msra.mxu0 0
        %3103 = vmatprep.subr.bf16.mxu0 0
        %3104 = vmatpush1.bf16.msra.mxu0 0
        %3105 = vmatprep.subr.bf16.mxu0 0
        %3106 = vmatpush1.bf16.msra.mxu0 0
        %3107 = vmatprep.subr.bf16.mxu0 0
        %3108 = vmatpush1.bf16.msra.mxu0 0
        %3109 = vmatprep.subr.bf16.mxu0 0
        %3110 = vmatpush1.bf16.msra.mxu0 0
        %3111 = vmatprep.subr.bf16.mxu0 0
        %3112 = vmatpush1.bf16.msra.mxu0 0
        %3113 = vmatprep.subr.bf16.mxu0 0
        %3114 = vmatpush1.bf16.msra.mxu0 0
        %3115 = vmatprep.mubr.bf16.mxu0 0
        %3116 = vmatmul.mubr.bf16.gmra.mrb[0].mxu0 %v3016
        %v3117 = vpop.f32.mrb[0].mxu0
        %v3118 = vadd.f32 0.0, %v3117
        %v3119 = vpop.f32.mrb[0].mxu0
        %v3120 = vadd.f32 0.0, %v3119
        %v3121 = vpop.f32.mrb[0].mxu0
        %v3122 = vpop.f32.mrb[0].mxu0
        %3123 = vdwg.mxu0
        %3124 = vmatprep.subr.bf16.mxu0 %v3034
        %3125 = vmatpush1.bf16.msra.mxu0 %v3031
        %3126 = vmatprep.subr.bf16.mxu0 0
        %3127 = vmatpush1.bf16.msra.mxu0 0
        %3128 = vmatprep.subr.bf16.mxu0 0
        %3129 = vmatpush1.bf16.msra.mxu0 0
        %3130 = vmatprep.subr.bf16.mxu0 0
        %3131 = vmatpush1.bf16.msra.mxu0 0
        %3132 = vmatprep.subr.bf16.mxu0 0
        %3133 = vmatpush1.bf16.msra.mxu0 0
        %3134 = vmatprep.subr.bf16.mxu0 0
        %3135 = vmatpush1.bf16.msra.mxu0 0
        %3136 = vmatprep.subr.bf16.mxu0 0
        %3137 = vmatpush1.bf16.msra.mxu0 0
        %3138 = vmatprep.subr.bf16.mxu0 0
        %3139 = vmatpush1.bf16.msra.mxu0 0
        %3140 = vmatprep.subr.bf16.mxu0 0
        %3141 = vmatpush1.bf16.msra.mxu0 0
        %3142 = vmatprep.subr.bf16.mxu0 0
        %3143 = vmatpush1.bf16.msra.mxu0 0
        %3144 = vmatprep.subr.bf16.mxu0 0
        %3145 = vmatpush1.bf16.msra.mxu0 0
        %3146 = vmatprep.subr.bf16.mxu0 0
        %3147 = vmatpush1.bf16.msra.mxu0 0
        %3148 = vmatprep.subr.bf16.mxu0 0
        %3149 = vmatpush1.bf16.msra.mxu0 0
        %3150 = vmatprep.subr.bf16.mxu0 0
        %3151 = vmatpush1.bf16.msra.mxu0 0
        %3152 = vmatprep.subr.bf16.mxu0 0
        %3153 = vmatpush1.bf16.msra.mxu0 0
        %3154 = vmatprep.subr.bf16.mxu0 0
        %3155 = vmatpush1.bf16.msra.mxu0 0
        %3156 = vmatprep.mubr.bf16.mxu0 0
        %3157 = vmatmul.mubr.bf16.gmra.mrb[0].mxu0 %v3016
        %v3158 = vpop.f32.mrb[0].mxu0
        %v3159 = vadd.f32 0.0, %v3158
        %v3160 = vpop.f32.mrb[0].mxu0
        %v3161 = vadd.f32 0.0, %v3160
        %v3162 = vpop.f32.mrb[0].mxu0
        %v3163 = vpop.f32.mrb[0].mxu0
        %3164 = vdwg.mxu0
        %3165 = vmatprep.subr.bf16.mxu0 %v3040
        %3166 = vmatpush1.bf16.msra.mxu0 %v3037
        %3167 = vmatprep.subr.bf16.mxu0 0
        %3168 = vmatpush1.bf16.msra.mxu0 0
        %3169 = vmatprep.subr.bf16.mxu0 0
        %3170 = vmatpush1.bf16.msra.mxu0 0
        %3171 = vmatprep.subr.bf16.mxu0 0
        %3172 = vmatpush1.bf16.msra.mxu0 0
        %3173 = vmatprep.subr.bf16.mxu0 0
        %3174 = vmatpush1.bf16.msra.mxu0 0
        %3175 = vmatprep.subr.bf16.mxu0 0
        %3176 = vmatpush1.bf16.msra.mxu0 0
        %3177 = vmatprep.subr.bf16.mxu0 0
        %3178 = vmatpush1.bf16.msra.mxu0 0
        %3179 = vmatprep.subr.bf16.mxu0 0
        %3180 = vmatpush1.bf16.msra.mxu0 0
        %3181 = vmatprep.subr.bf16.mxu0 0
        %3182 = vmatpush1.bf16.msra.mxu0 0
        %3183 = vmatprep.subr.bf16.mxu0 0
        %3184 = vmatpush1.bf16.msra.mxu0 0
        %3185 = vmatprep.subr.bf16.mxu0 0
        %3186 = vmatpush1.bf16.msra.mxu0 0
        %3187 = vmatprep.subr.bf16.mxu0 0
        %3188 = vmatpush1.bf16.msra.mxu0 0
        %3189 = vmatprep.subr.bf16.mxu0 0
        %3190 = vmatpush1.bf16.msra.mxu0 0
        %3191 = vmatprep.subr.bf16.mxu0 0
        %3192 = vmatpush1.bf16.msra.mxu0 0
        %3193 = vmatprep.subr.bf16.mxu0 0
        %3194 = vmatpush1.bf16.msra.mxu0 0
        %3195 = vmatprep.subr.bf16.mxu0 0
        %3196 = vmatpush1.bf16.msra.mxu0 0
        %3197 = vmatprep.mubr.bf16.mxu0 0
        %3198 = vmatmul.mubr.bf16.gmra.mrb[0].mxu0 %v3016
        %v3199 = vpop.f32.mrb[0].mxu0
        %v3200 = vadd.f32 0.0, %v3199
        %v3201 = vpop.f32.mrb[0].mxu0
        %v3202 = vadd.f32 0.0, %v3201
        %v3203 = vpop.f32.mrb[0].mxu0
        %v3204 = vpop.f32.mrb[0].mxu0
        %3205 = vdwg.mxu0
        %v3206 = vadd.f32 %v2927, %v3077
        %v3207 = vadd.f32 %v2928, %v3079
        %v3208 = vadd.f32 %v2929, %v3118
        %v3209 = vadd.f32 %v2930, %v3120
        %v3210 = vadd.f32 %v2931, %v3159
        %v3211 = vadd.f32 %v2932, %v3161
        %v3212 = vadd.f32 %v2933, %v3200
        %v3213 = vadd.f32 %v2934, %v3202
        %s3214 = scalar_lea.vmem %s3, 28
        %v3215 = vld [vmem:[%s3214] sm:$0xf]
        %v3221 = vunpack.c.l.b16 %v2651
        %v3222 = vunpack.c.h.b16 %v2651
        %v3223 = vunpack.c.l.b16 %v2652
        %v3224 = vunpack.c.h.b16 %v2652
        %v3225 = vunpack.c.l.b16 %v2653
        %v3226 = vunpack.c.h.b16 %v2653
        %v3227 = vunpack.c.l.b16 %v2654
        %v3228 = vunpack.c.h.b16 %v2654
        %v3229 = vunpack.c.l.b16 %v2655
        %v3230 = vpack.c.b16 %v3221, %v3221
        %v3231 = vpack.c.b16 %v3222, %v3222
        %v3232 = vpack.c.b16 %v3223, %v3223
        %v3233 = vpack.c.b16 %v3224, %v3224
        %v3234 = vpack.c.b16 %v3225, %v3225
        %v3235 = vpack.c.b16 %v3226, %v3226
        %v3236 = vpack.c.b16 %v3227, %v3227
        %v3237 = vpack.c.b16 %v3228, %v3228
        %v3238 = vpack.c.b16 %v3229, %v3229
        %3239 = vrot.lane.b32.xlu0 %v3230, 96
        %v3240 = vpop.permute.xlu0 %3239
        %3241 = vrot.lane.b32.xlu0 %v3231, 96
        %v3242 = vpop.permute.xlu0 %3241
        %3243 = vrot.lane.b32.xlu0 %v3232, 96
        %v3244 = vpop.permute.xlu0 %3243
        %3245 = vrot.lane.b32.xlu0 %v3233, 96
        %v3246 = vpop.permute.xlu0 %3245
        %3247 = vrot.lane.b32.xlu0 %v3234, 96
        %v3248 = vpop.permute.xlu0 %3247
        %3249 = vrot.lane.b32.xlu0 %v3235, 96
        %v3250 = vpop.permute.xlu0 %3249
        %3251 = vrot.lane.b32.xlu0 %v3236, 96
        %v3252 = vpop.permute.xlu0 %3251
        %3253 = vrot.lane.b32.xlu0 %v3237, 96
        %v3254 = vpop.permute.xlu0 %3253
        %3255 = vrot.lane.b32.xlu0 %v3238, 96
        %v3256 = vpop.permute.xlu0 %3255
        %vm3257 = vcmask 785408
        %v3258 = vsel %vm3257, %v3240, %v3242
        %v3259 = vsel %vm3257, %v3242, %v3244
        %v3260 = vsel %vm3257, %v3244, %v3246
        %v3261 = vsel %vm3257, %v3246, %v3248
        %v3262 = vsel %vm3257, %v3248, %v3250
        %v3263 = vsel %vm3257, %v3250, %v3252
        %v3264 = vsel %vm3257, %v3252, %v3254
        %v3265 = vsel %vm3257, %v3254, %v3256
        %v3267 = vsel %vm1406, %v3215, 0
        %v3270 = vsel %vm1410, %v3258, 0
        %v3273 = vsel %vm1410, %v3259, 0
        %v3276 = vsel %vm1410, %v3260, 0
        %v3279 = vsel %vm1410, %v3261, 0
        %v3282 = vsel %vm1410, %v3262, 0
        %v3285 = vsel %vm1410, %v3263, 0
        %v3288 = vsel %vm1410, %v3264, 0
        %v3291 = vsel %vm1410, %v3265, 0
        %3293 = vmatprep.subr.bf16.mxu0 %v3273
        %3294 = vmatpush1.bf16.msra.mxu0 %v3270
        %3295 = vmatprep.subr.bf16.mxu0 0
        %3296 = vmatpush1.bf16.msra.mxu0 0
        %3297 = vmatprep.subr.bf16.mxu0 0
        %3298 = vmatpush1.bf16.msra.mxu0 0
        %3299 = vmatprep.subr.bf16.mxu0 0
        %3300 = vmatpush1.bf16.msra.mxu0 0
        %3301 = vmatprep.subr.bf16.mxu0 0
        %3302 = vmatpush1.bf16.msra.mxu0 0
        %3303 = vmatprep.subr.bf16.mxu0 0
        %3304 = vmatpush1.bf16.msra.mxu0 0
        %3305 = vmatprep.subr.bf16.mxu0 0
        %3306 = vmatpush1.bf16.msra.mxu0 0
        %3307 = vmatprep.subr.bf16.mxu0 0
        %3308 = vmatpush1.bf16.msra.mxu0 0
        %3309 = vmatprep.subr.bf16.mxu0 0
        %3310 = vmatpush1.bf16.msra.mxu0 0
        %3311 = vmatprep.subr.bf16.mxu0 0
        %3312 = vmatpush1.bf16.msra.mxu0 0
        %3313 = vmatprep.subr.bf16.mxu0 0
        %3314 = vmatpush1.bf16.msra.mxu0 0
        %3315 = vmatprep.subr.bf16.mxu0 0
        %3316 = vmatpush1.bf16.msra.mxu0 0
        %3317 = vmatprep.subr.bf16.mxu0 0
        %3318 = vmatpush1.bf16.msra.mxu0 0
        %3319 = vmatprep.subr.bf16.mxu0 0
        %3320 = vmatpush1.bf16.msra.mxu0 0
        %3321 = vmatprep.subr.bf16.mxu0 0
        %3322 = vmatpush1.bf16.msra.mxu0 0
        %3323 = vmatprep.subr.bf16.mxu0 0
        %3324 = vmatpush1.bf16.msra.mxu0 0
        %3325 = vmatprep.mubr.bf16.mxu0 0
        %3326 = vmatmul.mubr.bf16.gmra.mrb[0].mxu0 %v3267
        %v3327 = vpop.f32.mrb[0].mxu0
        %v3328 = vadd.f32 0.0, %v3327
        %v3329 = vpop.f32.mrb[0].mxu0
        %v3330 = vadd.f32 0.0, %v3329
        %v3331 = vpop.f32.mrb[0].mxu0
        %v3332 = vpop.f32.mrb[0].mxu0
        %3333 = vdwg.mxu0
        %3334 = vmatprep.subr.bf16.mxu0 %v3279
        %3335 = vmatpush1.bf16.msra.mxu0 %v3276
        %3336 = vmatprep.subr.bf16.mxu0 0
        %3337 = vmatpush1.bf16.msra.mxu0 0
        %3338 = vmatprep.subr.bf16.mxu0 0
        %3339 = vmatpush1.bf16.msra.mxu0 0
        %3340 = vmatprep.subr.bf16.mxu0 0
        %3341 = vmatpush1.bf16.msra.mxu0 0
        %3342 = vmatprep.subr.bf16.mxu0 0
        %3343 = vmatpush1.bf16.msra.mxu0 0
        %3344 = vmatprep.subr.bf16.mxu0 0
        %3345 = vmatpush1.bf16.msra.mxu0 0
        %3346 = vmatprep.subr.bf16.mxu0 0
        %3347 = vmatpush1.bf16.msra.mxu0 0
        %3348 = vmatprep.subr.bf16.mxu0 0
        %3349 = vmatpush1.bf16.msra.mxu0 0
        %3350 = vmatprep.subr.bf16.mxu0 0
        %3351 = vmatpush1.bf16.msra.mxu0 0
        %3352 = vmatprep.subr.bf16.mxu0 0
        %3353 = vmatpush1.bf16.msra.mxu0 0
        %3354 = vmatprep.subr.bf16.mxu0 0
        %3355 = vmatpush1.bf16.msra.mxu0 0
        %3356 = vmatprep.subr.bf16.mxu0 0
        %3357 = vmatpush1.bf16.msra.mxu0 0
        %3358 = vmatprep.subr.bf16.mxu0 0
        %3359 = vmatpush1.bf16.msra.mxu0 0
        %3360 = vmatprep.subr.bf16.mxu0 0
        %3361 = vmatpush1.bf16.msra.mxu0 0
        %3362 = vmatprep.subr.bf16.mxu0 0
        %3363 = vmatpush1.bf16.msra.mxu0 0
        %3364 = vmatprep.subr.bf16.mxu0 0
        %3365 = vmatpush1.bf16.msra.mxu0 0
        %3366 = vmatprep.mubr.bf16.mxu0 0
        %3367 = vmatmul.mubr.bf16.gmra.mrb[0].mxu0 %v3267
        %v3368 = vpop.f32.mrb[0].mxu0
        %v3369 = vadd.f32 0.0, %v3368
        %v3370 = vpop.f32.mrb[0].mxu0
        %v3371 = vadd.f32 0.0, %v3370
        %v3372 = vpop.f32.mrb[0].mxu0
        %v3373 = vpop.f32.mrb[0].mxu0
        %3374 = vdwg.mxu0
        %3375 = vmatprep.subr.bf16.mxu0 %v3285
        %3376 = vmatpush1.bf16.msra.mxu0 %v3282
        %3377 = vmatprep.subr.bf16.mxu0 0
        %3378 = vmatpush1.bf16.msra.mxu0 0
        %3379 = vmatprep.subr.bf16.mxu0 0
        %3380 = vmatpush1.bf16.msra.mxu0 0
        %3381 = vmatprep.subr.bf16.mxu0 0
        %3382 = vmatpush1.bf16.msra.mxu0 0
        %3383 = vmatprep.subr.bf16.mxu0 0
        %3384 = vmatpush1.bf16.msra.mxu0 0
        %3385 = vmatprep.subr.bf16.mxu0 0
        %3386 = vmatpush1.bf16.msra.mxu0 0
        %3387 = vmatprep.subr.bf16.mxu0 0
        %3388 = vmatpush1.bf16.msra.mxu0 0
        %3389 = vmatprep.subr.bf16.mxu0 0
        %3390 = vmatpush1.bf16.msra.mxu0 0
        %3391 = vmatprep.subr.bf16.mxu0 0
        %3392 = vmatpush1.bf16.msra.mxu0 0
        %3393 = vmatprep.subr.bf16.mxu0 0
        %3394 = vmatpush1.bf16.msra.mxu0 0
        %3395 = vmatprep.subr.bf16.mxu0 0
        %3396 = vmatpush1.bf16.msra.mxu0 0
        %3397 = vmatprep.subr.bf16.mxu0 0
        %3398 = vmatpush1.bf16.msra.mxu0 0
        %3399 = vmatprep.subr.bf16.mxu0 0
        %3400 = vmatpush1.bf16.msra.mxu0 0
        %3401 = vmatprep.subr.bf16.mxu0 0
        %3402 = vmatpush1.bf16.msra.mxu0 0
        %3403 = vmatprep.subr.bf16.mxu0 0
        %3404 = vmatpush1.bf16.msra.mxu0 0
        %3405 = vmatprep.subr.bf16.mxu0 0
        %3406 = vmatpush1.bf16.msra.mxu0 0
        %3407 = vmatprep.mubr.bf16.mxu0 0
        %3408 = vmatmul.mubr.bf16.gmra.mrb[0].mxu0 %v3267
        %v3409 = vpop.f32.mrb[0].mxu0
        %v3410 = vadd.f32 0.0, %v3409
        %v3411 = vpop.f32.mrb[0].mxu0
        %v3412 = vadd.f32 0.0, %v3411
        %v3413 = vpop.f32.mrb[0].mxu0
        %v3414 = vpop.f32.mrb[0].mxu0
        %3415 = vdwg.mxu0
        %3416 = vmatprep.subr.bf16.mxu0 %v3291
        %3417 = vmatpush1.bf16.msra.mxu0 %v3288
        %3418 = vmatprep.subr.bf16.mxu0 0
        %3419 = vmatpush1.bf16.msra.mxu0 0
        %3420 = vmatprep.subr.bf16.mxu0 0
        %3421 = vmatpush1.bf16.msra.mxu0 0
        %3422 = vmatprep.subr.bf16.mxu0 0
        %3423 = vmatpush1.bf16.msra.mxu0 0
        %3424 = vmatprep.subr.bf16.mxu0 0
        %3425 = vmatpush1.bf16.msra.mxu0 0
        %3426 = vmatprep.subr.bf16.mxu0 0
        %3427 = vmatpush1.bf16.msra.mxu0 0
        %3428 = vmatprep.subr.bf16.mxu0 0
        %3429 = vmatpush1.bf16.msra.mxu0 0
        %3430 = vmatprep.subr.bf16.mxu0 0
        %3431 = vmatpush1.bf16.msra.mxu0 0
        %3432 = vmatprep.subr.bf16.mxu0 0
        %3433 = vmatpush1.bf16.msra.mxu0 0
        %3434 = vmatprep.subr.bf16.mxu0 0
        %3435 = vmatpush1.bf16.msra.mxu0 0
        %3436 = vmatprep.subr.bf16.mxu0 0
        %3437 = vmatpush1.bf16.msra.mxu0 0
        %3438 = vmatprep.subr.bf16.mxu0 0
        %3439 = vmatpush1.bf16.msra.mxu0 0
        %3440 = vmatprep.subr.bf16.mxu0 0
        %3441 = vmatpush1.bf16.msra.mxu0 0
        %3442 = vmatprep.subr.bf16.mxu0 0
        %3443 = vmatpush1.bf16.msra.mxu0 0
        %3444 = vmatprep.subr.bf16.mxu0 0
        %3445 = vmatpush1.bf16.msra.mxu0 0
        %3446 = vmatprep.subr.bf16.mxu0 0
        %3447 = vmatpush1.bf16.msra.mxu0 0
        %3448 = vmatprep.mubr.bf16.mxu0 0
        %3449 = vmatmul.mubr.bf16.gmra.mrb[0].mxu0 %v3267
        %v3450 = vpop.f32.mrb[0].mxu0
        %v3451 = vadd.f32 0.0, %v3450
        %v3452 = vpop.f32.mrb[0].mxu0
        %v3453 = vadd.f32 0.0, %v3452
        %v3454 = vpop.f32.mrb[0].mxu0
        %v3455 = vpop.f32.mrb[0].mxu0
        %3456 = vdwg.mxu0
        %v3457 = vadd.f32 %v3206, %v3328
        %v3458 = vadd.f32 %v3207, %v3330
        %v3459 = vadd.f32 %v3208, %v3369
        %v3460 = vadd.f32 %v3209, %v3371
        %v3461 = vadd.f32 %v3210, %v3410
        %v3462 = vadd.f32 %v3211, %v3412
        %v3463 = vadd.f32 %v3212, %v3451
        %v3464 = vadd.f32 %v3213, %v3453
        %3465 = vrot.lane.b32.xlu0 %v1860, 33
        %v3466 = vpop.permute.xlu0 %3465
        %3467 = vrot.lane.b32.xlu0 %v1861, 33
        %v3468 = vpop.permute.xlu0 %3467
        %3469 = vrot.lane.b32.xlu0 %v1862, 33
        %v3470 = vpop.permute.xlu0 %3469
        %3471 = vrot.lane.b32.xlu0 %v1863, 33
        %v3472 = vpop.permute.xlu0 %3471
        %v3473 = vrot.slane %v3466, 4
        %v3474 = vrot.slane %v3468, 4
        %v3475 = vrot.slane %v3470, 4
        %v3476 = vrot.slane %v3472, 4
        %v3477 = vsel %vm1640, %v3473, %v3466
        %v3478 = vsel %vm1336, %v3473, %v3474
        %v3479 = vsel %vm1640, %v3478, %v3468
        %v3480 = vsel %vm1336, %v3474, %v3475
        %v3481 = vsel %vm1640, %v3480, %v3470
        %v3482 = vsel %vm1336, %v3475, %v3476
        %v3483 = vsel %vm1640, %v3482, %v3472
        %vm3484 = vcmp.ne.s16.totalorder %v3477, 0
        %vm3485 = vcmp.ne.s16.totalorder %v3479, 0
        %vm3486 = vcmp.ne.s16.totalorder %v3481, 0
        %vm3487 = vcmp.ne.s16.totalorder %v3483, 0
        %vm3488 = vcmp.ne.s16.totalorder %v3476, 0
        %v3489 = vsel %vm3484, %v2651, 0
        %v3490 = vsel %vm3485, %v2652, 0
        %v3491 = vsel %vm3486, %v2653, 0
        %v3492 = vsel %vm3487, %v2654, 0
        %v3493 = vsel %vm3488, %v2655, 0
        %s3494 = scalar_lea.vmem %s3, 32
        %v3495 = vld [vmem:[%s3494] sm:$0xf]
        %v3501 = vunpack.c.l.b16 %v3489
        %v3502 = vunpack.c.h.b16 %v3489
        %v3503 = vunpack.c.l.b16 %v3490
        %v3504 = vunpack.c.h.b16 %v3490
        %v3505 = vunpack.c.l.b16 %v3491
        %v3506 = vunpack.c.h.b16 %v3491
        %v3507 = vunpack.c.l.b16 %v3492
        %v3508 = vunpack.c.h.b16 %v3492
        %v3509 = vunpack.c.l.b16 %v3493
        %v3510 = vpack.c.b16 %v3501, %v3501
        %v3511 = vpack.c.b16 %v3502, %v3502
        %v3512 = vpack.c.b16 %v3503, %v3503
        %v3513 = vpack.c.b16 %v3504, %v3504
        %v3514 = vpack.c.b16 %v3505, %v3505
        %v3515 = vpack.c.b16 %v3506, %v3506
        %v3516 = vpack.c.b16 %v3507, %v3507
        %v3517 = vpack.c.b16 %v3508, %v3508
        %v3518 = vpack.c.b16 %v3509, %v3509
        %3519 = vrot.lane.b32.xlu0 %v3510, 95
        %v3520 = vpop.permute.xlu0 %3519
        %3521 = vrot.lane.b32.xlu0 %v3511, 95
        %v3522 = vpop.permute.xlu0 %3521
        %3523 = vrot.lane.b32.xlu0 %v3512, 95
        %v3524 = vpop.permute.xlu0 %3523
        %3525 = vrot.lane.b32.xlu0 %v3513, 95
        %v3526 = vpop.permute.xlu0 %3525
        %3527 = vrot.lane.b32.xlu0 %v3514, 95
        %v3528 = vpop.permute.xlu0 %3527
        %3529 = vrot.lane.b32.xlu0 %v3515, 95
        %v3530 = vpop.permute.xlu0 %3529
        %3531 = vrot.lane.b32.xlu0 %v3516, 95
        %v3532 = vpop.permute.xlu0 %3531
        %3533 = vrot.lane.b32.xlu0 %v3517, 95
        %v3534 = vpop.permute.xlu0 %3533
        %3535 = vrot.lane.b32.xlu0 %v3518, 95
        %v3536 = vpop.permute.xlu0 %3535
        %v3537 = vsel %vm1334, %v3520, %v3522
        %v3538 = vsel %vm1334, %v3522, %v3524
        %v3539 = vsel %vm1334, %v3524, %v3526
        %v3540 = vsel %vm1334, %v3526, %v3528
        %v3541 = vsel %vm1334, %v3528, %v3530
        %v3542 = vsel %vm1334, %v3530, %v3532
        %v3543 = vsel %vm1334, %v3532, %v3534
        %v3544 = vsel %vm1334, %v3534, %v3536
        %v3546 = vsel %vm1406, %v3495, 0
        %v3549 = vsel %vm1410, %v3537, 0
        %v3552 = vsel %vm1410, %v3538, 0
        %v3555 = vsel %vm1410, %v3539, 0
        %v3558 = vsel %vm1410, %v3540, 0
        %v3561 = vsel %vm1410, %v3541, 0
        %v3564 = vsel %vm1410, %v3542, 0
        %v3567 = vsel %vm1410, %v3543, 0
        %v3570 = vsel %vm1410, %v3544, 0
        %3572 = vmatprep.subr.bf16.mxu0 %v3552
        %3573 = vmatpush1.bf16.msra.mxu0 %v3549
        %3574 = vmatprep.subr.bf16.mxu0 0
        %3575 = vmatpush1.bf16.msra.mxu0 0
        %3576 = vmatprep.subr.bf16.mxu0 0
        %3577 = vmatpush1.bf16.msra.mxu0 0
        %3578 = vmatprep.subr.bf16.mxu0 0
        %3579 = vmatpush1.bf16.msra.mxu0 0
        %3580 = vmatprep.subr.bf16.mxu0 0
        %3581 = vmatpush1.bf16.msra.mxu0 0
        %3582 = vmatprep.subr.bf16.mxu0 0
        %3583 = vmatpush1.bf16.msra.mxu0 0
        %3584 = vmatprep.subr.bf16.mxu0 0
        %3585 = vmatpush1.bf16.msra.mxu0 0
        %3586 = vmatprep.subr.bf16.mxu0 0
        %3587 = vmatpush1.bf16.msra.mxu0 0
        %3588 = vmatprep.subr.bf16.mxu0 0
        %3589 = vmatpush1.bf16.msra.mxu0 0
        %3590 = vmatprep.subr.bf16.mxu0 0
        %3591 = vmatpush1.bf16.msra.mxu0 0
        %3592 = vmatprep.subr.bf16.mxu0 0
        %3593 = vmatpush1.bf16.msra.mxu0 0
        %3594 = vmatprep.subr.bf16.mxu0 0
        %3595 = vmatpush1.bf16.msra.mxu0 0
        %3596 = vmatprep.subr.bf16.mxu0 0
        %3597 = vmatpush1.bf16.msra.mxu0 0
        %3598 = vmatprep.subr.bf16.mxu0 0
        %3599 = vmatpush1.bf16.msra.mxu0 0
        %3600 = vmatprep.subr.bf16.mxu0 0
        %3601 = vmatpush1.bf16.msra.mxu0 0
        %3602 = vmatprep.subr.bf16.mxu0 0
        %3603 = vmatpush1.bf16.msra.mxu0 0
        %3604 = vmatprep.mubr.bf16.mxu0 0
        %3605 = vmatmul.mubr.bf16.gmra.mrb[0].mxu0 %v3546
        %v3606 = vpop.f32.mrb[0].mxu0
        %v3607 = vadd.f32 0.0, %v3606
        %v3608 = vpop.f32.mrb[0].mxu0
        %v3609 = vadd.f32 0.0, %v3608
        %v3610 = vpop.f32.mrb[0].mxu0
        %v3611 = vpop.f32.mrb[0].mxu0
        %3612 = vdwg.mxu0
        %3613 = vmatprep.subr.bf16.mxu0 %v3558
        %3614 = vmatpush1.bf16.msra.mxu0 %v3555
        %3615 = vmatprep.subr.bf16.mxu0 0
        %3616 = vmatpush1.bf16.msra.mxu0 0
        %3617 = vmatprep.subr.bf16.mxu0 0
        %3618 = vmatpush1.bf16.msra.mxu0 0
        %3619 = vmatprep.subr.bf16.mxu0 0
        %3620 = vmatpush1.bf16.msra.mxu0 0
        %3621 = vmatprep.subr.bf16.mxu0 0
        %3622 = vmatpush1.bf16.msra.mxu0 0
        %3623 = vmatprep.subr.bf16.mxu0 0
        %3624 = vmatpush1.bf16.msra.mxu0 0
        %3625 = vmatprep.subr.bf16.mxu0 0
        %3626 = vmatpush1.bf16.msra.mxu0 0
        %3627 = vmatprep.subr.bf16.mxu0 0
        %3628 = vmatpush1.bf16.msra.mxu0 0
        %3629 = vmatprep.subr.bf16.mxu0 0
        %3630 = vmatpush1.bf16.msra.mxu0 0
        %3631 = vmatprep.subr.bf16.mxu0 0
        %3632 = vmatpush1.bf16.msra.mxu0 0
        %3633 = vmatprep.subr.bf16.mxu0 0
        %3634 = vmatpush1.bf16.msra.mxu0 0
        %3635 = vmatprep.subr.bf16.mxu0 0
        %3636 = vmatpush1.bf16.msra.mxu0 0
        %3637 = vmatprep.subr.bf16.mxu0 0
        %3638 = vmatpush1.bf16.msra.mxu0 0
        %3639 = vmatprep.subr.bf16.mxu0 0
        %3640 = vmatpush1.bf16.msra.mxu0 0
        %3641 = vmatprep.subr.bf16.mxu0 0
        %3642 = vmatpush1.bf16.msra.mxu0 0
        %3643 = vmatprep.subr.bf16.mxu0 0
        %3644 = vmatpush1.bf16.msra.mxu0 0
        %3645 = vmatprep.mubr.bf16.mxu0 0
        %3646 = vmatmul.mubr.bf16.gmra.mrb[0].mxu0 %v3546
        %v3647 = vpop.f32.mrb[0].mxu0
        %v3648 = vadd.f32 0.0, %v3647
        %v3649 = vpop.f32.mrb[0].mxu0
        %v3650 = vadd.f32 0.0, %v3649
        %v3651 = vpop.f32.mrb[0].mxu0
        %v3652 = vpop.f32.mrb[0].mxu0
        %3653 = vdwg.mxu0
        %3654 = vmatprep.subr.bf16.mxu0 %v3564
        %3655 = vmatpush1.bf16.msra.mxu0 %v3561
        %3656 = vmatprep.subr.bf16.mxu0 0
        %3657 = vmatpush1.bf16.msra.mxu0 0
        %3658 = vmatprep.subr.bf16.mxu0 0
        %3659 = vmatpush1.bf16.msra.mxu0 0
        %3660 = vmatprep.subr.bf16.mxu0 0
        %3661 = vmatpush1.bf16.msra.mxu0 0
        %3662 = vmatprep.subr.bf16.mxu0 0
        %3663 = vmatpush1.bf16.msra.mxu0 0
        %3664 = vmatprep.subr.bf16.mxu0 0
        %3665 = vmatpush1.bf16.msra.mxu0 0
        %3666 = vmatprep.subr.bf16.mxu0 0
        %3667 = vmatpush1.bf16.msra.mxu0 0
        %3668 = vmatprep.subr.bf16.mxu0 0
        %3669 = vmatpush1.bf16.msra.mxu0 0
        %3670 = vmatprep.subr.bf16.mxu0 0
        %3671 = vmatpush1.bf16.msra.mxu0 0
        %3672 = vmatprep.subr.bf16.mxu0 0
        %3673 = vmatpush1.bf16.msra.mxu0 0
        %3674 = vmatprep.subr.bf16.mxu0 0
        %3675 = vmatpush1.bf16.msra.mxu0 0
        %3676 = vmatprep.subr.bf16.mxu0 0
        %3677 = vmatpush1.bf16.msra.mxu0 0
        %3678 = vmatprep.subr.bf16.mxu0 0
        %3679 = vmatpush1.bf16.msra.mxu0 0
        %3680 = vmatprep.subr.bf16.mxu0 0
        %3681 = vmatpush1.bf16.msra.mxu0 0
        %3682 = vmatprep.subr.bf16.mxu0 0
        %3683 = vmatpush1.bf16.msra.mxu0 0
        %3684 = vmatprep.subr.bf16.mxu0 0
        %3685 = vmatpush1.bf16.msra.mxu0 0
        %3686 = vmatprep.mubr.bf16.mxu0 0
        %3687 = vmatmul.mubr.bf16.gmra.mrb[0].mxu0 %v3546
        %v3688 = vpop.f32.mrb[0].mxu0
        %v3689 = vadd.f32 0.0, %v3688
        %v3690 = vpop.f32.mrb[0].mxu0
        %v3691 = vadd.f32 0.0, %v3690
        %v3692 = vpop.f32.mrb[0].mxu0
        %v3693 = vpop.f32.mrb[0].mxu0
        %3694 = vdwg.mxu0
        %3695 = vmatprep.subr.bf16.mxu0 %v3570
        %3696 = vmatpush1.bf16.msra.mxu0 %v3567
        %3697 = vmatprep.subr.bf16.mxu0 0
        %3698 = vmatpush1.bf16.msra.mxu0 0
        %3699 = vmatprep.subr.bf16.mxu0 0
        %3700 = vmatpush1.bf16.msra.mxu0 0
        %3701 = vmatprep.subr.bf16.mxu0 0
        %3702 = vmatpush1.bf16.msra.mxu0 0
        %3703 = vmatprep.subr.bf16.mxu0 0
        %3704 = vmatpush1.bf16.msra.mxu0 0
        %3705 = vmatprep.subr.bf16.mxu0 0
        %3706 = vmatpush1.bf16.msra.mxu0 0
        %3707 = vmatprep.subr.bf16.mxu0 0
        %3708 = vmatpush1.bf16.msra.mxu0 0
        %3709 = vmatprep.subr.bf16.mxu0 0
        %3710 = vmatpush1.bf16.msra.mxu0 0
        %3711 = vmatprep.subr.bf16.mxu0 0
        %3712 = vmatpush1.bf16.msra.mxu0 0
        %3713 = vmatprep.subr.bf16.mxu0 0
        %3714 = vmatpush1.bf16.msra.mxu0 0
        %3715 = vmatprep.subr.bf16.mxu0 0
        %3716 = vmatpush1.bf16.msra.mxu0 0
        %3717 = vmatprep.subr.bf16.mxu0 0
        %3718 = vmatpush1.bf16.msra.mxu0 0
        %3719 = vmatprep.subr.bf16.mxu0 0
        %3720 = vmatpush1.bf16.msra.mxu0 0
        %3721 = vmatprep.subr.bf16.mxu0 0
        %3722 = vmatpush1.bf16.msra.mxu0 0
        %3723 = vmatprep.subr.bf16.mxu0 0
        %3724 = vmatpush1.bf16.msra.mxu0 0
        %3725 = vmatprep.subr.bf16.mxu0 0
        %3726 = vmatpush1.bf16.msra.mxu0 0
        %3727 = vmatprep.mubr.bf16.mxu0 0
        %3728 = vmatmul.mubr.bf16.gmra.mrb[0].mxu0 %v3546
        %v3729 = vpop.f32.mrb[0].mxu0
        %v3730 = vadd.f32 0.0, %v3729
        %v3731 = vpop.f32.mrb[0].mxu0
        %v3732 = vadd.f32 0.0, %v3731
        %v3733 = vpop.f32.mrb[0].mxu0
        %v3734 = vpop.f32.mrb[0].mxu0
        %3735 = vdwg.mxu0
        %v3736 = vadd.f32 %v3457, %v3607
        %v3737 = vadd.f32 %v3458, %v3609
        %v3738 = vadd.f32 %v3459, %v3648
        %v3739 = vadd.f32 %v3460, %v3650
        %v3740 = vadd.f32 %v3461, %v3689
        %v3741 = vadd.f32 %v3462, %v3691
        %v3742 = vadd.f32 %v3463, %v3730
        %v3743 = vadd.f32 %v3464, %v3732
        %v3744 = vadd.f32 %v3736, %v3737
        %v3745 = vadd.f32 %v3744, %v3738
        %v3746 = vadd.f32 %v3745, %v3739
        %v3747 = vadd.f32 %v3746, %v3740
        %v3748 = vadd.f32 %v3747, %v3741
        %v3749 = vadd.f32 %v3748, %v3742
        %v3750 = vadd.f32 %v3749, %v3743
        %3751 = vadd.xlane.f32.xlu0 %v3750
        %v3752 = vpop.xlane.xlu0 %3751
        %v3753 = vrcp.pop 1024.0
        %v3754 = vmul.f32 %v3752, %v3753
        %v3755 = vsub.f32 %v3736, %v3754
        %v3756 = vsub.f32 %v3737, %v3754
        %v3757 = vsub.f32 %v3738, %v3754
        %v3758 = vsub.f32 %v3739, %v3754
        %v3759 = vsub.f32 %v3740, %v3754
        %v3760 = vsub.f32 %v3741, %v3754
        %v3761 = vsub.f32 %v3742, %v3754
        %v3762 = vsub.f32 %v3743, %v3754
        %v3763 = vmul.f32 %v3755, %v3755
        %v3764 = vmul.f32 %v3756, %v3756
        %v3765 = vmul.f32 %v3757, %v3757
        %v3766 = vmul.f32 %v3758, %v3758
        %v3767 = vmul.f32 %v3759, %v3759
        %v3768 = vmul.f32 %v3760, %v3760
        %v3769 = vmul.f32 %v3761, %v3761
        %v3770 = vmul.f32 %v3762, %v3762
        %v3771 = vadd.f32 %v3763, %v3764
        %v3772 = vadd.f32 %v3771, %v3765
        %v3773 = vadd.f32 %v3772, %v3766
        %v3774 = vadd.f32 %v3773, %v3767
        %v3775 = vadd.f32 %v3774, %v3768
        %v3776 = vadd.f32 %v3775, %v3769
        %v3777 = vadd.f32 %v3776, %v3770
        %3778 = vadd.xlane.f32.xlu0 %v3777
        %v3779 = vpop.xlane.xlu0 %3778
        %v3780 = vmul.f32 %v3779, %v3753
        %v3781 = vadd.f32 %v3780, 1e-05
        %v3782 = vrsqrt.pop %v3781
        %v3783 = vmul.f32 %v3755, %v3782
        %v3784 = vmul.f32 %v3756, %v3782
        %v3785 = vmul.f32 %v3757, %v3782
        %v3786 = vmul.f32 %v3758, %v3782
        %v3787 = vmul.f32 %v3759, %v3782
        %v3788 = vmul.f32 %v3760, %v3782
        %v3789 = vmul.f32 %v3761, %v3782
        %v3790 = vmul.f32 %v3762, %v3782
        %v3791 = vmax.f32 %v3783, 0.0
        %v3792 = vmax.f32 %v3784, 0.0
        %v3793 = vmax.f32 %v3785, 0.0
        %v3794 = vmax.f32 %v3786, 0.0
        %v3795 = vmax.f32 %v3787, 0.0
        %v3796 = vmax.f32 %v3788, 0.0
        %v3797 = vmax.f32 %v3789, 0.0
        %v3798 = vmax.f32 %v3790, 0.0
        %3799 = vst [vmem:[#allocation2] sm:$0xf] 0
        %3800 = vst [vmem:[#allocation2 + $0x24] sm:$0xf] 0
        %v3801 = vpack.c.bf16 %v3791, %v3791
        %v3802 = vpack.c.bf16 %v3792, %v3792
        %v3803 = vpack.c.bf16 %v3793, %v3793
        %v3804 = vpack.c.bf16 %v3794, %v3794
        %v3805 = vpack.c.bf16 %v3795, %v3795
        %v3806 = vpack.c.bf16 %v3796, %v3796
        %v3807 = vpack.c.bf16 %v3797, %v3797
        %v3808 = vpack.c.bf16 %v3798, %v3798
        %v3817 = vunpack.c.l.b16 %v3801
        %v3818 = vunpack.c.l.b16 %v3802
        %v3819 = vunpack.c.l.b16 %v3803
        %v3820 = vunpack.c.l.b16 %v3804
        %v3821 = vunpack.c.l.b16 %v3805
        %v3822 = vunpack.c.l.b16 %v3806
        %v3823 = vunpack.c.l.b16 %v3807
        %v3824 = vunpack.c.l.b16 %v3808
        %v3825 = vpack.c.b16 %v3818, %v3817
        %v3826 = vpack.c.b16 %v3820, %v3819
        %v3827 = vpack.c.b16 %v3822, %v3821
        %v3828 = vpack.c.b16 %v3824, %v3823
        %3833 = vst [vmem:[#allocation2 + $0x4] sm:$0xff] %v3825
        %3834 = vst [vmem:[#allocation2 + $0xc] sm:$0xff] %v3826
        %3835 = vst [vmem:[#allocation2 + $0x14] sm:$0xff] %v3827
        %3836 = vst [vmem:[#allocation2 + $0x1c] sm:$0xff] %v3828
        %v3837 = vld [vmem:[#allocation2] sm:$0xff]
        %v3838 = vld [vmem:[#allocation2 + $0x8] sm:$0xff]
        %v3839 = vld [vmem:[#allocation2 + $0x10] sm:$0xff]
        %v3840 = vld [vmem:[#allocation2 + $0x18] sm:$0xff]
        %v3841 = vld [vmem:[#allocation2 + $0x20] sm:$0xf]
        %v3842 = vsel %vm1343, %v3837, 0
        %v3843 = vsel %vm1344, %v3838, 0
        %v3844 = vsel %vm1345, %v3839, 0
        %v3845 = vsel %vm1346, %v3840, 0
        %v3846 = vsel %vm1347, %v3841, 0
        %v3847 = vld [vmem:[%s4] sm:$0xf]
        %s3848 = scalar_lea.vmem %s4, 4
        %v3849 = vld [vmem:[%s3848] sm:$0xf]
        %v3855 = vunpack.c.l.b16 %v3837
        %v3856 = vunpack.c.h.b16 %v3837
        %v3857 = vunpack.c.l.b16 %v3838
        %v3858 = vunpack.c.h.b16 %v3838
        %v3859 = vunpack.c.l.b16 %v3839
        %v3860 = vunpack.c.h.b16 %v3839
        %v3861 = vunpack.c.l.b16 %v3840
        %v3862 = vunpack.c.h.b16 %v3840
        %v3863 = vunpack.c.l.b16 %v3841
        %v3864 = vpack.c.b16 %v3855, %v3855
        %v3865 = vpack.c.b16 %v3856, %v3856
        %v3866 = vpack.c.b16 %v3857, %v3857
        %v3867 = vpack.c.b16 %v3858, %v3858
        %v3868 = vpack.c.b16 %v3859, %v3859
        %v3869 = vpack.c.b16 %v3860, %v3860
        %v3870 = vpack.c.b16 %v3861, %v3861
        %v3871 = vpack.c.b16 %v3862, %v3862
        %v3872 = vpack.c.b16 %v3863, %v3863
        %3873 = vrot.lane.b32.xlu0 %v3864, 32
        %v3874 = vpop.permute.xlu0 %3873
        %3875 = vrot.lane.b32.xlu0 %v3865, 32
        %v3876 = vpop.permute.xlu0 %3875
        %3877 = vrot.lane.b32.xlu0 %v3866, 32
        %v3878 = vpop.permute.xlu0 %3877
        %3879 = vrot.lane.b32.xlu0 %v3867, 32
        %v3880 = vpop.permute.xlu0 %3879
        %3881 = vrot.lane.b32.xlu0 %v3868, 32
        %v3882 = vpop.permute.xlu0 %3881
        %3883 = vrot.lane.b32.xlu0 %v3869, 32
        %v3884 = vpop.permute.xlu0 %3883
        %3885 = vrot.lane.b32.xlu0 %v3870, 32
        %v3886 = vpop.permute.xlu0 %3885
        %3887 = vrot.lane.b32.xlu0 %v3871, 32
        %v3888 = vpop.permute.xlu0 %3887
        %3889 = vrot.lane.b32.xlu0 %v3872, 32
        %v3890 = vpop.permute.xlu0 %3889
        %v3891 = vsel %vm1397, %v3874, %v3876
        %v3892 = vsel %vm1397, %v3876, %v3878
        %v3893 = vsel %vm1397, %v3878, %v3880
        %v3894 = vsel %vm1397, %v3880, %v3882
        %v3895 = vsel %vm1397, %v3882, %v3884
        %v3896 = vsel %vm1397, %v3884, %v3886
        %v3897 = vsel %vm1397, %v3886, %v3888
        %v3898 = vsel %vm1397, %v3888, %v3890
        %vm3899 = vcmask 64512
        %v3901 = vsel %vm3899, %v3849, 0
        %vm3903 = vcmask 1043456
        %v3905 = vsel %vm3903, %v3891, 0
        %v3908 = vsel %vm3903, %v3892, 0
        %v3911 = vsel %vm3903, %v3893, 0
        %v3914 = vsel %vm3903, %v3894, 0
        %v3917 = vsel %vm3903, %v3895, 0
        %v3920 = vsel %vm3903, %v3896, 0
        %v3923 = vsel %vm3903, %v3897, 0
        %v3926 = vsel %vm3903, %v3898, 0
        %3928 = vmatprep.subr.bf16.mxu0 %v3908
        %3929 = vmatpush1.bf16.msra.mxu0 %v3905
        %3930 = vmatprep.subr.bf16.mxu0 0
        %3931 = vmatpush1.bf16.msra.mxu0 0
        %3932 = vmatprep.subr.bf16.mxu0 0
        %3933 = vmatpush1.bf16.msra.mxu0 0
        %3934 = vmatprep.subr.bf16.mxu0 0
        %3935 = vmatpush1.bf16.msra.mxu0 0
        %3936 = vmatprep.subr.bf16.mxu0 0
        %3937 = vmatpush1.bf16.msra.mxu0 0
        %3938 = vmatprep.subr.bf16.mxu0 0
        %3939 = vmatpush1.bf16.msra.mxu0 0
        %3940 = vmatprep.subr.bf16.mxu0 0
        %3941 = vmatpush1.bf16.msra.mxu0 0
        %3942 = vmatprep.subr.bf16.mxu0 0
        %3943 = vmatpush1.bf16.msra.mxu0 0
        %3944 = vmatprep.subr.bf16.mxu0 0
        %3945 = vmatpush1.bf16.msra.mxu0 0
        %3946 = vmatprep.subr.bf16.mxu0 0
        %3947 = vmatpush1.bf16.msra.mxu0 0
        %3948 = vmatprep.subr.bf16.mxu0 0
        %3949 = vmatpush1.bf16.msra.mxu0 0
        %3950 = vmatprep.subr.bf16.mxu0 0
        %3951 = vmatpush1.bf16.msra.mxu0 0
        %3952 = vmatprep.subr.bf16.mxu0 0
        %3953 = vmatpush1.bf16.msra.mxu0 0
        %3954 = vmatprep.subr.bf16.mxu0 0
        %3955 = vmatpush1.bf16.msra.mxu0 0
        %3956 = vmatprep.subr.bf16.mxu0 0
        %3957 = vmatpush1.bf16.msra.mxu0 0
        %3958 = vmatprep.subr.bf16.mxu0 0
        %3959 = vmatpush1.bf16.msra.mxu0 0
        %3960 = vmatprep.mubr.bf16.mxu0 0
        %3961 = vmatmul.mubr.bf16.gmra.mrb[0].mxu0 %v3901
        %v3962 = vpop.f32.mrb[0].mxu0
        %v3963 = vadd.f32 0.0, %v3962
        %v3964 = vpop.f32.mrb[0].mxu0
        %v3965 = vadd.f32 0.0, %v3964
        %v3966 = vpop.f32.mrb[0].mxu0
        %v3967 = vpop.f32.mrb[0].mxu0
        %3968 = vdwg.mxu0
        %3969 = vmatprep.subr.bf16.mxu0 %v3914
        %3970 = vmatpush1.bf16.msra.mxu0 %v3911
        %3971 = vmatprep.subr.bf16.mxu0 0
        %3972 = vmatpush1.bf16.msra.mxu0 0
        %3973 = vmatprep.subr.bf16.mxu0 0
        %3974 = vmatpush1.bf16.msra.mxu0 0
        %3975 = vmatprep.subr.bf16.mxu0 0
        %3976 = vmatpush1.bf16.msra.mxu0 0
        %3977 = vmatprep.subr.bf16.mxu0 0
        %3978 = vmatpush1.bf16.msra.mxu0 0
        %3979 = vmatprep.subr.bf16.mxu0 0
        %3980 = vmatpush1.bf16.msra.mxu0 0
        %3981 = vmatprep.subr.bf16.mxu0 0
        %3982 = vmatpush1.bf16.msra.mxu0 0
        %3983 = vmatprep.subr.bf16.mxu0 0
        %3984 = vmatpush1.bf16.msra.mxu0 0
        %3985 = vmatprep.subr.bf16.mxu0 0
        %3986 = vmatpush1.bf16.msra.mxu0 0
        %3987 = vmatprep.subr.bf16.mxu0 0
        %3988 = vmatpush1.bf16.msra.mxu0 0
        %3989 = vmatprep.subr.bf16.mxu0 0
        %3990 = vmatpush1.bf16.msra.mxu0 0
        %3991 = vmatprep.subr.bf16.mxu0 0
        %3992 = vmatpush1.bf16.msra.mxu0 0
        %3993 = vmatprep.subr.bf16.mxu0 0
        %3994 = vmatpush1.bf16.msra.mxu0 0
        %3995 = vmatprep.subr.bf16.mxu0 0
        %3996 = vmatpush1.bf16.msra.mxu0 0
        %3997 = vmatprep.subr.bf16.mxu0 0
        %3998 = vmatpush1.bf16.msra.mxu0 0
        %3999 = vmatprep.subr.bf16.mxu0 0
        %4000 = vmatpush1.bf16.msra.mxu0 0
        %4001 = vmatprep.mubr.bf16.mxu0 0
        %4002 = vmatmul.mubr.bf16.gmra.mrb[0].mxu0 %v3901
        %v4003 = vpop.f32.mrb[0].mxu0
        %v4004 = vadd.f32 0.0, %v4003
        %v4005 = vpop.f32.mrb[0].mxu0
        %v4006 = vadd.f32 0.0, %v4005
        %v4007 = vpop.f32.mrb[0].mxu0
        %v4008 = vpop.f32.mrb[0].mxu0
        %4009 = vdwg.mxu0
        %4010 = vmatprep.subr.bf16.mxu0 %v3920
        %4011 = vmatpush1.bf16.msra.mxu0 %v3917
        %4012 = vmatprep.subr.bf16.mxu0 0
        %4013 = vmatpush1.bf16.msra.mxu0 0
        %4014 = vmatprep.subr.bf16.mxu0 0
        %4015 = vmatpush1.bf16.msra.mxu0 0
        %4016 = vmatprep.subr.bf16.mxu0 0
        %4017 = vmatpush1.bf16.msra.mxu0 0
        %4018 = vmatprep.subr.bf16.mxu0 0
        %4019 = vmatpush1.bf16.msra.mxu0 0
        %4020 = vmatprep.subr.bf16.mxu0 0
        %4021 = vmatpush1.bf16.msra.mxu0 0
        %4022 = vmatprep.subr.bf16.mxu0 0
        %4023 = vmatpush1.bf16.msra.mxu0 0
        %4024 = vmatprep.subr.bf16.mxu0 0
        %4025 = vmatpush1.bf16.msra.mxu0 0
        %4026 = vmatprep.subr.bf16.mxu0 0
        %4027 = vmatpush1.bf16.msra.mxu0 0
        %4028 = vmatprep.subr.bf16.mxu0 0
        %4029 = vmatpush1.bf16.msra.mxu0 0
        %4030 = vmatprep.subr.bf16.mxu0 0
        %4031 = vmatpush1.bf16.msra.mxu0 0
        %4032 = vmatprep.subr.bf16.mxu0 0
        %4033 = vmatpush1.bf16.msra.mxu0 0
        %4034 = vmatprep.subr.bf16.mxu0 0
        %4035 = vmatpush1.bf16.msra.mxu0 0
        %4036 = vmatprep.subr.bf16.mxu0 0
        %4037 = vmatpush1.bf16.msra.mxu0 0
        %4038 = vmatprep.subr.bf16.mxu0 0
        %4039 = vmatpush1.bf16.msra.mxu0 0
        %4040 = vmatprep.subr.bf16.mxu0 0
        %4041 = vmatpush1.bf16.msra.mxu0 0
        %4042 = vmatprep.mubr.bf16.mxu0 0
        %4043 = vmatmul.mubr.bf16.gmra.mrb[0].mxu0 %v3901
        %v4044 = vpop.f32.mrb[0].mxu0
        %v4045 = vadd.f32 0.0, %v4044
        %v4046 = vpop.f32.mrb[0].mxu0
        %v4047 = vadd.f32 0.0, %v4046
        %v4048 = vpop.f32.mrb[0].mxu0
        %v4049 = vpop.f32.mrb[0].mxu0
        %4050 = vdwg.mxu0
        %4051 = vmatprep.subr.bf16.mxu0 %v3926
        %4052 = vmatpush1.bf16.msra.mxu0 %v3923
        %4053 = vmatprep.subr.bf16.mxu0 0
        %4054 = vmatpush1.bf16.msra.mxu0 0
        %4055 = vmatprep.subr.bf16.mxu0 0
        %4056 = vmatpush1.bf16.msra.mxu0 0
        %4057 = vmatprep.subr.bf16.mxu0 0
        %4058 = vmatpush1.bf16.msra.mxu0 0
        %4059 = vmatprep.subr.bf16.mxu0 0
        %4060 = vmatpush1.bf16.msra.mxu0 0
        %4061 = vmatprep.subr.bf16.mxu0 0
        %4062 = vmatpush1.bf16.msra.mxu0 0
        %4063 = vmatprep.subr.bf16.mxu0 0
        %4064 = vmatpush1.bf16.msra.mxu0 0
        %4065 = vmatprep.subr.bf16.mxu0 0
        %4066 = vmatpush1.bf16.msra.mxu0 0
        %4067 = vmatprep.subr.bf16.mxu0 0
        %4068 = vmatpush1.bf16.msra.mxu0 0
        %4069 = vmatprep.subr.bf16.mxu0 0
        %4070 = vmatpush1.bf16.msra.mxu0 0
        %4071 = vmatprep.subr.bf16.mxu0 0
        %4072 = vmatpush1.bf16.msra.mxu0 0
        %4073 = vmatprep.subr.bf16.mxu0 0
        %4074 = vmatpush1.bf16.msra.mxu0 0
        %4075 = vmatprep.subr.bf16.mxu0 0
        %4076 = vmatpush1.bf16.msra.mxu0 0
        %4077 = vmatprep.subr.bf16.mxu0 0
        %4078 = vmatpush1.bf16.msra.mxu0 0
        %4079 = vmatprep.subr.bf16.mxu0 0
        %4080 = vmatpush1.bf16.msra.mxu0 0
        %4081 = vmatprep.subr.bf16.mxu0 0
        %4082 = vmatpush1.bf16.msra.mxu0 0
        %4083 = vmatprep.mubr.bf16.mxu0 0
        %4084 = vmatmul.mubr.bf16.gmra.mrb[0].mxu0 %v3901
        %v4085 = vpop.f32.mrb[0].mxu0
        %v4086 = vadd.f32 0.0, %v4085
        %v4087 = vpop.f32.mrb[0].mxu0
        %v4088 = vadd.f32 0.0, %v4087
        %v4089 = vpop.f32.mrb[0].mxu0
        %v4090 = vpop.f32.mrb[0].mxu0
        %4091 = vdwg.mxu0
        %v4097 = vunpack.c.l.b16 %v3842
        %v4098 = vunpack.c.h.b16 %v3842
        %v4099 = vunpack.c.l.b16 %v3843
        %v4100 = vunpack.c.h.b16 %v3843
        %v4101 = vunpack.c.l.b16 %v3844
        %v4102 = vunpack.c.h.b16 %v3844
        %v4103 = vunpack.c.l.b16 %v3845
        %v4104 = vunpack.c.h.b16 %v3845
        %v4105 = vunpack.c.l.b16 %v3846
        %v4106 = vpack.c.b16 %v4097, %v4097
        %v4107 = vpack.c.b16 %v4098, %v4098
        %v4108 = vpack.c.b16 %v4099, %v4099
        %v4109 = vpack.c.b16 %v4100, %v4100
        %v4110 = vpack.c.b16 %v4101, %v4101
        %v4111 = vpack.c.b16 %v4102, %v4102
        %v4112 = vpack.c.b16 %v4103, %v4103
        %v4113 = vpack.c.b16 %v4104, %v4104
        %v4114 = vpack.c.b16 %v4105, %v4105
        %4115 = vrot.lane.b32.xlu0 %v4106, 33
        %v4116 = vpop.permute.xlu0 %4115
        %4117 = vrot.lane.b32.xlu0 %v4107, 33
        %v4118 = vpop.permute.xlu0 %4117
        %4119 = vrot.lane.b32.xlu0 %v4108, 33
        %v4120 = vpop.permute.xlu0 %4119
        %4121 = vrot.lane.b32.xlu0 %v4109, 33
        %v4122 = vpop.permute.xlu0 %4121
        %4123 = vrot.lane.b32.xlu0 %v4110, 33
        %v4124 = vpop.permute.xlu0 %4123
        %4125 = vrot.lane.b32.xlu0 %v4111, 33
        %v4126 = vpop.permute.xlu0 %4125
        %4127 = vrot.lane.b32.xlu0 %v4112, 33
        %v4128 = vpop.permute.xlu0 %4127
        %4129 = vrot.lane.b32.xlu0 %v4113, 33
        %v4130 = vpop.permute.xlu0 %4129
        %4131 = vrot.lane.b32.xlu0 %v4114, 33
        %v4132 = vpop.permute.xlu0 %4131
        %v4133 = vsel %vm1640, %v4116, %v4118
        %v4134 = vsel %vm1640, %v4118, %v4120
        %v4135 = vsel %vm1640, %v4120, %v4122
        %v4136 = vsel %vm1640, %v4122, %v4124
        %v4137 = vsel %vm1640, %v4124, %v4126
        %v4138 = vsel %vm1640, %v4126, %v4128
        %v4139 = vsel %vm1640, %v4128, %v4130
        %v4140 = vsel %vm1640, %v4130, %v4132
        %v4142 = vsel %vm3899, %v3847, 0
        %v4145 = vsel %vm3903, %v4133, 0
        %v4148 = vsel %vm3903, %v4134, 0
        %v4151 = vsel %vm3903, %v4135, 0
        %v4154 = vsel %vm3903, %v4136, 0
        %v4157 = vsel %vm3903, %v4137, 0
        %v4160 = vsel %vm3903, %v4138, 0
        %v4163 = vsel %vm3903, %v4139, 0
        %v4166 = vsel %vm3903, %v4140, 0
        %4168 = vmatprep.subr.bf16.mxu0 %v4148
        %4169 = vmatpush1.bf16.msra.mxu0 %v4145
        %4170 = vmatprep.subr.bf16.mxu0 0
        %4171 = vmatpush1.bf16.msra.mxu0 0
        %4172 = vmatprep.subr.bf16.mxu0 0
        %4173 = vmatpush1.bf16.msra.mxu0 0
        %4174 = vmatprep.subr.bf16.mxu0 0
        %4175 = vmatpush1.bf16.msra.mxu0 0
        %4176 = vmatprep.subr.bf16.mxu0 0
        %4177 = vmatpush1.bf16.msra.mxu0 0
        %4178 = vmatprep.subr.bf16.mxu0 0
        %4179 = vmatpush1.bf16.msra.mxu0 0
        %4180 = vmatprep.subr.bf16.mxu0 0
        %4181 = vmatpush1.bf16.msra.mxu0 0
        %4182 = vmatprep.subr.bf16.mxu0 0
        %4183 = vmatpush1.bf16.msra.mxu0 0
        %4184 = vmatprep.subr.bf16.mxu0 0
        %4185 = vmatpush1.bf16.msra.mxu0 0
        %4186 = vmatprep.subr.bf16.mxu0 0
        %4187 = vmatpush1.bf16.msra.mxu0 0
        %4188 = vmatprep.subr.bf16.mxu0 0
        %4189 = vmatpush1.bf16.msra.mxu0 0
        %4190 = vmatprep.subr.bf16.mxu0 0
        %4191 = vmatpush1.bf16.msra.mxu0 0
        %4192 = vmatprep.subr.bf16.mxu0 0
        %4193 = vmatpush1.bf16.msra.mxu0 0
        %4194 = vmatprep.subr.bf16.mxu0 0
        %4195 = vmatpush1.bf16.msra.mxu0 0
        %4196 = vmatprep.subr.bf16.mxu0 0
        %4197 = vmatpush1.bf16.msra.mxu0 0
        %4198 = vmatprep.subr.bf16.mxu0 0
        %4199 = vmatpush1.bf16.msra.mxu0 0
        %4200 = vmatprep.mubr.bf16.mxu0 0
        %4201 = vmatmul.mubr.bf16.gmra.mrb[0].mxu0 %v4142
        %v4202 = vpop.f32.mrb[0].mxu0
        %v4203 = vadd.f32 %v3963, %v4202
        %v4204 = vpop.f32.mrb[0].mxu0
        %v4205 = vadd.f32 %v3965, %v4204
        %v4206 = vpop.f32.mrb[0].mxu0
        %v4207 = vpop.f32.mrb[0].mxu0
        %4208 = vdwg.mxu0
        %4209 = vmatprep.subr.bf16.mxu0 %v4154
        %4210 = vmatpush1.bf16.msra.mxu0 %v4151
        %4211 = vmatprep.subr.bf16.mxu0 0
        %4212 = vmatpush1.bf16.msra.mxu0 0
        %4213 = vmatprep.subr.bf16.mxu0 0
        %4214 = vmatpush1.bf16.msra.mxu0 0
        %4215 = vmatprep.subr.bf16.mxu0 0
        %4216 = vmatpush1.bf16.msra.mxu0 0
        %4217 = vmatprep.subr.bf16.mxu0 0
        %4218 = vmatpush1.bf16.msra.mxu0 0
        %4219 = vmatprep.subr.bf16.mxu0 0
        %4220 = vmatpush1.bf16.msra.mxu0 0
        %4221 = vmatprep.subr.bf16.mxu0 0
        %4222 = vmatpush1.bf16.msra.mxu0 0
        %4223 = vmatprep.subr.bf16.mxu0 0
        %4224 = vmatpush1.bf16.msra.mxu0 0
        %4225 = vmatprep.subr.bf16.mxu0 0
        %4226 = vmatpush1.bf16.msra.mxu0 0
        %4227 = vmatprep.subr.bf16.mxu0 0
        %4228 = vmatpush1.bf16.msra.mxu0 0
        %4229 = vmatprep.subr.bf16.mxu0 0
        %4230 = vmatpush1.bf16.msra.mxu0 0
        %4231 = vmatprep.subr.bf16.mxu0 0
        %4232 = vmatpush1.bf16.msra.mxu0 0
        %4233 = vmatprep.subr.bf16.mxu0 0
        %4234 = vmatpush1.bf16.msra.mxu0 0
        %4235 = vmatprep.subr.bf16.mxu0 0
        %4236 = vmatpush1.bf16.msra.mxu0 0
        %4237 = vmatprep.subr.bf16.mxu0 0
        %4238 = vmatpush1.bf16.msra.mxu0 0
        %4239 = vmatprep.subr.bf16.mxu0 0
        %4240 = vmatpush1.bf16.msra.mxu0 0
        %4241 = vmatprep.mubr.bf16.mxu0 0
        %4242 = vmatmul.mubr.bf16.gmra.mrb[0].mxu0 %v4142
        %v4243 = vpop.f32.mrb[0].mxu0
        %v4244 = vadd.f32 %v4004, %v4243
        %v4245 = vpop.f32.mrb[0].mxu0
        %v4246 = vadd.f32 %v4006, %v4245
        %v4247 = vpop.f32.mrb[0].mxu0
        %v4248 = vpop.f32.mrb[0].mxu0
        %4249 = vdwg.mxu0
        %4250 = vmatprep.subr.bf16.mxu0 %v4160
        %4251 = vmatpush1.bf16.msra.mxu0 %v4157
        %4252 = vmatprep.subr.bf16.mxu0 0
        %4253 = vmatpush1.bf16.msra.mxu0 0
        %4254 = vmatprep.subr.bf16.mxu0 0
        %4255 = vmatpush1.bf16.msra.mxu0 0
        %4256 = vmatprep.subr.bf16.mxu0 0
        %4257 = vmatpush1.bf16.msra.mxu0 0
        %4258 = vmatprep.subr.bf16.mxu0 0
        %4259 = vmatpush1.bf16.msra.mxu0 0
        %4260 = vmatprep.subr.bf16.mxu0 0
        %4261 = vmatpush1.bf16.msra.mxu0 0
        %4262 = vmatprep.subr.bf16.mxu0 0
        %4263 = vmatpush1.bf16.msra.mxu0 0
        %4264 = vmatprep.subr.bf16.mxu0 0
        %4265 = vmatpush1.bf16.msra.mxu0 0
        %4266 = vmatprep.subr.bf16.mxu0 0
        %4267 = vmatpush1.bf16.msra.mxu0 0
        %4268 = vmatprep.subr.bf16.mxu0 0
        %4269 = vmatpush1.bf16.msra.mxu0 0
        %4270 = vmatprep.subr.bf16.mxu0 0
        %4271 = vmatpush1.bf16.msra.mxu0 0
        %4272 = vmatprep.subr.bf16.mxu0 0
        %4273 = vmatpush1.bf16.msra.mxu0 0
        %4274 = vmatprep.subr.bf16.mxu0 0
        %4275 = vmatpush1.bf16.msra.mxu0 0
        %4276 = vmatprep.subr.bf16.mxu0 0
        %4277 = vmatpush1.bf16.msra.mxu0 0
        %4278 = vmatprep.subr.bf16.mxu0 0
        %4279 = vmatpush1.bf16.msra.mxu0 0
        %4280 = vmatprep.subr.bf16.mxu0 0
        %4281 = vmatpush1.bf16.msra.mxu0 0
        %4282 = vmatprep.mubr.bf16.mxu0 0
        %4283 = vmatmul.mubr.bf16.gmra.mrb[0].mxu0 %v4142
        %v4284 = vpop.f32.mrb[0].mxu0
        %v4285 = vadd.f32 %v4045, %v4284
        %v4286 = vpop.f32.mrb[0].mxu0
        %v4287 = vadd.f32 %v4047, %v4286
        %v4288 = vpop.f32.mrb[0].mxu0
        %v4289 = vpop.f32.mrb[0].mxu0
        %4290 = vdwg.mxu0
        %4291 = vmatprep.subr.bf16.mxu0 %v4166
        %4292 = vmatpush1.bf16.msra.mxu0 %v4163
        %4293 = vmatprep.subr.bf16.mxu0 0
        %4294 = vmatpush1.bf16.msra.mxu0 0
        %4295 = vmatprep.subr.bf16.mxu0 0
        %4296 = vmatpush1.bf16.msra.mxu0 0
        %4297 = vmatprep.subr.bf16.mxu0 0
        %4298 = vmatpush1.bf16.msra.mxu0 0
        %4299 = vmatprep.subr.bf16.mxu0 0
        %4300 = vmatpush1.bf16.msra.mxu0 0
        %4301 = vmatprep.subr.bf16.mxu0 0
        %4302 = vmatpush1.bf16.msra.mxu0 0
        %4303 = vmatprep.subr.bf16.mxu0 0
        %4304 = vmatpush1.bf16.msra.mxu0 0
        %4305 = vmatprep.subr.bf16.mxu0 0
        %4306 = vmatpush1.bf16.msra.mxu0 0
        %4307 = vmatprep.subr.bf16.mxu0 0
        %4308 = vmatpush1.bf16.msra.mxu0 0
        %4309 = vmatprep.subr.bf16.mxu0 0
        %4310 = vmatpush1.bf16.msra.mxu0 0
        %4311 = vmatprep.subr.bf16.mxu0 0
        %4312 = vmatpush1.bf16.msra.mxu0 0
        %4313 = vmatprep.subr.bf16.mxu0 0
        %4314 = vmatpush1.bf16.msra.mxu0 0
        %4315 = vmatprep.subr.bf16.mxu0 0
        %4316 = vmatpush1.bf16.msra.mxu0 0
        %4317 = vmatprep.subr.bf16.mxu0 0
        %4318 = vmatpush1.bf16.msra.mxu0 0
        %4319 = vmatprep.subr.bf16.mxu0 0
        %4320 = vmatpush1.bf16.msra.mxu0 0
        %4321 = vmatprep.subr.bf16.mxu0 0
        %4322 = vmatpush1.bf16.msra.mxu0 0
        %4323 = vmatprep.mubr.bf16.mxu0 0
        %4324 = vmatmul.mubr.bf16.gmra.mrb[0].mxu0 %v4142
        %v4325 = vpop.f32.mrb[0].mxu0
        %v4326 = vadd.f32 %v4086, %v4325
        %v4327 = vpop.f32.mrb[0].mxu0
        %v4328 = vadd.f32 %v4088, %v4327
        %v4329 = vpop.f32.mrb[0].mxu0
        %v4330 = vpop.f32.mrb[0].mxu0
        %4331 = vdwg.mxu0
        %v4332 = vsel %vm1884, %v3837, 0
        %v4333 = vsel %vm1885, %v3838, 0
        %v4334 = vsel %vm1886, %v3839, 0
        %v4335 = vsel %vm1887, %v3840, 0
        %v4336 = vsel %vm1888, %v3841, 0
        %s4337 = scalar_lea.vmem %s4, 8
        %v4338 = vld [vmem:[%s4337] sm:$0xf]
        %v4344 = vunpack.c.l.b16 %v4332
        %v4345 = vunpack.c.h.b16 %v4332
        %v4346 = vunpack.c.l.b16 %v4333
        %v4347 = vunpack.c.h.b16 %v4333
        %v4348 = vunpack.c.l.b16 %v4334
        %v4349 = vunpack.c.h.b16 %v4334
        %v4350 = vunpack.c.l.b16 %v4335
        %v4351 = vunpack.c.h.b16 %v4335
        %v4352 = vunpack.c.l.b16 %v4336
        %v4353 = vpack.c.b16 %v4344, %v4344
        %v4354 = vpack.c.b16 %v4345, %v4345
        %v4355 = vpack.c.b16 %v4346, %v4346
        %v4356 = vpack.c.b16 %v4347, %v4347
        %v4357 = vpack.c.b16 %v4348, %v4348
        %v4358 = vpack.c.b16 %v4349, %v4349
        %v4359 = vpack.c.b16 %v4350, %v4350
        %v4360 = vpack.c.b16 %v4351, %v4351
        %v4361 = vpack.c.b16 %v4352, %v4352
        %4362 = vrot.lane.b32.xlu0 %v4353, 31
        %v4363 = vpop.permute.xlu0 %4362
        %4364 = vrot.lane.b32.xlu0 %v4354, 31
        %v4365 = vpop.permute.xlu0 %4364
        %4366 = vrot.lane.b32.xlu0 %v4355, 31
        %v4367 = vpop.permute.xlu0 %4366
        %4368 = vrot.lane.b32.xlu0 %v4356, 31
        %v4369 = vpop.permute.xlu0 %4368
        %4370 = vrot.lane.b32.xlu0 %v4357, 31
        %v4371 = vpop.permute.xlu0 %4370
        %4372 = vrot.lane.b32.xlu0 %v4358, 31
        %v4373 = vpop.permute.xlu0 %4372
        %4374 = vrot.lane.b32.xlu0 %v4359, 31
        %v4375 = vpop.permute.xlu0 %4374
        %4376 = vrot.lane.b32.xlu0 %v4360, 31
        %v4377 = vpop.permute.xlu0 %4376
        %4378 = vrot.lane.b32.xlu0 %v4361, 31
        %v4379 = vpop.permute.xlu0 %4378
        %v4380 = vsel %vm1937, %v4363, %v4365
        %v4381 = vsel %vm1937, %v4365, %v4367
        %v4382 = vsel %vm1937, %v4367, %v4369
        %v4383 = vsel %vm1937, %v4369, %v4371
        %v4384 = vsel %vm1937, %v4371, %v4373
        %v4385 = vsel %vm1937, %v4373, %v4375
        %v4386 = vsel %vm1937, %v4375, %v4377
        %v4387 = vsel %vm1937, %v4377, %v4379
        %v4389 = vsel %vm3899, %v4338, 0
        %v4392 = vsel %vm3903, %v4380, 0
        %v4395 = vsel %vm3903, %v4381, 0
        %v4398 = vsel %vm3903, %v4382, 0
        %v4401 = vsel %vm3903, %v4383, 0
        %v4404 = vsel %vm3903, %v4384, 0
        %v4407 = vsel %vm3903, %v4385, 0
        %v4410 = vsel %vm3903, %v4386, 0
        %v4413 = vsel %vm3903, %v4387, 0
        %4415 = vmatprep.subr.bf16.mxu0 %v4395
        %4416 = vmatpush1.bf16.msra.mxu0 %v4392
        %4417 = vmatprep.subr.bf16.mxu0 0
        %4418 = vmatpush1.bf16.msra.mxu0 0
        %4419 = vmatprep.subr.bf16.mxu0 0
        %4420 = vmatpush1.bf16.msra.mxu0 0
        %4421 = vmatprep.subr.bf16.mxu0 0
        %4422 = vmatpush1.bf16.msra.mxu0 0
        %4423 = vmatprep.subr.bf16.mxu0 0
        %4424 = vmatpush1.bf16.msra.mxu0 0
        %4425 = vmatprep.subr.bf16.mxu0 0
        %4426 = vmatpush1.bf16.msra.mxu0 0
        %4427 = vmatprep.subr.bf16.mxu0 0
        %4428 = vmatpush1.bf16.msra.mxu0 0
        %4429 = vmatprep.subr.bf16.mxu0 0
        %4430 = vmatpush1.bf16.msra.mxu0 0
        %4431 = vmatprep.subr.bf16.mxu0 0
        %4432 = vmatpush1.bf16.msra.mxu0 0
        %4433 = vmatprep.subr.bf16.mxu0 0
        %4434 = vmatpush1.bf16.msra.mxu0 0
        %4435 = vmatprep.subr.bf16.mxu0 0
        %4436 = vmatpush1.bf16.msra.mxu0 0
        %4437 = vmatprep.subr.bf16.mxu0 0
        %4438 = vmatpush1.bf16.msra.mxu0 0
        %4439 = vmatprep.subr.bf16.mxu0 0
        %4440 = vmatpush1.bf16.msra.mxu0 0
        %4441 = vmatprep.subr.bf16.mxu0 0
        %4442 = vmatpush1.bf16.msra.mxu0 0
        %4443 = vmatprep.subr.bf16.mxu0 0
        %4444 = vmatpush1.bf16.msra.mxu0 0
        %4445 = vmatprep.subr.bf16.mxu0 0
        %4446 = vmatpush1.bf16.msra.mxu0 0
        %4447 = vmatprep.mubr.bf16.mxu0 0
        %4448 = vmatmul.mubr.bf16.gmra.mrb[0].mxu0 %v4389
        %v4449 = vpop.f32.mrb[0].mxu0
        %v4450 = vadd.f32 0.0, %v4449
        %v4451 = vpop.f32.mrb[0].mxu0
        %v4452 = vadd.f32 0.0, %v4451
        %v4453 = vpop.f32.mrb[0].mxu0
        %v4454 = vpop.f32.mrb[0].mxu0
        %4455 = vdwg.mxu0
        %4456 = vmatprep.subr.bf16.mxu0 %v4401
        %4457 = vmatpush1.bf16.msra.mxu0 %v4398
        %4458 = vmatprep.subr.bf16.mxu0 0
        %4459 = vmatpush1.bf16.msra.mxu0 0
        %4460 = vmatprep.subr.bf16.mxu0 0
        %4461 = vmatpush1.bf16.msra.mxu0 0
        %4462 = vmatprep.subr.bf16.mxu0 0
        %4463 = vmatpush1.bf16.msra.mxu0 0
        %4464 = vmatprep.subr.bf16.mxu0 0
        %4465 = vmatpush1.bf16.msra.mxu0 0
        %4466 = vmatprep.subr.bf16.mxu0 0
        %4467 = vmatpush1.bf16.msra.mxu0 0
        %4468 = vmatprep.subr.bf16.mxu0 0
        %4469 = vmatpush1.bf16.msra.mxu0 0
        %4470 = vmatprep.subr.bf16.mxu0 0
        %4471 = vmatpush1.bf16.msra.mxu0 0
        %4472 = vmatprep.subr.bf16.mxu0 0
        %4473 = vmatpush1.bf16.msra.mxu0 0
        %4474 = vmatprep.subr.bf16.mxu0 0
        %4475 = vmatpush1.bf16.msra.mxu0 0
        %4476 = vmatprep.subr.bf16.mxu0 0
        %4477 = vmatpush1.bf16.msra.mxu0 0
        %4478 = vmatprep.subr.bf16.mxu0 0
        %4479 = vmatpush1.bf16.msra.mxu0 0
        %4480 = vmatprep.subr.bf16.mxu0 0
        %4481 = vmatpush1.bf16.msra.mxu0 0
        %4482 = vmatprep.subr.bf16.mxu0 0
        %4483 = vmatpush1.bf16.msra.mxu0 0
        %4484 = vmatprep.subr.bf16.mxu0 0
        %4485 = vmatpush1.bf16.msra.mxu0 0
        %4486 = vmatprep.subr.bf16.mxu0 0
        %4487 = vmatpush1.bf16.msra.mxu0 0
        %4488 = vmatprep.mubr.bf16.mxu0 0
        %4489 = vmatmul.mubr.bf16.gmra.mrb[0].mxu0 %v4389
        %v4490 = vpop.f32.mrb[0].mxu0
        %v4491 = vadd.f32 0.0, %v4490
        %v4492 = vpop.f32.mrb[0].mxu0
        %v4493 = vadd.f32 0.0, %v4492
        %v4494 = vpop.f32.mrb[0].mxu0
        %v4495 = vpop.f32.mrb[0].mxu0
        %4496 = vdwg.mxu0
        %4497 = vmatprep.subr.bf16.mxu0 %v4407
        %4498 = vmatpush1.bf16.msra.mxu0 %v4404
        %4499 = vmatprep.subr.bf16.mxu0 0
        %4500 = vmatpush1.bf16.msra.mxu0 0
        %4501 = vmatprep.subr.bf16.mxu0 0
        %4502 = vmatpush1.bf16.msra.mxu0 0
        %4503 = vmatprep.subr.bf16.mxu0 0
        %4504 = vmatpush1.bf16.msra.mxu0 0
        %4505 = vmatprep.subr.bf16.mxu0 0
        %4506 = vmatpush1.bf16.msra.mxu0 0
        %4507 = vmatprep.subr.bf16.mxu0 0
        %4508 = vmatpush1.bf16.msra.mxu0 0
        %4509 = vmatprep.subr.bf16.mxu0 0
        %4510 = vmatpush1.bf16.msra.mxu0 0
        %4511 = vmatprep.subr.bf16.mxu0 0
        %4512 = vmatpush1.bf16.msra.mxu0 0
        %4513 = vmatprep.subr.bf16.mxu0 0
        %4514 = vmatpush1.bf16.msra.mxu0 0
        %4515 = vmatprep.subr.bf16.mxu0 0
        %4516 = vmatpush1.bf16.msra.mxu0 0
        %4517 = vmatprep.subr.bf16.mxu0 0
        %4518 = vmatpush1.bf16.msra.mxu0 0
        %4519 = vmatprep.subr.bf16.mxu0 0
        %4520 = vmatpush1.bf16.msra.mxu0 0
        %4521 = vmatprep.subr.bf16.mxu0 0
        %4522 = vmatpush1.bf16.msra.mxu0 0
        %4523 = vmatprep.subr.bf16.mxu0 0
        %4524 = vmatpush1.bf16.msra.mxu0 0
        %4525 = vmatprep.subr.bf16.mxu0 0
        %4526 = vmatpush1.bf16.msra.mxu0 0
        %4527 = vmatprep.subr.bf16.mxu0 0
        %4528 = vmatpush1.bf16.msra.mxu0 0
        %4529 = vmatprep.mubr.bf16.mxu0 0
        %4530 = vmatmul.mubr.bf16.gmra.mrb[0].mxu0 %v4389
        %v4531 = vpop.f32.mrb[0].mxu0
        %v4532 = vadd.f32 0.0, %v4531
        %v4533 = vpop.f32.mrb[0].mxu0
        %v4534 = vadd.f32 0.0, %v4533
        %v4535 = vpop.f32.mrb[0].mxu0
        %v4536 = vpop.f32.mrb[0].mxu0
        %4537 = vdwg.mxu0
        %4538 = vmatprep.subr.bf16.mxu0 %v4413
        %4539 = vmatpush1.bf16.msra.mxu0 %v4410
        %4540 = vmatprep.subr.bf16.mxu0 0
        %4541 = vmatpush1.bf16.msra.mxu0 0
        %4542 = vmatprep.subr.bf16.mxu0 0
        %4543 = vmatpush1.bf16.msra.mxu0 0
        %4544 = vmatprep.subr.bf16.mxu0 0
        %4545 = vmatpush1.bf16.msra.mxu0 0
        %4546 = vmatprep.subr.bf16.mxu0 0
        %4547 = vmatpush1.bf16.msra.mxu0 0
        %4548 = vmatprep.subr.bf16.mxu0 0
        %4549 = vmatpush1.bf16.msra.mxu0 0
        %4550 = vmatprep.subr.bf16.mxu0 0
        %4551 = vmatpush1.bf16.msra.mxu0 0
        %4552 = vmatprep.subr.bf16.mxu0 0
        %4553 = vmatpush1.bf16.msra.mxu0 0
        %4554 = vmatprep.subr.bf16.mxu0 0
        %4555 = vmatpush1.bf16.msra.mxu0 0
        %4556 = vmatprep.subr.bf16.mxu0 0
        %4557 = vmatpush1.bf16.msra.mxu0 0
        %4558 = vmatprep.subr.bf16.mxu0 0
        %4559 = vmatpush1.bf16.msra.mxu0 0
        %4560 = vmatprep.subr.bf16.mxu0 0
        %4561 = vmatpush1.bf16.msra.mxu0 0
        %4562 = vmatprep.subr.bf16.mxu0 0
        %4563 = vmatpush1.bf16.msra.mxu0 0
        %4564 = vmatprep.subr.bf16.mxu0 0
        %4565 = vmatpush1.bf16.msra.mxu0 0
        %4566 = vmatprep.subr.bf16.mxu0 0
        %4567 = vmatpush1.bf16.msra.mxu0 0
        %4568 = vmatprep.subr.bf16.mxu0 0
        %4569 = vmatpush1.bf16.msra.mxu0 0
        %4570 = vmatprep.mubr.bf16.mxu0 0
        %4571 = vmatmul.mubr.bf16.gmra.mrb[0].mxu0 %v4389
        %v4572 = vpop.f32.mrb[0].mxu0
        %v4573 = vadd.f32 0.0, %v4572
        %v4574 = vpop.f32.mrb[0].mxu0
        %v4575 = vadd.f32 0.0, %v4574
        %v4576 = vpop.f32.mrb[0].mxu0
        %v4577 = vpop.f32.mrb[0].mxu0
        %4578 = vdwg.mxu0
        %v4579 = vadd.f32 %v4203, %v4450
        %v4580 = vadd.f32 %v4205, %v4452
        %v4581 = vadd.f32 %v4244, %v4491
        %v4582 = vadd.f32 %v4246, %v4493
        %v4583 = vadd.f32 %v4285, %v4532
        %v4584 = vadd.f32 %v4287, %v4534
        %v4585 = vadd.f32 %v4326, %v4573
        %v4586 = vadd.f32 %v4328, %v4575
        %v4587 = vsel %vm2165, %v3837, 0
        %v4588 = vsel %vm2166, %v3838, 0
        %v4589 = vsel %vm2167, %v3839, 0
        %v4590 = vsel %vm2168, %v3840, 0
        %v4591 = vsel %vm2169, %v3841, 0
        %s4592 = scalar_lea.vmem %s4, 12
        %v4593 = vld [vmem:[%s4592] sm:$0xf]
        %v4599 = vunpack.c.l.b16 %v4587
        %v4600 = vunpack.c.h.b16 %v4587
        %v4601 = vunpack.c.l.b16 %v4588
        %v4602 = vunpack.c.h.b16 %v4588
        %v4603 = vunpack.c.l.b16 %v4589
        %v4604 = vunpack.c.h.b16 %v4589
        %v4605 = vunpack.c.l.b16 %v4590
        %v4606 = vunpack.c.h.b16 %v4590
        %v4607 = vunpack.c.l.b16 %v4591
        %v4608 = vpack.c.b16 %v4599, %v4599
        %v4609 = vpack.c.b16 %v4600, %v4600
        %v4610 = vpack.c.b16 %v4601, %v4601
        %v4611 = vpack.c.b16 %v4602, %v4602
        %v4612 = vpack.c.b16 %v4603, %v4603
        %v4613 = vpack.c.b16 %v4604, %v4604
        %v4614 = vpack.c.b16 %v4605, %v4605
        %v4615 = vpack.c.b16 %v4606, %v4606
        %v4616 = vpack.c.b16 %v4607, %v4607
        %4617 = vrot.lane.b32.xlu0 %v4608, 1
        %v4618 = vpop.permute.xlu0 %4617
        %4619 = vrot.lane.b32.xlu0 %v4609, 1
        %v4620 = vpop.permute.xlu0 %4619
        %4621 = vrot.lane.b32.xlu0 %v4610, 1
        %v4622 = vpop.permute.xlu0 %4621
        %4623 = vrot.lane.b32.xlu0 %v4611, 1
        %v4624 = vpop.permute.xlu0 %4623
        %4625 = vrot.lane.b32.xlu0 %v4612, 1
        %v4626 = vpop.permute.xlu0 %4625
        %4627 = vrot.lane.b32.xlu0 %v4613, 1
        %v4628 = vpop.permute.xlu0 %4627
        %4629 = vrot.lane.b32.xlu0 %v4614, 1
        %v4630 = vpop.permute.xlu0 %4629
        %4631 = vrot.lane.b32.xlu0 %v4615, 1
        %v4632 = vpop.permute.xlu0 %4631
        %4633 = vrot.lane.b32.xlu0 %v4616, 1
        %v4634 = vpop.permute.xlu0 %4633
        %v4635 = vsel %vm2218, %v4618, %v4620
        %v4636 = vsel %vm2218, %v4620, %v4622
        %v4637 = vsel %vm2218, %v4622, %v4624
        %v4638 = vsel %vm2218, %v4624, %v4626
        %v4639 = vsel %vm2218, %v4626, %v4628
        %v4640 = vsel %vm2218, %v4628, %v4630
        %v4641 = vsel %vm2218, %v4630, %v4632
        %v4642 = vsel %vm2218, %v4632, %v4634
        %v4644 = vsel %vm3899, %v4593, 0
        %v4647 = vsel %vm3903, %v4635, 0
        %v4650 = vsel %vm3903, %v4636, 0
        %v4653 = vsel %vm3903, %v4637, 0
        %v4656 = vsel %vm3903, %v4638, 0
        %v4659 = vsel %vm3903, %v4639, 0
        %v4662 = vsel %vm3903, %v4640, 0
        %v4665 = vsel %vm3903, %v4641, 0
        %v4668 = vsel %vm3903, %v4642, 0
        %4670 = vmatprep.subr.bf16.mxu0 %v4650
        %4671 = vmatpush1.bf16.msra.mxu0 %v4647
        %4672 = vmatprep.subr.bf16.mxu0 0
        %4673 = vmatpush1.bf16.msra.mxu0 0
        %4674 = vmatprep.subr.bf16.mxu0 0
        %4675 = vmatpush1.bf16.msra.mxu0 0
        %4676 = vmatprep.subr.bf16.mxu0 0
        %4677 = vmatpush1.bf16.msra.mxu0 0
        %4678 = vmatprep.subr.bf16.mxu0 0
        %4679 = vmatpush1.bf16.msra.mxu0 0
        %4680 = vmatprep.subr.bf16.mxu0 0
        %4681 = vmatpush1.bf16.msra.mxu0 0
        %4682 = vmatprep.subr.bf16.mxu0 0
        %4683 = vmatpush1.bf16.msra.mxu0 0
        %4684 = vmatprep.subr.bf16.mxu0 0
        %4685 = vmatpush1.bf16.msra.mxu0 0
        %4686 = vmatprep.subr.bf16.mxu0 0
        %4687 = vmatpush1.bf16.msra.mxu0 0
        %4688 = vmatprep.subr.bf16.mxu0 0
        %4689 = vmatpush1.bf16.msra.mxu0 0
        %4690 = vmatprep.subr.bf16.mxu0 0
        %4691 = vmatpush1.bf16.msra.mxu0 0
        %4692 = vmatprep.subr.bf16.mxu0 0
        %4693 = vmatpush1.bf16.msra.mxu0 0
        %4694 = vmatprep.subr.bf16.mxu0 0
        %4695 = vmatpush1.bf16.msra.mxu0 0
        %4696 = vmatprep.subr.bf16.mxu0 0
        %4697 = vmatpush1.bf16.msra.mxu0 0
        %4698 = vmatprep.subr.bf16.mxu0 0
        %4699 = vmatpush1.bf16.msra.mxu0 0
        %4700 = vmatprep.subr.bf16.mxu0 0
        %4701 = vmatpush1.bf16.msra.mxu0 0
        %4702 = vmatprep.mubr.bf16.mxu0 0
        %4703 = vmatmul.mubr.bf16.gmra.mrb[0].mxu0 %v4644
        %v4704 = vpop.f32.mrb[0].mxu0
        %v4705 = vadd.f32 0.0, %v4704
        %v4706 = vpop.f32.mrb[0].mxu0
        %v4707 = vadd.f32 0.0, %v4706
        %v4708 = vpop.f32.mrb[0].mxu0
        %v4709 = vpop.f32.mrb[0].mxu0
        %4710 = vdwg.mxu0
        %4711 = vmatprep.subr.bf16.mxu0 %v4656
        %4712 = vmatpush1.bf16.msra.mxu0 %v4653
        %4713 = vmatprep.subr.bf16.mxu0 0
        %4714 = vmatpush1.bf16.msra.mxu0 0
        %4715 = vmatprep.subr.bf16.mxu0 0
        %4716 = vmatpush1.bf16.msra.mxu0 0
        %4717 = vmatprep.subr.bf16.mxu0 0
        %4718 = vmatpush1.bf16.msra.mxu0 0
        %4719 = vmatprep.subr.bf16.mxu0 0
        %4720 = vmatpush1.bf16.msra.mxu0 0
        %4721 = vmatprep.subr.bf16.mxu0 0
        %4722 = vmatpush1.bf16.msra.mxu0 0
        %4723 = vmatprep.subr.bf16.mxu0 0
        %4724 = vmatpush1.bf16.msra.mxu0 0
        %4725 = vmatprep.subr.bf16.mxu0 0
        %4726 = vmatpush1.bf16.msra.mxu0 0
        %4727 = vmatprep.subr.bf16.mxu0 0
        %4728 = vmatpush1.bf16.msra.mxu0 0
        %4729 = vmatprep.subr.bf16.mxu0 0
        %4730 = vmatpush1.bf16.msra.mxu0 0
        %4731 = vmatprep.subr.bf16.mxu0 0
        %4732 = vmatpush1.bf16.msra.mxu0 0
        %4733 = vmatprep.subr.bf16.mxu0 0
        %4734 = vmatpush1.bf16.msra.mxu0 0
        %4735 = vmatprep.subr.bf16.mxu0 0
        %4736 = vmatpush1.bf16.msra.mxu0 0
        %4737 = vmatprep.subr.bf16.mxu0 0
        %4738 = vmatpush1.bf16.msra.mxu0 0
        %4739 = vmatprep.subr.bf16.mxu0 0
        %4740 = vmatpush1.bf16.msra.mxu0 0
        %4741 = vmatprep.subr.bf16.mxu0 0
        %4742 = vmatpush1.bf16.msra.mxu0 0
        %4743 = vmatprep.mubr.bf16.mxu0 0
        %4744 = vmatmul.mubr.bf16.gmra.mrb[0].mxu0 %v4644
        %v4745 = vpop.f32.mrb[0].mxu0
        %v4746 = vadd.f32 0.0, %v4745
        %v4747 = vpop.f32.mrb[0].mxu0
        %v4748 = vadd.f32 0.0, %v4747
        %v4749 = vpop.f32.mrb[0].mxu0
        %v4750 = vpop.f32.mrb[0].mxu0
        %4751 = vdwg.mxu0
        %4752 = vmatprep.subr.bf16.mxu0 %v4662
        %4753 = vmatpush1.bf16.msra.mxu0 %v4659
        %4754 = vmatprep.subr.bf16.mxu0 0
        %4755 = vmatpush1.bf16.msra.mxu0 0
        %4756 = vmatprep.subr.bf16.mxu0 0
        %4757 = vmatpush1.bf16.msra.mxu0 0
        %4758 = vmatprep.subr.bf16.mxu0 0
        %4759 = vmatpush1.bf16.msra.mxu0 0
        %4760 = vmatprep.subr.bf16.mxu0 0
        %4761 = vmatpush1.bf16.msra.mxu0 0
        %4762 = vmatprep.subr.bf16.mxu0 0
        %4763 = vmatpush1.bf16.msra.mxu0 0
        %4764 = vmatprep.subr.bf16.mxu0 0
        %4765 = vmatpush1.bf16.msra.mxu0 0
        %4766 = vmatprep.subr.bf16.mxu0 0
        %4767 = vmatpush1.bf16.msra.mxu0 0
        %4768 = vmatprep.subr.bf16.mxu0 0
        %4769 = vmatpush1.bf16.msra.mxu0 0
        %4770 = vmatprep.subr.bf16.mxu0 0
        %4771 = vmatpush1.bf16.msra.mxu0 0
        %4772 = vmatprep.subr.bf16.mxu0 0
        %4773 = vmatpush1.bf16.msra.mxu0 0
        %4774 = vmatprep.subr.bf16.mxu0 0
        %4775 = vmatpush1.bf16.msra.mxu0 0
        %4776 = vmatprep.subr.bf16.mxu0 0
        %4777 = vmatpush1.bf16.msra.mxu0 0
        %4778 = vmatprep.subr.bf16.mxu0 0
        %4779 = vmatpush1.bf16.msra.mxu0 0
        %4780 = vmatprep.subr.bf16.mxu0 0
        %4781 = vmatpush1.bf16.msra.mxu0 0
        %4782 = vmatprep.subr.bf16.mxu0 0
        %4783 = vmatpush1.bf16.msra.mxu0 0
        %4784 = vmatprep.mubr.bf16.mxu0 0
        %4785 = vmatmul.mubr.bf16.gmra.mrb[0].mxu0 %v4644
        %v4786 = vpop.f32.mrb[0].mxu0
        %v4787 = vadd.f32 0.0, %v4786
        %v4788 = vpop.f32.mrb[0].mxu0
        %v4789 = vadd.f32 0.0, %v4788
        %v4790 = vpop.f32.mrb[0].mxu0
        %v4791 = vpop.f32.mrb[0].mxu0
        %4792 = vdwg.mxu0
        %4793 = vmatprep.subr.bf16.mxu0 %v4668
        %4794 = vmatpush1.bf16.msra.mxu0 %v4665
        %4795 = vmatprep.subr.bf16.mxu0 0
        %4796 = vmatpush1.bf16.msra.mxu0 0
        %4797 = vmatprep.subr.bf16.mxu0 0
        %4798 = vmatpush1.bf16.msra.mxu0 0
        %4799 = vmatprep.subr.bf16.mxu0 0
        %4800 = vmatpush1.bf16.msra.mxu0 0
        %4801 = vmatprep.subr.bf16.mxu0 0
        %4802 = vmatpush1.bf16.msra.mxu0 0
        %4803 = vmatprep.subr.bf16.mxu0 0
        %4804 = vmatpush1.bf16.msra.mxu0 0
        %4805 = vmatprep.subr.bf16.mxu0 0
        %4806 = vmatpush1.bf16.msra.mxu0 0
        %4807 = vmatprep.subr.bf16.mxu0 0
        %4808 = vmatpush1.bf16.msra.mxu0 0
        %4809 = vmatprep.subr.bf16.mxu0 0
        %4810 = vmatpush1.bf16.msra.mxu0 0
        %4811 = vmatprep.subr.bf16.mxu0 0
        %4812 = vmatpush1.bf16.msra.mxu0 0
        %4813 = vmatprep.subr.bf16.mxu0 0
        %4814 = vmatpush1.bf16.msra.mxu0 0
        %4815 = vmatprep.subr.bf16.mxu0 0
        %4816 = vmatpush1.bf16.msra.mxu0 0
        %4817 = vmatprep.subr.bf16.mxu0 0
        %4818 = vmatpush1.bf16.msra.mxu0 0
        %4819 = vmatprep.subr.bf16.mxu0 0
        %4820 = vmatpush1.bf16.msra.mxu0 0
        %4821 = vmatprep.subr.bf16.mxu0 0
        %4822 = vmatpush1.bf16.msra.mxu0 0
        %4823 = vmatprep.subr.bf16.mxu0 0
        %4824 = vmatpush1.bf16.msra.mxu0 0
        %4825 = vmatprep.mubr.bf16.mxu0 0
        %4826 = vmatmul.mubr.bf16.gmra.mrb[0].mxu0 %v4644
        %v4827 = vpop.f32.mrb[0].mxu0
        %v4828 = vadd.f32 0.0, %v4827
        %v4829 = vpop.f32.mrb[0].mxu0
        %v4830 = vadd.f32 0.0, %v4829
        %v4831 = vpop.f32.mrb[0].mxu0
        %v4832 = vpop.f32.mrb[0].mxu0
        %4833 = vdwg.mxu0
        %v4834 = vadd.f32 %v4579, %v4705
        %v4835 = vadd.f32 %v4580, %v4707
        %v4836 = vadd.f32 %v4581, %v4746
        %v4837 = vadd.f32 %v4582, %v4748
        %v4838 = vadd.f32 %v4583, %v4787
        %v4839 = vadd.f32 %v4584, %v4789
        %v4840 = vadd.f32 %v4585, %v4828
        %v4841 = vadd.f32 %v4586, %v4830
        %v4842 = vld [vmem:[#allocation2 + $0x4] sm:$0xff]
        %v4843 = vld [vmem:[#allocation2 + $0xc] sm:$0xff]
        %v4844 = vld [vmem:[#allocation2 + $0x14] sm:$0xff]
        %v4845 = vld [vmem:[#allocation2 + $0x1c] sm:$0xff]
        %s4846 = scalar_lea.vmem %s4, 16
        %v4847 = vld [vmem:[%s4846] sm:$0xf]
        %v4852 = vunpack.c.l.b16 %v4842
        %v4853 = vunpack.c.h.b16 %v4842
        %v4854 = vunpack.c.l.b16 %v4843
        %v4855 = vunpack.c.h.b16 %v4843
        %v4856 = vunpack.c.l.b16 %v4844
        %v4857 = vunpack.c.h.b16 %v4844
        %v4858 = vunpack.c.l.b16 %v4845
        %v4859 = vunpack.c.h.b16 %v4845
        %v4860 = vpack.c.b16 %v4852, %v4852
        %v4861 = vpack.c.b16 %v4853, %v4853
        %v4862 = vpack.c.b16 %v4854, %v4854
        %v4863 = vpack.c.b16 %v4855, %v4855
        %v4864 = vpack.c.b16 %v4856, %v4856
        %v4865 = vpack.c.b16 %v4857, %v4857
        %v4866 = vpack.c.b16 %v4858, %v4858
        %v4867 = vpack.c.b16 %v4859, %v4859
        %v4869 = vsel %vm3899, %v4847, 0
        %v4872 = vsel %vm3903, %v4860, 0
        %v4875 = vsel %vm3903, %v4861, 0
        %v4878 = vsel %vm3903, %v4862, 0
        %v4881 = vsel %vm3903, %v4863, 0
        %v4884 = vsel %vm3903, %v4864, 0
        %v4887 = vsel %vm3903, %v4865, 0
        %v4890 = vsel %vm3903, %v4866, 0
        %v4893 = vsel %vm3903, %v4867, 0
        %4895 = vmatprep.subr.bf16.mxu0 %v4875
        %4896 = vmatpush1.bf16.msra.mxu0 %v4872
        %4897 = vmatprep.subr.bf16.mxu0 0
        %4898 = vmatpush1.bf16.msra.mxu0 0
        %4899 = vmatprep.subr.bf16.mxu0 0
        %4900 = vmatpush1.bf16.msra.mxu0 0
        %4901 = vmatprep.subr.bf16.mxu0 0
        %4902 = vmatpush1.bf16.msra.mxu0 0
        %4903 = vmatprep.subr.bf16.mxu0 0
        %4904 = vmatpush1.bf16.msra.mxu0 0
        %4905 = vmatprep.subr.bf16.mxu0 0
        %4906 = vmatpush1.bf16.msra.mxu0 0
        %4907 = vmatprep.subr.bf16.mxu0 0
        %4908 = vmatpush1.bf16.msra.mxu0 0
        %4909 = vmatprep.subr.bf16.mxu0 0
        %4910 = vmatpush1.bf16.msra.mxu0 0
        %4911 = vmatprep.subr.bf16.mxu0 0
        %4912 = vmatpush1.bf16.msra.mxu0 0
        %4913 = vmatprep.subr.bf16.mxu0 0
        %4914 = vmatpush1.bf16.msra.mxu0 0
        %4915 = vmatprep.subr.bf16.mxu0 0
        %4916 = vmatpush1.bf16.msra.mxu0 0
        %4917 = vmatprep.subr.bf16.mxu0 0
        %4918 = vmatpush1.bf16.msra.mxu0 0
        %4919 = vmatprep.subr.bf16.mxu0 0
        %4920 = vmatpush1.bf16.msra.mxu0 0
        %4921 = vmatprep.subr.bf16.mxu0 0
        %4922 = vmatpush1.bf16.msra.mxu0 0
        %4923 = vmatprep.subr.bf16.mxu0 0
        %4924 = vmatpush1.bf16.msra.mxu0 0
        %4925 = vmatprep.subr.bf16.mxu0 0
        %4926 = vmatpush1.bf16.msra.mxu0 0
        %4927 = vmatprep.mubr.bf16.mxu0 0
        %4928 = vmatmul.mubr.bf16.gmra.mrb[0].mxu0 %v4869
        %v4929 = vpop.f32.mrb[0].mxu0
        %v4930 = vadd.f32 0.0, %v4929
        %v4931 = vpop.f32.mrb[0].mxu0
        %v4932 = vadd.f32 0.0, %v4931
        %v4933 = vpop.f32.mrb[0].mxu0
        %v4934 = vpop.f32.mrb[0].mxu0
        %4935 = vdwg.mxu0
        %4936 = vmatprep.subr.bf16.mxu0 %v4881
        %4937 = vmatpush1.bf16.msra.mxu0 %v4878
        %4938 = vmatprep.subr.bf16.mxu0 0
        %4939 = vmatpush1.bf16.msra.mxu0 0
        %4940 = vmatprep.subr.bf16.mxu0 0
        %4941 = vmatpush1.bf16.msra.mxu0 0
        %4942 = vmatprep.subr.bf16.mxu0 0
        %4943 = vmatpush1.bf16.msra.mxu0 0
        %4944 = vmatprep.subr.bf16.mxu0 0
        %4945 = vmatpush1.bf16.msra.mxu0 0
        %4946 = vmatprep.subr.bf16.mxu0 0
        %4947 = vmatpush1.bf16.msra.mxu0 0
        %4948 = vmatprep.subr.bf16.mxu0 0
        %4949 = vmatpush1.bf16.msra.mxu0 0
        %4950 = vmatprep.subr.bf16.mxu0 0
        %4951 = vmatpush1.bf16.msra.mxu0 0
        %4952 = vmatprep.subr.bf16.mxu0 0
        %4953 = vmatpush1.bf16.msra.mxu0 0
        %4954 = vmatprep.subr.bf16.mxu0 0
        %4955 = vmatpush1.bf16.msra.mxu0 0
        %4956 = vmatprep.subr.bf16.mxu0 0
        %4957 = vmatpush1.bf16.msra.mxu0 0
        %4958 = vmatprep.subr.bf16.mxu0 0
        %4959 = vmatpush1.bf16.msra.mxu0 0
        %4960 = vmatprep.subr.bf16.mxu0 0
        %4961 = vmatpush1.bf16.msra.mxu0 0
        %4962 = vmatprep.subr.bf16.mxu0 0
        %4963 = vmatpush1.bf16.msra.mxu0 0
        %4964 = vmatprep.subr.bf16.mxu0 0
        %4965 = vmatpush1.bf16.msra.mxu0 0
        %4966 = vmatprep.subr.bf16.mxu0 0
        %4967 = vmatpush1.bf16.msra.mxu0 0
        %4968 = vmatprep.mubr.bf16.mxu0 0
        %4969 = vmatmul.mubr.bf16.gmra.mrb[0].mxu0 %v4869
        %v4970 = vpop.f32.mrb[0].mxu0
        %v4971 = vadd.f32 0.0, %v4970
        %v4972 = vpop.f32.mrb[0].mxu0
        %v4973 = vadd.f32 0.0, %v4972
        %v4974 = vpop.f32.mrb[0].mxu0
        %v4975 = vpop.f32.mrb[0].mxu0
        %4976 = vdwg.mxu0
        %4977 = vmatprep.subr.bf16.mxu0 %v4887
        %4978 = vmatpush1.bf16.msra.mxu0 %v4884
        %4979 = vmatprep.subr.bf16.mxu0 0
        %4980 = vmatpush1.bf16.msra.mxu0 0
        %4981 = vmatprep.subr.bf16.mxu0 0
        %4982 = vmatpush1.bf16.msra.mxu0 0
        %4983 = vmatprep.subr.bf16.mxu0 0
        %4984 = vmatpush1.bf16.msra.mxu0 0
        %4985 = vmatprep.subr.bf16.mxu0 0
        %4986 = vmatpush1.bf16.msra.mxu0 0
        %4987 = vmatprep.subr.bf16.mxu0 0
        %4988 = vmatpush1.bf16.msra.mxu0 0
        %4989 = vmatprep.subr.bf16.mxu0 0
        %4990 = vmatpush1.bf16.msra.mxu0 0
        %4991 = vmatprep.subr.bf16.mxu0 0
        %4992 = vmatpush1.bf16.msra.mxu0 0
        %4993 = vmatprep.subr.bf16.mxu0 0
        %4994 = vmatpush1.bf16.msra.mxu0 0
        %4995 = vmatprep.subr.bf16.mxu0 0
        %4996 = vmatpush1.bf16.msra.mxu0 0
        %4997 = vmatprep.subr.bf16.mxu0 0
        %4998 = vmatpush1.bf16.msra.mxu0 0
        %4999 = vmatprep.subr.bf16.mxu0 0
        %5000 = vmatpush1.bf16.msra.mxu0 0
        %5001 = vmatprep.subr.bf16.mxu0 0
        %5002 = vmatpush1.bf16.msra.mxu0 0
        %5003 = vmatprep.subr.bf16.mxu0 0
        %5004 = vmatpush1.bf16.msra.mxu0 0
        %5005 = vmatprep.subr.bf16.mxu0 0
        %5006 = vmatpush1.bf16.msra.mxu0 0
        %5007 = vmatprep.subr.bf16.mxu0 0
        %5008 = vmatpush1.bf16.msra.mxu0 0
        %5009 = vmatprep.mubr.bf16.mxu0 0
        %5010 = vmatmul.mubr.bf16.gmra.mrb[0].mxu0 %v4869
        %v5011 = vpop.f32.mrb[0].mxu0
        %v5012 = vadd.f32 0.0, %v5011
        %v5013 = vpop.f32.mrb[0].mxu0
        %v5014 = vadd.f32 0.0, %v5013
        %v5015 = vpop.f32.mrb[0].mxu0
        %v5016 = vpop.f32.mrb[0].mxu0
        %5017 = vdwg.mxu0
        %5018 = vmatprep.subr.bf16.mxu0 %v4893
        %5019 = vmatpush1.bf16.msra.mxu0 %v4890
        %5020 = vmatprep.subr.bf16.mxu0 0
        %5021 = vmatpush1.bf16.msra.mxu0 0
        %5022 = vmatprep.subr.bf16.mxu0 0
        %5023 = vmatpush1.bf16.msra.mxu0 0
        %5024 = vmatprep.subr.bf16.mxu0 0
        %5025 = vmatpush1.bf16.msra.mxu0 0
        %5026 = vmatprep.subr.bf16.mxu0 0
        %5027 = vmatpush1.bf16.msra.mxu0 0
        %5028 = vmatprep.subr.bf16.mxu0 0
        %5029 = vmatpush1.bf16.msra.mxu0 0
        %5030 = vmatprep.subr.bf16.mxu0 0
        %5031 = vmatpush1.bf16.msra.mxu0 0
        %5032 = vmatprep.subr.bf16.mxu0 0
        %5033 = vmatpush1.bf16.msra.mxu0 0
        %5034 = vmatprep.subr.bf16.mxu0 0
        %5035 = vmatpush1.bf16.msra.mxu0 0
        %5036 = vmatprep.subr.bf16.mxu0 0
        %5037 = vmatpush1.bf16.msra.mxu0 0
        %5038 = vmatprep.subr.bf16.mxu0 0
        %5039 = vmatpush1.bf16.msra.mxu0 0
        %5040 = vmatprep.subr.bf16.mxu0 0
        %5041 = vmatpush1.bf16.msra.mxu0 0
        %5042 = vmatprep.subr.bf16.mxu0 0
        %5043 = vmatpush1.bf16.msra.mxu0 0
        %5044 = vmatprep.subr.bf16.mxu0 0
        %5045 = vmatpush1.bf16.msra.mxu0 0
        %5046 = vmatprep.subr.bf16.mxu0 0
        %5047 = vmatpush1.bf16.msra.mxu0 0
        %5048 = vmatprep.subr.bf16.mxu0 0
        %5049 = vmatpush1.bf16.msra.mxu0 0
        %5050 = vmatprep.mubr.bf16.mxu0 0
        %5051 = vmatmul.mubr.bf16.gmra.mrb[0].mxu0 %v4869
        %v5052 = vpop.f32.mrb[0].mxu0
        %v5053 = vadd.f32 0.0, %v5052
        %v5054 = vpop.f32.mrb[0].mxu0
        %v5055 = vadd.f32 0.0, %v5054
        %v5056 = vpop.f32.mrb[0].mxu0
        %v5057 = vpop.f32.mrb[0].mxu0
        %5058 = vdwg.mxu0
        %v5059 = vadd.f32 %v4834, %v4930
        %v5060 = vadd.f32 %v4835, %v4932
        %v5061 = vadd.f32 %v4836, %v4971
        %v5062 = vadd.f32 %v4837, %v4973
        %v5063 = vadd.f32 %v4838, %v5012
        %v5064 = vadd.f32 %v4839, %v5014
        %v5065 = vadd.f32 %v4840, %v5053
        %v5066 = vadd.f32 %v4841, %v5055
        %v5067 = vld [vmem:[#allocation2 + $0x4] sm:$0xff]
        %v5068 = vld [vmem:[#allocation2 + $0xc] sm:$0xff]
        %v5069 = vld [vmem:[#allocation2 + $0x14] sm:$0xff]
        %v5070 = vld [vmem:[#allocation2 + $0x1c] sm:$0xff]
        %v5071 = vld [vmem:[#allocation2 + $0x24] sm:$0xf]
        %v5072 = vsel %vm2675, %v5067, 0
        %v5073 = vsel %vm2676, %v5068, 0
        %v5074 = vsel %vm2677, %v5069, 0
        %v5075 = vsel %vm2678, %v5070, 0
        %v5076 = vsel %vm2679, %v5071, 0
        %s5077 = scalar_lea.vmem %s4, 20
        %v5078 = vld [vmem:[%s5077] sm:$0xf]
        %v5084 = vunpack.c.l.b16 %v5072
        %v5085 = vunpack.c.h.b16 %v5072
        %v5086 = vunpack.c.l.b16 %v5073
        %v5087 = vunpack.c.h.b16 %v5073
        %v5088 = vunpack.c.l.b16 %v5074
        %v5089 = vunpack.c.h.b16 %v5074
        %v5090 = vunpack.c.l.b16 %v5075
        %v5091 = vunpack.c.h.b16 %v5075
        %v5092 = vunpack.c.l.b16 %v5076
        %v5093 = vpack.c.b16 %v5084, %v5084
        %v5094 = vpack.c.b16 %v5085, %v5085
        %v5095 = vpack.c.b16 %v5086, %v5086
        %v5096 = vpack.c.b16 %v5087, %v5087
        %v5097 = vpack.c.b16 %v5088, %v5088
        %v5098 = vpack.c.b16 %v5089, %v5089
        %v5099 = vpack.c.b16 %v5090, %v5090
        %v5100 = vpack.c.b16 %v5091, %v5091
        %v5101 = vpack.c.b16 %v5092, %v5092
        %5102 = vrot.lane.b32.xlu0 %v5093, 127
        %v5103 = vpop.permute.xlu0 %5102
        %5104 = vrot.lane.b32.xlu0 %v5094, 127
        %v5105 = vpop.permute.xlu0 %5104
        %5106 = vrot.lane.b32.xlu0 %v5095, 127
        %v5107 = vpop.permute.xlu0 %5106
        %5108 = vrot.lane.b32.xlu0 %v5096, 127
        %v5109 = vpop.permute.xlu0 %5108
        %5110 = vrot.lane.b32.xlu0 %v5097, 127
        %v5111 = vpop.permute.xlu0 %5110
        %5112 = vrot.lane.b32.xlu0 %v5098, 127
        %v5113 = vpop.permute.xlu0 %5112
        %5114 = vrot.lane.b32.xlu0 %v5099, 127
        %v5115 = vpop.permute.xlu0 %5114
        %5116 = vrot.lane.b32.xlu0 %v5100, 127
        %v5117 = vpop.permute.xlu0 %5116
        %5118 = vrot.lane.b32.xlu0 %v5101, 127
        %v5119 = vpop.permute.xlu0 %5118
        %v5120 = vsel %vm2157, %v5103, %v5105
        %v5121 = vsel %vm2157, %v5105, %v5107
        %v5122 = vsel %vm2157, %v5107, %v5109
        %v5123 = vsel %vm2157, %v5109, %v5111
        %v5124 = vsel %vm2157, %v5111, %v5113
        %v5125 = vsel %vm2157, %v5113, %v5115
        %v5126 = vsel %vm2157, %v5115, %v5117
        %v5127 = vsel %vm2157, %v5117, %v5119
        %v5129 = vsel %vm3899, %v5078, 0
        %v5132 = vsel %vm3903, %v5120, 0
        %v5135 = vsel %vm3903, %v5121, 0
        %v5138 = vsel %vm3903, %v5122, 0
        %v5141 = vsel %vm3903, %v5123, 0
        %v5144 = vsel %vm3903, %v5124, 0
        %v5147 = vsel %vm3903, %v5125, 0
        %v5150 = vsel %vm3903, %v5126, 0
        %v5153 = vsel %vm3903, %v5127, 0
        %5155 = vmatprep.subr.bf16.mxu0 %v5135
        %5156 = vmatpush1.bf16.msra.mxu0 %v5132
        %5157 = vmatprep.subr.bf16.mxu0 0
        %5158 = vmatpush1.bf16.msra.mxu0 0
        %5159 = vmatprep.subr.bf16.mxu0 0
        %5160 = vmatpush1.bf16.msra.mxu0 0
        %5161 = vmatprep.subr.bf16.mxu0 0
        %5162 = vmatpush1.bf16.msra.mxu0 0
        %5163 = vmatprep.subr.bf16.mxu0 0
        %5164 = vmatpush1.bf16.msra.mxu0 0
        %5165 = vmatprep.subr.bf16.mxu0 0
        %5166 = vmatpush1.bf16.msra.mxu0 0
        %5167 = vmatprep.subr.bf16.mxu0 0
        %5168 = vmatpush1.bf16.msra.mxu0 0
        %5169 = vmatprep.subr.bf16.mxu0 0
        %5170 = vmatpush1.bf16.msra.mxu0 0
        %5171 = vmatprep.subr.bf16.mxu0 0
        %5172 = vmatpush1.bf16.msra.mxu0 0
        %5173 = vmatprep.subr.bf16.mxu0 0
        %5174 = vmatpush1.bf16.msra.mxu0 0
        %5175 = vmatprep.subr.bf16.mxu0 0
        %5176 = vmatpush1.bf16.msra.mxu0 0
        %5177 = vmatprep.subr.bf16.mxu0 0
        %5178 = vmatpush1.bf16.msra.mxu0 0
        %5179 = vmatprep.subr.bf16.mxu0 0
        %5180 = vmatpush1.bf16.msra.mxu0 0
        %5181 = vmatprep.subr.bf16.mxu0 0
        %5182 = vmatpush1.bf16.msra.mxu0 0
        %5183 = vmatprep.subr.bf16.mxu0 0
        %5184 = vmatpush1.bf16.msra.mxu0 0
        %5185 = vmatprep.subr.bf16.mxu0 0
        %5186 = vmatpush1.bf16.msra.mxu0 0
        %5187 = vmatprep.mubr.bf16.mxu0 0
        %5188 = vmatmul.mubr.bf16.gmra.mrb[0].mxu0 %v5129
        %v5189 = vpop.f32.mrb[0].mxu0
        %v5190 = vadd.f32 0.0, %v5189
        %v5191 = vpop.f32.mrb[0].mxu0
        %v5192 = vadd.f32 0.0, %v5191
        %v5193 = vpop.f32.mrb[0].mxu0
        %v5194 = vpop.f32.mrb[0].mxu0
        %5195 = vdwg.mxu0
        %5196 = vmatprep.subr.bf16.mxu0 %v5141
        %5197 = vmatpush1.bf16.msra.mxu0 %v5138
        %5198 = vmatprep.subr.bf16.mxu0 0
        %5199 = vmatpush1.bf16.msra.mxu0 0
        %5200 = vmatprep.subr.bf16.mxu0 0
        %5201 = vmatpush1.bf16.msra.mxu0 0
        %5202 = vmatprep.subr.bf16.mxu0 0
        %5203 = vmatpush1.bf16.msra.mxu0 0
        %5204 = vmatprep.subr.bf16.mxu0 0
        %5205 = vmatpush1.bf16.msra.mxu0 0
        %5206 = vmatprep.subr.bf16.mxu0 0
        %5207 = vmatpush1.bf16.msra.mxu0 0
        %5208 = vmatprep.subr.bf16.mxu0 0
        %5209 = vmatpush1.bf16.msra.mxu0 0
        %5210 = vmatprep.subr.bf16.mxu0 0
        %5211 = vmatpush1.bf16.msra.mxu0 0
        %5212 = vmatprep.subr.bf16.mxu0 0
        %5213 = vmatpush1.bf16.msra.mxu0 0
        %5214 = vmatprep.subr.bf16.mxu0 0
        %5215 = vmatpush1.bf16.msra.mxu0 0
        %5216 = vmatprep.subr.bf16.mxu0 0
        %5217 = vmatpush1.bf16.msra.mxu0 0
        %5218 = vmatprep.subr.bf16.mxu0 0
        %5219 = vmatpush1.bf16.msra.mxu0 0
        %5220 = vmatprep.subr.bf16.mxu0 0
        %5221 = vmatpush1.bf16.msra.mxu0 0
        %5222 = vmatprep.subr.bf16.mxu0 0
        %5223 = vmatpush1.bf16.msra.mxu0 0
        %5224 = vmatprep.subr.bf16.mxu0 0
        %5225 = vmatpush1.bf16.msra.mxu0 0
        %5226 = vmatprep.subr.bf16.mxu0 0
        %5227 = vmatpush1.bf16.msra.mxu0 0
        %5228 = vmatprep.mubr.bf16.mxu0 0
        %5229 = vmatmul.mubr.bf16.gmra.mrb[0].mxu0 %v5129
        %v5230 = vpop.f32.mrb[0].mxu0
        %v5231 = vadd.f32 0.0, %v5230
        %v5232 = vpop.f32.mrb[0].mxu0
        %v5233 = vadd.f32 0.0, %v5232
        %v5234 = vpop.f32.mrb[0].mxu0
        %v5235 = vpop.f32.mrb[0].mxu0
        %5236 = vdwg.mxu0
        %5237 = vmatprep.subr.bf16.mxu0 %v5147
        %5238 = vmatpush1.bf16.msra.mxu0 %v5144
        %5239 = vmatprep.subr.bf16.mxu0 0
        %5240 = vmatpush1.bf16.msra.mxu0 0
        %5241 = vmatprep.subr.bf16.mxu0 0
        %5242 = vmatpush1.bf16.msra.mxu0 0
        %5243 = vmatprep.subr.bf16.mxu0 0
        %5244 = vmatpush1.bf16.msra.mxu0 0
        %5245 = vmatprep.subr.bf16.mxu0 0
        %5246 = vmatpush1.bf16.msra.mxu0 0
        %5247 = vmatprep.subr.bf16.mxu0 0
        %5248 = vmatpush1.bf16.msra.mxu0 0
        %5249 = vmatprep.subr.bf16.mxu0 0
        %5250 = vmatpush1.bf16.msra.mxu0 0
        %5251 = vmatprep.subr.bf16.mxu0 0
        %5252 = vmatpush1.bf16.msra.mxu0 0
        %5253 = vmatprep.subr.bf16.mxu0 0
        %5254 = vmatpush1.bf16.msra.mxu0 0
        %5255 = vmatprep.subr.bf16.mxu0 0
        %5256 = vmatpush1.bf16.msra.mxu0 0
        %5257 = vmatprep.subr.bf16.mxu0 0
        %5258 = vmatpush1.bf16.msra.mxu0 0
        %5259 = vmatprep.subr.bf16.mxu0 0
        %5260 = vmatpush1.bf16.msra.mxu0 0
        %5261 = vmatprep.subr.bf16.mxu0 0
        %5262 = vmatpush1.bf16.msra.mxu0 0
        %5263 = vmatprep.subr.bf16.mxu0 0
        %5264 = vmatpush1.bf16.msra.mxu0 0
        %5265 = vmatprep.subr.bf16.mxu0 0
        %5266 = vmatpush1.bf16.msra.mxu0 0
        %5267 = vmatprep.subr.bf16.mxu0 0
        %5268 = vmatpush1.bf16.msra.mxu0 0
        %5269 = vmatprep.mubr.bf16.mxu0 0
        %5270 = vmatmul.mubr.bf16.gmra.mrb[0].mxu0 %v5129
        %v5271 = vpop.f32.mrb[0].mxu0
        %v5272 = vadd.f32 0.0, %v5271
        %v5273 = vpop.f32.mrb[0].mxu0
        %v5274 = vadd.f32 0.0, %v5273
        %v5275 = vpop.f32.mrb[0].mxu0
        %v5276 = vpop.f32.mrb[0].mxu0
        %5277 = vdwg.mxu0
        %5278 = vmatprep.subr.bf16.mxu0 %v5153
        %5279 = vmatpush1.bf16.msra.mxu0 %v5150
        %5280 = vmatprep.subr.bf16.mxu0 0
        %5281 = vmatpush1.bf16.msra.mxu0 0
        %5282 = vmatprep.subr.bf16.mxu0 0
        %5283 = vmatpush1.bf16.msra.mxu0 0
        %5284 = vmatprep.subr.bf16.mxu0 0
        %5285 = vmatpush1.bf16.msra.mxu0 0
        %5286 = vmatprep.subr.bf16.mxu0 0
        %5287 = vmatpush1.bf16.msra.mxu0 0
        %5288 = vmatprep.subr.bf16.mxu0 0
        %5289 = vmatpush1.bf16.msra.mxu0 0
        %5290 = vmatprep.subr.bf16.mxu0 0
        %5291 = vmatpush1.bf16.msra.mxu0 0
        %5292 = vmatprep.subr.bf16.mxu0 0
        %5293 = vmatpush1.bf16.msra.mxu0 0
        %5294 = vmatprep.subr.bf16.mxu0 0
        %5295 = vmatpush1.bf16.msra.mxu0 0
        %5296 = vmatprep.subr.bf16.mxu0 0
        %5297 = vmatpush1.bf16.msra.mxu0 0
        %5298 = vmatprep.subr.bf16.mxu0 0
        %5299 = vmatpush1.bf16.msra.mxu0 0
        %5300 = vmatprep.subr.bf16.mxu0 0
        %5301 = vmatpush1.bf16.msra.mxu0 0
        %5302 = vmatprep.subr.bf16.mxu0 0
        %5303 = vmatpush1.bf16.msra.mxu0 0
        %5304 = vmatprep.subr.bf16.mxu0 0
        %5305 = vmatpush1.bf16.msra.mxu0 0
        %5306 = vmatprep.subr.bf16.mxu0 0
        %5307 = vmatpush1.bf16.msra.mxu0 0
        %5308 = vmatprep.subr.bf16.mxu0 0
        %5309 = vmatpush1.bf16.msra.mxu0 0
        %5310 = vmatprep.mubr.bf16.mxu0 0
        %5311 = vmatmul.mubr.bf16.gmra.mrb[0].mxu0 %v5129
        %v5312 = vpop.f32.mrb[0].mxu0
        %v5313 = vadd.f32 0.0, %v5312
        %v5314 = vpop.f32.mrb[0].mxu0
        %v5315 = vadd.f32 0.0, %v5314
        %v5316 = vpop.f32.mrb[0].mxu0
        %v5317 = vpop.f32.mrb[0].mxu0
        %5318 = vdwg.mxu0
        %v5319 = vadd.f32 %v5059, %v5190
        %v5320 = vadd.f32 %v5060, %v5192
        %v5321 = vadd.f32 %v5061, %v5231
        %v5322 = vadd.f32 %v5062, %v5233
        %v5323 = vadd.f32 %v5063, %v5272
        %v5324 = vadd.f32 %v5064, %v5274
        %v5325 = vadd.f32 %v5065, %v5313
        %v5326 = vadd.f32 %v5066, %v5315
        %v5327 = vsel %vm2954, %v5067, 0
        %v5328 = vsel %vm2955, %v5068, 0
        %v5329 = vsel %vm2956, %v5069, 0
        %v5330 = vsel %vm2957, %v5070, 0
        %v5331 = vsel %vm2958, %v5071, 0
        %s5332 = scalar_lea.vmem %s4, 24
        %v5333 = vld [vmem:[%s5332] sm:$0xf]
        %v5339 = vunpack.c.l.b16 %v5327
        %v5340 = vunpack.c.h.b16 %v5327
        %v5341 = vunpack.c.l.b16 %v5328
        %v5342 = vunpack.c.h.b16 %v5328
        %v5343 = vunpack.c.l.b16 %v5329
        %v5344 = vunpack.c.h.b16 %v5329
        %v5345 = vunpack.c.l.b16 %v5330
        %v5346 = vunpack.c.h.b16 %v5330
        %v5347 = vunpack.c.l.b16 %v5331
        %v5348 = vpack.c.b16 %v5339, %v5339
        %v5349 = vpack.c.b16 %v5340, %v5340
        %v5350 = vpack.c.b16 %v5341, %v5341
        %v5351 = vpack.c.b16 %v5342, %v5342
        %v5352 = vpack.c.b16 %v5343, %v5343
        %v5353 = vpack.c.b16 %v5344, %v5344
        %v5354 = vpack.c.b16 %v5345, %v5345
        %v5355 = vpack.c.b16 %v5346, %v5346
        %v5356 = vpack.c.b16 %v5347, %v5347
        %5357 = vrot.lane.b32.xlu0 %v5348, 97
        %v5358 = vpop.permute.xlu0 %5357
        %5359 = vrot.lane.b32.xlu0 %v5349, 97
        %v5360 = vpop.permute.xlu0 %5359
        %5361 = vrot.lane.b32.xlu0 %v5350, 97
        %v5362 = vpop.permute.xlu0 %5361
        %5363 = vrot.lane.b32.xlu0 %v5351, 97
        %v5364 = vpop.permute.xlu0 %5363
        %5365 = vrot.lane.b32.xlu0 %v5352, 97
        %v5366 = vpop.permute.xlu0 %5365
        %5367 = vrot.lane.b32.xlu0 %v5353, 97
        %v5368 = vpop.permute.xlu0 %5367
        %5369 = vrot.lane.b32.xlu0 %v5354, 97
        %v5370 = vpop.permute.xlu0 %5369
        %5371 = vrot.lane.b32.xlu0 %v5355, 97
        %v5372 = vpop.permute.xlu0 %5371
        %5373 = vrot.lane.b32.xlu0 %v5356, 97
        %v5374 = vpop.permute.xlu0 %5373
        %v5375 = vsel %vm1876, %v5358, %v5360
        %v5376 = vsel %vm1876, %v5360, %v5362
        %v5377 = vsel %vm1876, %v5362, %v5364
        %v5378 = vsel %vm1876, %v5364, %v5366
        %v5379 = vsel %vm1876, %v5366, %v5368
        %v5380 = vsel %vm1876, %v5368, %v5370
        %v5381 = vsel %vm1876, %v5370, %v5372
        %v5382 = vsel %vm1876, %v5372, %v5374
        %v5384 = vsel %vm3899, %v5333, 0
        %v5387 = vsel %vm3903, %v5375, 0
        %v5390 = vsel %vm3903, %v5376, 0
        %v5393 = vsel %vm3903, %v5377, 0
        %v5396 = vsel %vm3903, %v5378, 0
        %v5399 = vsel %vm3903, %v5379, 0
        %v5402 = vsel %vm3903, %v5380, 0
        %v5405 = vsel %vm3903, %v5381, 0
        %v5408 = vsel %vm3903, %v5382, 0
        %5410 = vmatprep.subr.bf16.mxu0 %v5390
        %5411 = vmatpush1.bf16.msra.mxu0 %v5387
        %5412 = vmatprep.subr.bf16.mxu0 0
        %5413 = vmatpush1.bf16.msra.mxu0 0
        %5414 = vmatprep.subr.bf16.mxu0 0
        %5415 = vmatpush1.bf16.msra.mxu0 0
        %5416 = vmatprep.subr.bf16.mxu0 0
        %5417 = vmatpush1.bf16.msra.mxu0 0
        %5418 = vmatprep.subr.bf16.mxu0 0
        %5419 = vmatpush1.bf16.msra.mxu0 0
        %5420 = vmatprep.subr.bf16.mxu0 0
        %5421 = vmatpush1.bf16.msra.mxu0 0
        %5422 = vmatprep.subr.bf16.mxu0 0
        %5423 = vmatpush1.bf16.msra.mxu0 0
        %5424 = vmatprep.subr.bf16.mxu0 0
        %5425 = vmatpush1.bf16.msra.mxu0 0
        %5426 = vmatprep.subr.bf16.mxu0 0
        %5427 = vmatpush1.bf16.msra.mxu0 0
        %5428 = vmatprep.subr.bf16.mxu0 0
        %5429 = vmatpush1.bf16.msra.mxu0 0
        %5430 = vmatprep.subr.bf16.mxu0 0
        %5431 = vmatpush1.bf16.msra.mxu0 0
        %5432 = vmatprep.subr.bf16.mxu0 0
        %5433 = vmatpush1.bf16.msra.mxu0 0
        %5434 = vmatprep.subr.bf16.mxu0 0
        %5435 = vmatpush1.bf16.msra.mxu0 0
        %5436 = vmatprep.subr.bf16.mxu0 0
        %5437 = vmatpush1.bf16.msra.mxu0 0
        %5438 = vmatprep.subr.bf16.mxu0 0
        %5439 = vmatpush1.bf16.msra.mxu0 0
        %5440 = vmatprep.subr.bf16.mxu0 0
        %5441 = vmatpush1.bf16.msra.mxu0 0
        %5442 = vmatprep.mubr.bf16.mxu0 0
        %5443 = vmatmul.mubr.bf16.gmra.mrb[0].mxu0 %v5384
        %v5444 = vpop.f32.mrb[0].mxu0
        %v5445 = vadd.f32 0.0, %v5444
        %v5446 = vpop.f32.mrb[0].mxu0
        %v5447 = vadd.f32 0.0, %v5446
        %v5448 = vpop.f32.mrb[0].mxu0
        %v5449 = vpop.f32.mrb[0].mxu0
        %5450 = vdwg.mxu0
        %5451 = vmatprep.subr.bf16.mxu0 %v5396
        %5452 = vmatpush1.bf16.msra.mxu0 %v5393
        %5453 = vmatprep.subr.bf16.mxu0 0
        %5454 = vmatpush1.bf16.msra.mxu0 0
        %5455 = vmatprep.subr.bf16.mxu0 0
        %5456 = vmatpush1.bf16.msra.mxu0 0
        %5457 = vmatprep.subr.bf16.mxu0 0
        %5458 = vmatpush1.bf16.msra.mxu0 0
        %5459 = vmatprep.subr.bf16.mxu0 0
        %5460 = vmatpush1.bf16.msra.mxu0 0
        %5461 = vmatprep.subr.bf16.mxu0 0
        %5462 = vmatpush1.bf16.msra.mxu0 0
        %5463 = vmatprep.subr.bf16.mxu0 0
        %5464 = vmatpush1.bf16.msra.mxu0 0
        %5465 = vmatprep.subr.bf16.mxu0 0
        %5466 = vmatpush1.bf16.msra.mxu0 0
        %5467 = vmatprep.subr.bf16.mxu0 0
        %5468 = vmatpush1.bf16.msra.mxu0 0
        %5469 = vmatprep.subr.bf16.mxu0 0
        %5470 = vmatpush1.bf16.msra.mxu0 0
        %5471 = vmatprep.subr.bf16.mxu0 0
        %5472 = vmatpush1.bf16.msra.mxu0 0
        %5473 = vmatprep.subr.bf16.mxu0 0
        %5474 = vmatpush1.bf16.msra.mxu0 0
        %5475 = vmatprep.subr.bf16.mxu0 0
        %5476 = vmatpush1.bf16.msra.mxu0 0
        %5477 = vmatprep.subr.bf16.mxu0 0
        %5478 = vmatpush1.bf16.msra.mxu0 0
        %5479 = vmatprep.subr.bf16.mxu0 0
        %5480 = vmatpush1.bf16.msra.mxu0 0
        %5481 = vmatprep.subr.bf16.mxu0 0
        %5482 = vmatpush1.bf16.msra.mxu0 0
        %5483 = vmatprep.mubr.bf16.mxu0 0
        %5484 = vmatmul.mubr.bf16.gmra.mrb[0].mxu0 %v5384
        %v5485 = vpop.f32.mrb[0].mxu0
        %v5486 = vadd.f32 0.0, %v5485
        %v5487 = vpop.f32.mrb[0].mxu0
        %v5488 = vadd.f32 0.0, %v5487
        %v5489 = vpop.f32.mrb[0].mxu0
        %v5490 = vpop.f32.mrb[0].mxu0
        %5491 = vdwg.mxu0
        %5492 = vmatprep.subr.bf16.mxu0 %v5402
        %5493 = vmatpush1.bf16.msra.mxu0 %v5399
        %5494 = vmatprep.subr.bf16.mxu0 0
        %5495 = vmatpush1.bf16.msra.mxu0 0
        %5496 = vmatprep.subr.bf16.mxu0 0
        %5497 = vmatpush1.bf16.msra.mxu0 0
        %5498 = vmatprep.subr.bf16.mxu0 0
        %5499 = vmatpush1.bf16.msra.mxu0 0
        %5500 = vmatprep.subr.bf16.mxu0 0
        %5501 = vmatpush1.bf16.msra.mxu0 0
        %5502 = vmatprep.subr.bf16.mxu0 0
        %5503 = vmatpush1.bf16.msra.mxu0 0
        %5504 = vmatprep.subr.bf16.mxu0 0
        %5505 = vmatpush1.bf16.msra.mxu0 0
        %5506 = vmatprep.subr.bf16.mxu0 0
        %5507 = vmatpush1.bf16.msra.mxu0 0
        %5508 = vmatprep.subr.bf16.mxu0 0
        %5509 = vmatpush1.bf16.msra.mxu0 0
        %5510 = vmatprep.subr.bf16.mxu0 0
        %5511 = vmatpush1.bf16.msra.mxu0 0
        %5512 = vmatprep.subr.bf16.mxu0 0
        %5513 = vmatpush1.bf16.msra.mxu0 0
        %5514 = vmatprep.subr.bf16.mxu0 0
        %5515 = vmatpush1.bf16.msra.mxu0 0
        %5516 = vmatprep.subr.bf16.mxu0 0
        %5517 = vmatpush1.bf16.msra.mxu0 0
        %5518 = vmatprep.subr.bf16.mxu0 0
        %5519 = vmatpush1.bf16.msra.mxu0 0
        %5520 = vmatprep.subr.bf16.mxu0 0
        %5521 = vmatpush1.bf16.msra.mxu0 0
        %5522 = vmatprep.subr.bf16.mxu0 0
        %5523 = vmatpush1.bf16.msra.mxu0 0
        %5524 = vmatprep.mubr.bf16.mxu0 0
        %5525 = vmatmul.mubr.bf16.gmra.mrb[0].mxu0 %v5384
        %v5526 = vpop.f32.mrb[0].mxu0
        %v5527 = vadd.f32 0.0, %v5526
        %v5528 = vpop.f32.mrb[0].mxu0
        %v5529 = vadd.f32 0.0, %v5528
        %v5530 = vpop.f32.mrb[0].mxu0
        %v5531 = vpop.f32.mrb[0].mxu0
        %5532 = vdwg.mxu0
        %5533 = vmatprep.subr.bf16.mxu0 %v5408
        %5534 = vmatpush1.bf16.msra.mxu0 %v5405
        %5535 = vmatprep.subr.bf16.mxu0 0
        %5536 = vmatpush1.bf16.msra.mxu0 0
        %5537 = vmatprep.subr.bf16.mxu0 0
        %5538 = vmatpush1.bf16.msra.mxu0 0
        %5539 = vmatprep.subr.bf16.mxu0 0
        %5540 = vmatpush1.bf16.msra.mxu0 0
        %5541 = vmatprep.subr.bf16.mxu0 0
        %5542 = vmatpush1.bf16.msra.mxu0 0
        %5543 = vmatprep.subr.bf16.mxu0 0
        %5544 = vmatpush1.bf16.msra.mxu0 0
        %5545 = vmatprep.subr.bf16.mxu0 0
        %5546 = vmatpush1.bf16.msra.mxu0 0
        %5547 = vmatprep.subr.bf16.mxu0 0
        %5548 = vmatpush1.bf16.msra.mxu0 0
        %5549 = vmatprep.subr.bf16.mxu0 0
        %5550 = vmatpush1.bf16.msra.mxu0 0
        %5551 = vmatprep.subr.bf16.mxu0 0
        %5552 = vmatpush1.bf16.msra.mxu0 0
        %5553 = vmatprep.subr.bf16.mxu0 0
        %5554 = vmatpush1.bf16.msra.mxu0 0
        %5555 = vmatprep.subr.bf16.mxu0 0
        %5556 = vmatpush1.bf16.msra.mxu0 0
        %5557 = vmatprep.subr.bf16.mxu0 0
        %5558 = vmatpush1.bf16.msra.mxu0 0
        %5559 = vmatprep.subr.bf16.mxu0 0
        %5560 = vmatpush1.bf16.msra.mxu0 0
        %5561 = vmatprep.subr.bf16.mxu0 0
        %5562 = vmatpush1.bf16.msra.mxu0 0
        %5563 = vmatprep.subr.bf16.mxu0 0
        %5564 = vmatpush1.bf16.msra.mxu0 0
        %5565 = vmatprep.mubr.bf16.mxu0 0
        %5566 = vmatmul.mubr.bf16.gmra.mrb[0].mxu0 %v5384
        %v5567 = vpop.f32.mrb[0].mxu0
        %v5568 = vadd.f32 0.0, %v5567
        %v5569 = vpop.f32.mrb[0].mxu0
        %v5570 = vadd.f32 0.0, %v5569
        %v5571 = vpop.f32.mrb[0].mxu0
        %v5572 = vpop.f32.mrb[0].mxu0
        %5573 = vdwg.mxu0
        %v5574 = vadd.f32 %v5319, %v5445
        %v5575 = vadd.f32 %v5320, %v5447
        %v5576 = vadd.f32 %v5321, %v5486
        %v5577 = vadd.f32 %v5322, %v5488
        %v5578 = vadd.f32 %v5323, %v5527
        %v5579 = vadd.f32 %v5324, %v5529
        %v5580 = vadd.f32 %v5325, %v5568
        %v5581 = vadd.f32 %v5326, %v5570
        %s5582 = scalar_lea.vmem %s4, 28
        %v5583 = vld [vmem:[%s5582] sm:$0xf]
        %v5589 = vunpack.c.l.b16 %v5067
        %v5590 = vunpack.c.h.b16 %v5067
        %v5591 = vunpack.c.l.b16 %v5068
        %v5592 = vunpack.c.h.b16 %v5068
        %v5593 = vunpack.c.l.b16 %v5069
        %v5594 = vunpack.c.h.b16 %v5069
        %v5595 = vunpack.c.l.b16 %v5070
        %v5596 = vunpack.c.h.b16 %v5070
        %v5597 = vunpack.c.l.b16 %v5071
        %v5598 = vpack.c.b16 %v5589, %v5589
        %v5599 = vpack.c.b16 %v5590, %v5590
        %v5600 = vpack.c.b16 %v5591, %v5591
        %v5601 = vpack.c.b16 %v5592, %v5592
        %v5602 = vpack.c.b16 %v5593, %v5593
        %v5603 = vpack.c.b16 %v5594, %v5594
        %v5604 = vpack.c.b16 %v5595, %v5595
        %v5605 = vpack.c.b16 %v5596, %v5596
        %v5606 = vpack.c.b16 %v5597, %v5597
        %5607 = vrot.lane.b32.xlu0 %v5598, 96
        %v5608 = vpop.permute.xlu0 %5607
        %5609 = vrot.lane.b32.xlu0 %v5599, 96
        %v5610 = vpop.permute.xlu0 %5609
        %5611 = vrot.lane.b32.xlu0 %v5600, 96
        %v5612 = vpop.permute.xlu0 %5611
        %5613 = vrot.lane.b32.xlu0 %v5601, 96
        %v5614 = vpop.permute.xlu0 %5613
        %5615 = vrot.lane.b32.xlu0 %v5602, 96
        %v5616 = vpop.permute.xlu0 %5615
        %5617 = vrot.lane.b32.xlu0 %v5603, 96
        %v5618 = vpop.permute.xlu0 %5617
        %5619 = vrot.lane.b32.xlu0 %v5604, 96
        %v5620 = vpop.permute.xlu0 %5619
        %5621 = vrot.lane.b32.xlu0 %v5605, 96
        %v5622 = vpop.permute.xlu0 %5621
        %5623 = vrot.lane.b32.xlu0 %v5606, 96
        %v5624 = vpop.permute.xlu0 %5623
        %v5625 = vsel %vm3257, %v5608, %v5610
        %v5626 = vsel %vm3257, %v5610, %v5612
        %v5627 = vsel %vm3257, %v5612, %v5614
        %v5628 = vsel %vm3257, %v5614, %v5616
        %v5629 = vsel %vm3257, %v5616, %v5618
        %v5630 = vsel %vm3257, %v5618, %v5620
        %v5631 = vsel %vm3257, %v5620, %v5622
        %v5632 = vsel %vm3257, %v5622, %v5624
        %v5634 = vsel %vm3899, %v5583, 0
        %v5637 = vsel %vm3903, %v5625, 0
        %v5640 = vsel %vm3903, %v5626, 0
        %v5643 = vsel %vm3903, %v5627, 0
        %v5646 = vsel %vm3903, %v5628, 0
        %v5649 = vsel %vm3903, %v5629, 0
        %v5652 = vsel %vm3903, %v5630, 0
        %v5655 = vsel %vm3903, %v5631, 0
        %v5658 = vsel %vm3903, %v5632, 0
        %5660 = vmatprep.subr.bf16.mxu0 %v5640
        %5661 = vmatpush1.bf16.msra.mxu0 %v5637
        %5662 = vmatprep.subr.bf16.mxu0 0
        %5663 = vmatpush1.bf16.msra.mxu0 0
        %5664 = vmatprep.subr.bf16.mxu0 0
        %5665 = vmatpush1.bf16.msra.mxu0 0
        %5666 = vmatprep.subr.bf16.mxu0 0
        %5667 = vmatpush1.bf16.msra.mxu0 0
        %5668 = vmatprep.subr.bf16.mxu0 0
        %5669 = vmatpush1.bf16.msra.mxu0 0
        %5670 = vmatprep.subr.bf16.mxu0 0
        %5671 = vmatpush1.bf16.msra.mxu0 0
        %5672 = vmatprep.subr.bf16.mxu0 0
        %5673 = vmatpush1.bf16.msra.mxu0 0
        %5674 = vmatprep.subr.bf16.mxu0 0
        %5675 = vmatpush1.bf16.msra.mxu0 0
        %5676 = vmatprep.subr.bf16.mxu0 0
        %5677 = vmatpush1.bf16.msra.mxu0 0
        %5678 = vmatprep.subr.bf16.mxu0 0
        %5679 = vmatpush1.bf16.msra.mxu0 0
        %5680 = vmatprep.subr.bf16.mxu0 0
        %5681 = vmatpush1.bf16.msra.mxu0 0
        %5682 = vmatprep.subr.bf16.mxu0 0
        %5683 = vmatpush1.bf16.msra.mxu0 0
        %5684 = vmatprep.subr.bf16.mxu0 0
        %5685 = vmatpush1.bf16.msra.mxu0 0
        %5686 = vmatprep.subr.bf16.mxu0 0
        %5687 = vmatpush1.bf16.msra.mxu0 0
        %5688 = vmatprep.subr.bf16.mxu0 0
        %5689 = vmatpush1.bf16.msra.mxu0 0
        %5690 = vmatprep.subr.bf16.mxu0 0
        %5691 = vmatpush1.bf16.msra.mxu0 0
        %5692 = vmatprep.mubr.bf16.mxu0 0
        %5693 = vmatmul.mubr.bf16.gmra.mrb[0].mxu0 %v5634
        %v5694 = vpop.f32.mrb[0].mxu0
        %v5695 = vadd.f32 0.0, %v5694
        %v5696 = vpop.f32.mrb[0].mxu0
        %v5697 = vadd.f32 0.0, %v5696
        %v5698 = vpop.f32.mrb[0].mxu0
        %v5699 = vpop.f32.mrb[0].mxu0
        %5700 = vdwg.mxu0
        %5701 = vmatprep.subr.bf16.mxu0 %v5646
        %5702 = vmatpush1.bf16.msra.mxu0 %v5643
        %5703 = vmatprep.subr.bf16.mxu0 0
        %5704 = vmatpush1.bf16.msra.mxu0 0
        %5705 = vmatprep.subr.bf16.mxu0 0
        %5706 = vmatpush1.bf16.msra.mxu0 0
        %5707 = vmatprep.subr.bf16.mxu0 0
        %5708 = vmatpush1.bf16.msra.mxu0 0
        %5709 = vmatprep.subr.bf16.mxu0 0
        %5710 = vmatpush1.bf16.msra.mxu0 0
        %5711 = vmatprep.subr.bf16.mxu0 0
        %5712 = vmatpush1.bf16.msra.mxu0 0
        %5713 = vmatprep.subr.bf16.mxu0 0
        %5714 = vmatpush1.bf16.msra.mxu0 0
        %5715 = vmatprep.subr.bf16.mxu0 0
        %5716 = vmatpush1.bf16.msra.mxu0 0
        %5717 = vmatprep.subr.bf16.mxu0 0
        %5718 = vmatpush1.bf16.msra.mxu0 0
        %5719 = vmatprep.subr.bf16.mxu0 0
        %5720 = vmatpush1.bf16.msra.mxu0 0
        %5721 = vmatprep.subr.bf16.mxu0 0
        %5722 = vmatpush1.bf16.msra.mxu0 0
        %5723 = vmatprep.subr.bf16.mxu0 0
        %5724 = vmatpush1.bf16.msra.mxu0 0
        %5725 = vmatprep.subr.bf16.mxu0 0
        %5726 = vmatpush1.bf16.msra.mxu0 0
        %5727 = vmatprep.subr.bf16.mxu0 0
        %5728 = vmatpush1.bf16.msra.mxu0 0
        %5729 = vmatprep.subr.bf16.mxu0 0
        %5730 = vmatpush1.bf16.msra.mxu0 0
        %5731 = vmatprep.subr.bf16.mxu0 0
        %5732 = vmatpush1.bf16.msra.mxu0 0
        %5733 = vmatprep.mubr.bf16.mxu0 0
        %5734 = vmatmul.mubr.bf16.gmra.mrb[0].mxu0 %v5634
        %v5735 = vpop.f32.mrb[0].mxu0
        %v5736 = vadd.f32 0.0, %v5735
        %v5737 = vpop.f32.mrb[0].mxu0
        %v5738 = vadd.f32 0.0, %v5737
        %v5739 = vpop.f32.mrb[0].mxu0
        %v5740 = vpop.f32.mrb[0].mxu0
        %5741 = vdwg.mxu0
        %5742 = vmatprep.subr.bf16.mxu0 %v5652
        %5743 = vmatpush1.bf16.msra.mxu0 %v5649
        %5744 = vmatprep.subr.bf16.mxu0 0
        %5745 = vmatpush1.bf16.msra.mxu0 0
        %5746 = vmatprep.subr.bf16.mxu0 0
        %5747 = vmatpush1.bf16.msra.mxu0 0
        %5748 = vmatprep.subr.bf16.mxu0 0
        %5749 = vmatpush1.bf16.msra.mxu0 0
        %5750 = vmatprep.subr.bf16.mxu0 0
        %5751 = vmatpush1.bf16.msra.mxu0 0
        %5752 = vmatprep.subr.bf16.mxu0 0
        %5753 = vmatpush1.bf16.msra.mxu0 0
        %5754 = vmatprep.subr.bf16.mxu0 0
        %5755 = vmatpush1.bf16.msra.mxu0 0
        %5756 = vmatprep.subr.bf16.mxu0 0
        %5757 = vmatpush1.bf16.msra.mxu0 0
        %5758 = vmatprep.subr.bf16.mxu0 0
        %5759 = vmatpush1.bf16.msra.mxu0 0
        %5760 = vmatprep.subr.bf16.mxu0 0
        %5761 = vmatpush1.bf16.msra.mxu0 0
        %5762 = vmatprep.subr.bf16.mxu0 0
        %5763 = vmatpush1.bf16.msra.mxu0 0
        %5764 = vmatprep.subr.bf16.mxu0 0
        %5765 = vmatpush1.bf16.msra.mxu0 0
        %5766 = vmatprep.subr.bf16.mxu0 0
        %5767 = vmatpush1.bf16.msra.mxu0 0
        %5768 = vmatprep.subr.bf16.mxu0 0
        %5769 = vmatpush1.bf16.msra.mxu0 0
        %5770 = vmatprep.subr.bf16.mxu0 0
        %5771 = vmatpush1.bf16.msra.mxu0 0
        %5772 = vmatprep.subr.bf16.mxu0 0
        %5773 = vmatpush1.bf16.msra.mxu0 0
        %5774 = vmatprep.mubr.bf16.mxu0 0
        %5775 = vmatmul.mubr.bf16.gmra.mrb[0].mxu0 %v5634
        %v5776 = vpop.f32.mrb[0].mxu0
        %v5777 = vadd.f32 0.0, %v5776
        %v5778 = vpop.f32.mrb[0].mxu0
        %v5779 = vadd.f32 0.0, %v5778
        %v5780 = vpop.f32.mrb[0].mxu0
        %v5781 = vpop.f32.mrb[0].mxu0
        %5782 = vdwg.mxu0
        %5783 = vmatprep.subr.bf16.mxu0 %v5658
        %5784 = vmatpush1.bf16.msra.mxu0 %v5655
        %5785 = vmatprep.subr.bf16.mxu0 0
        %5786 = vmatpush1.bf16.msra.mxu0 0
        %5787 = vmatprep.subr.bf16.mxu0 0
        %5788 = vmatpush1.bf16.msra.mxu0 0
        %5789 = vmatprep.subr.bf16.mxu0 0
        %5790 = vmatpush1.bf16.msra.mxu0 0
        %5791 = vmatprep.subr.bf16.mxu0 0
        %5792 = vmatpush1.bf16.msra.mxu0 0
        %5793 = vmatprep.subr.bf16.mxu0 0
        %5794 = vmatpush1.bf16.msra.mxu0 0
        %5795 = vmatprep.subr.bf16.mxu0 0
        %5796 = vmatpush1.bf16.msra.mxu0 0
        %5797 = vmatprep.subr.bf16.mxu0 0
        %5798 = vmatpush1.bf16.msra.mxu0 0
        %5799 = vmatprep.subr.bf16.mxu0 0
        %5800 = vmatpush1.bf16.msra.mxu0 0
        %5801 = vmatprep.subr.bf16.mxu0 0
        %5802 = vmatpush1.bf16.msra.mxu0 0
        %5803 = vmatprep.subr.bf16.mxu0 0
        %5804 = vmatpush1.bf16.msra.mxu0 0
        %5805 = vmatprep.subr.bf16.mxu0 0
        %5806 = vmatpush1.bf16.msra.mxu0 0
        %5807 = vmatprep.subr.bf16.mxu0 0
        %5808 = vmatpush1.bf16.msra.mxu0 0
        %5809 = vmatprep.subr.bf16.mxu0 0
        %5810 = vmatpush1.bf16.msra.mxu0 0
        %5811 = vmatprep.subr.bf16.mxu0 0
        %5812 = vmatpush1.bf16.msra.mxu0 0
        %5813 = vmatprep.subr.bf16.mxu0 0
        %5814 = vmatpush1.bf16.msra.mxu0 0
        %5815 = vmatprep.mubr.bf16.mxu0 0
        %5816 = vmatmul.mubr.bf16.gmra.mrb[0].mxu0 %v5634
        %v5817 = vpop.f32.mrb[0].mxu0
        %v5818 = vadd.f32 0.0, %v5817
        %v5819 = vpop.f32.mrb[0].mxu0
        %v5820 = vadd.f32 0.0, %v5819
        %v5821 = vpop.f32.mrb[0].mxu0
        %v5822 = vpop.f32.mrb[0].mxu0
        %5823 = vdwg.mxu0
        %v5824 = vadd.f32 %v5574, %v5695
        %v5825 = vadd.f32 %v5575, %v5697
        %v5826 = vadd.f32 %v5576, %v5736
        %v5827 = vadd.f32 %v5577, %v5738
        %v5828 = vadd.f32 %v5578, %v5777
        %v5829 = vadd.f32 %v5579, %v5779
        %v5830 = vadd.f32 %v5580, %v5818
        %v5831 = vadd.f32 %v5581, %v5820
        %v5832 = vsel %vm3484, %v5067, 0
        %v5833 = vsel %vm3485, %v5068, 0
        %v5834 = vsel %vm3486, %v5069, 0
        %v5835 = vsel %vm3487, %v5070, 0
        %v5836 = vsel %vm3488, %v5071, 0
        %s5837 = scalar_lea.vmem %s4, 32
        %v5838 = vld [vmem:[%s5837] sm:$0xf]
        %v5844 = vunpack.c.l.b16 %v5832
        %v5845 = vunpack.c.h.b16 %v5832
        %v5846 = vunpack.c.l.b16 %v5833
        %v5847 = vunpack.c.h.b16 %v5833
        %v5848 = vunpack.c.l.b16 %v5834
        %v5849 = vunpack.c.h.b16 %v5834
        %v5850 = vunpack.c.l.b16 %v5835
        %v5851 = vunpack.c.h.b16 %v5835
        %v5852 = vunpack.c.l.b16 %v5836
        %v5853 = vpack.c.b16 %v5844, %v5844
        %v5854 = vpack.c.b16 %v5845, %v5845
        %v5855 = vpack.c.b16 %v5846, %v5846
        %v5856 = vpack.c.b16 %v5847, %v5847
        %v5857 = vpack.c.b16 %v5848, %v5848
        %v5858 = vpack.c.b16 %v5849, %v5849
        %v5859 = vpack.c.b16 %v5850, %v5850
        %v5860 = vpack.c.b16 %v5851, %v5851
        %v5861 = vpack.c.b16 %v5852, %v5852
        %5862 = vrot.lane.b32.xlu0 %v5853, 95
        %v5863 = vpop.permute.xlu0 %5862
        %5864 = vrot.lane.b32.xlu0 %v5854, 95
        %v5865 = vpop.permute.xlu0 %5864
        %5866 = vrot.lane.b32.xlu0 %v5855, 95
        %v5867 = vpop.permute.xlu0 %5866
        %5868 = vrot.lane.b32.xlu0 %v5856, 95
        %v5869 = vpop.permute.xlu0 %5868
        %5870 = vrot.lane.b32.xlu0 %v5857, 95
        %v5871 = vpop.permute.xlu0 %5870
        %5872 = vrot.lane.b32.xlu0 %v5858, 95
        %v5873 = vpop.permute.xlu0 %5872
        %5874 = vrot.lane.b32.xlu0 %v5859, 95
        %v5875 = vpop.permute.xlu0 %5874
        %5876 = vrot.lane.b32.xlu0 %v5860, 95
        %v5877 = vpop.permute.xlu0 %5876
        %5878 = vrot.lane.b32.xlu0 %v5861, 95
        %v5879 = vpop.permute.xlu0 %5878
        %v5880 = vsel %vm1334, %v5863, %v5865
        %v5881 = vsel %vm1334, %v5865, %v5867
        %v5882 = vsel %vm1334, %v5867, %v5869
        %v5883 = vsel %vm1334, %v5869, %v5871
        %v5884 = vsel %vm1334, %v5871, %v5873
        %v5885 = vsel %vm1334, %v5873, %v5875
        %v5886 = vsel %vm1334, %v5875, %v5877
        %v5887 = vsel %vm1334, %v5877, %v5879
        %v5889 = vsel %vm3899, %v5838, 0
        %v5892 = vsel %vm3903, %v5880, 0
        %v5895 = vsel %vm3903, %v5881, 0
        %v5898 = vsel %vm3903, %v5882, 0
        %v5901 = vsel %vm3903, %v5883, 0
        %v5904 = vsel %vm3903, %v5884, 0
        %v5907 = vsel %vm3903, %v5885, 0
        %v5910 = vsel %vm3903, %v5886, 0
        %v5913 = vsel %vm3903, %v5887, 0
        %5915 = vmatprep.subr.bf16.mxu0 %v5895
        %5916 = vmatpush1.bf16.msra.mxu0 %v5892
        %5917 = vmatprep.subr.bf16.mxu0 0
        %5918 = vmatpush1.bf16.msra.mxu0 0
        %5919 = vmatprep.subr.bf16.mxu0 0
        %5920 = vmatpush1.bf16.msra.mxu0 0
        %5921 = vmatprep.subr.bf16.mxu0 0
        %5922 = vmatpush1.bf16.msra.mxu0 0
        %5923 = vmatprep.subr.bf16.mxu0 0
        %5924 = vmatpush1.bf16.msra.mxu0 0
        %5925 = vmatprep.subr.bf16.mxu0 0
        %5926 = vmatpush1.bf16.msra.mxu0 0
        %5927 = vmatprep.subr.bf16.mxu0 0
        %5928 = vmatpush1.bf16.msra.mxu0 0
        %5929 = vmatprep.subr.bf16.mxu0 0
        %5930 = vmatpush1.bf16.msra.mxu0 0
        %5931 = vmatprep.subr.bf16.mxu0 0
        %5932 = vmatpush1.bf16.msra.mxu0 0
        %5933 = vmatprep.subr.bf16.mxu0 0
        %5934 = vmatpush1.bf16.msra.mxu0 0
        %5935 = vmatprep.subr.bf16.mxu0 0
        %5936 = vmatpush1.bf16.msra.mxu0 0
        %5937 = vmatprep.subr.bf16.mxu0 0
        %5938 = vmatpush1.bf16.msra.mxu0 0
        %5939 = vmatprep.subr.bf16.mxu0 0
        %5940 = vmatpush1.bf16.msra.mxu0 0
        %5941 = vmatprep.subr.bf16.mxu0 0
        %5942 = vmatpush1.bf16.msra.mxu0 0
        %5943 = vmatprep.subr.bf16.mxu0 0
        %5944 = vmatpush1.bf16.msra.mxu0 0
        %5945 = vmatprep.subr.bf16.mxu0 0
        %5946 = vmatpush1.bf16.msra.mxu0 0
        %5947 = vmatprep.mubr.bf16.mxu0 0
        %5948 = vmatmul.mubr.bf16.gmra.mrb[0].mxu0 %v5889
        %v5949 = vpop.f32.mrb[0].mxu0
        %v5950 = vadd.f32 0.0, %v5949
        %v5951 = vpop.f32.mrb[0].mxu0
        %v5952 = vadd.f32 0.0, %v5951
        %v5953 = vpop.f32.mrb[0].mxu0
        %v5954 = vpop.f32.mrb[0].mxu0
        %5955 = vdwg.mxu0
        %5956 = vmatprep.subr.bf16.mxu0 %v5901
        %5957 = vmatpush1.bf16.msra.mxu0 %v5898
        %5958 = vmatprep.subr.bf16.mxu0 0
        %5959 = vmatpush1.bf16.msra.mxu0 0
        %5960 = vmatprep.subr.bf16.mxu0 0
        %5961 = vmatpush1.bf16.msra.mxu0 0
        %5962 = vmatprep.subr.bf16.mxu0 0
        %5963 = vmatpush1.bf16.msra.mxu0 0
        %5964 = vmatprep.subr.bf16.mxu0 0
        %5965 = vmatpush1.bf16.msra.mxu0 0
        %5966 = vmatprep.subr.bf16.mxu0 0
        %5967 = vmatpush1.bf16.msra.mxu0 0
        %5968 = vmatprep.subr.bf16.mxu0 0
        %5969 = vmatpush1.bf16.msra.mxu0 0
        %5970 = vmatprep.subr.bf16.mxu0 0
        %5971 = vmatpush1.bf16.msra.mxu0 0
        %5972 = vmatprep.subr.bf16.mxu0 0
        %5973 = vmatpush1.bf16.msra.mxu0 0
        %5974 = vmatprep.subr.bf16.mxu0 0
        %5975 = vmatpush1.bf16.msra.mxu0 0
        %5976 = vmatprep.subr.bf16.mxu0 0
        %5977 = vmatpush1.bf16.msra.mxu0 0
        %5978 = vmatprep.subr.bf16.mxu0 0
        %5979 = vmatpush1.bf16.msra.mxu0 0
        %5980 = vmatprep.subr.bf16.mxu0 0
        %5981 = vmatpush1.bf16.msra.mxu0 0
        %5982 = vmatprep.subr.bf16.mxu0 0
        %5983 = vmatpush1.bf16.msra.mxu0 0
        %5984 = vmatprep.subr.bf16.mxu0 0
        %5985 = vmatpush1.bf16.msra.mxu0 0
        %5986 = vmatprep.subr.bf16.mxu0 0
        %5987 = vmatpush1.bf16.msra.mxu0 0
        %5988 = vmatprep.mubr.bf16.mxu0 0
        %5989 = vmatmul.mubr.bf16.gmra.mrb[0].mxu0 %v5889
        %v5990 = vpop.f32.mrb[0].mxu0
        %v5991 = vadd.f32 0.0, %v5990
        %v5992 = vpop.f32.mrb[0].mxu0
        %v5993 = vadd.f32 0.0, %v5992
        %v5994 = vpop.f32.mrb[0].mxu0
        %v5995 = vpop.f32.mrb[0].mxu0
        %5996 = vdwg.mxu0
        %5997 = vmatprep.subr.bf16.mxu0 %v5907
        %5998 = vmatpush1.bf16.msra.mxu0 %v5904
        %5999 = vmatprep.subr.bf16.mxu0 0
        %6000 = vmatpush1.bf16.msra.mxu0 0
        %6001 = vmatprep.subr.bf16.mxu0 0
        %6002 = vmatpush1.bf16.msra.mxu0 0
        %6003 = vmatprep.subr.bf16.mxu0 0
        %6004 = vmatpush1.bf16.msra.mxu0 0
        %6005 = vmatprep.subr.bf16.mxu0 0
        %6006 = vmatpush1.bf16.msra.mxu0 0
        %6007 = vmatprep.subr.bf16.mxu0 0
        %6008 = vmatpush1.bf16.msra.mxu0 0
        %6009 = vmatprep.subr.bf16.mxu0 0
        %6010 = vmatpush1.bf16.msra.mxu0 0
        %6011 = vmatprep.subr.bf16.mxu0 0
        %6012 = vmatpush1.bf16.msra.mxu0 0
        %6013 = vmatprep.subr.bf16.mxu0 0
        %6014 = vmatpush1.bf16.msra.mxu0 0
        %6015 = vmatprep.subr.bf16.mxu0 0
        %6016 = vmatpush1.bf16.msra.mxu0 0
        %6017 = vmatprep.subr.bf16.mxu0 0
        %6018 = vmatpush1.bf16.msra.mxu0 0
        %6019 = vmatprep.subr.bf16.mxu0 0
        %6020 = vmatpush1.bf16.msra.mxu0 0
        %6021 = vmatprep.subr.bf16.mxu0 0
        %6022 = vmatpush1.bf16.msra.mxu0 0
        %6023 = vmatprep.subr.bf16.mxu0 0
        %6024 = vmatpush1.bf16.msra.mxu0 0
        %6025 = vmatprep.subr.bf16.mxu0 0
        %6026 = vmatpush1.bf16.msra.mxu0 0
        %6027 = vmatprep.subr.bf16.mxu0 0
        %6028 = vmatpush1.bf16.msra.mxu0 0
        %6029 = vmatprep.mubr.bf16.mxu0 0
        %6030 = vmatmul.mubr.bf16.gmra.mrb[0].mxu0 %v5889
        %v6031 = vpop.f32.mrb[0].mxu0
        %v6032 = vadd.f32 0.0, %v6031
        %v6033 = vpop.f32.mrb[0].mxu0
        %v6034 = vadd.f32 0.0, %v6033
        %v6035 = vpop.f32.mrb[0].mxu0
        %v6036 = vpop.f32.mrb[0].mxu0
        %6037 = vdwg.mxu0
        %6038 = vmatprep.subr.bf16.mxu0 %v5913
        %6039 = vmatpush1.bf16.msra.mxu0 %v5910
        %6040 = vmatprep.subr.bf16.mxu0 0
        %6041 = vmatpush1.bf16.msra.mxu0 0
        %6042 = vmatprep.subr.bf16.mxu0 0
        %6043 = vmatpush1.bf16.msra.mxu0 0
        %6044 = vmatprep.subr.bf16.mxu0 0
        %6045 = vmatpush1.bf16.msra.mxu0 0
        %6046 = vmatprep.subr.bf16.mxu0 0
        %6047 = vmatpush1.bf16.msra.mxu0 0
        %6048 = vmatprep.subr.bf16.mxu0 0
        %6049 = vmatpush1.bf16.msra.mxu0 0
        %6050 = vmatprep.subr.bf16.mxu0 0
        %6051 = vmatpush1.bf16.msra.mxu0 0
        %6052 = vmatprep.subr.bf16.mxu0 0
        %6053 = vmatpush1.bf16.msra.mxu0 0
        %6054 = vmatprep.subr.bf16.mxu0 0
        %6055 = vmatpush1.bf16.msra.mxu0 0
        %6056 = vmatprep.subr.bf16.mxu0 0
        %6057 = vmatpush1.bf16.msra.mxu0 0
        %6058 = vmatprep.subr.bf16.mxu0 0
        %6059 = vmatpush1.bf16.msra.mxu0 0
        %6060 = vmatprep.subr.bf16.mxu0 0
        %6061 = vmatpush1.bf16.msra.mxu0 0
        %6062 = vmatprep.subr.bf16.mxu0 0
        %6063 = vmatpush1.bf16.msra.mxu0 0
        %6064 = vmatprep.subr.bf16.mxu0 0
        %6065 = vmatpush1.bf16.msra.mxu0 0
        %6066 = vmatprep.subr.bf16.mxu0 0
        %6067 = vmatpush1.bf16.msra.mxu0 0
        %6068 = vmatprep.subr.bf16.mxu0 0
        %6069 = vmatpush1.bf16.msra.mxu0 0
        %6070 = vmatprep.mubr.bf16.mxu0 0
        %6071 = vmatmul.mubr.bf16.gmra.mrb[0].mxu0 %v5889
        %v6072 = vpop.f32.mrb[0].mxu0
        %v6073 = vadd.f32 0.0, %v6072
        %v6074 = vpop.f32.mrb[0].mxu0
        %v6075 = vadd.f32 0.0, %v6074
        %v6076 = vpop.f32.mrb[0].mxu0
        %v6077 = vpop.f32.mrb[0].mxu0
        %6078 = vdwg.mxu0
        %v6079 = vadd.f32 %v5824, %v5950
        %v6080 = vadd.f32 %v5825, %v5952
        %v6081 = vadd.f32 %v5826, %v5991
        %v6082 = vadd.f32 %v5827, %v5993
        %v6083 = vadd.f32 %v5828, %v6032
        %v6084 = vadd.f32 %v5829, %v6034
        %v6085 = vadd.f32 %v5830, %v6073
        %v6086 = vadd.f32 %v5831, %v6075
        %v6087 = vadd.f32 %v6079, %v6080
        %v6088 = vadd.f32 %v6087, %v6081
        %v6089 = vadd.f32 %v6088, %v6082
        %v6090 = vadd.f32 %v6089, %v6083
        %v6091 = vadd.f32 %v6090, %v6084
        %v6092 = vadd.f32 %v6091, %v6085
        %v6093 = vadd.f32 %v6092, %v6086
        %6094 = vadd.xlane.f32.xlu0 %v6093
        %v6095 = vpop.xlane.xlu0 %6094
        %v6096 = vmul.f32 %v6095, %v3753
        %v6097 = vsub.f32 %v6079, %v6096
        %v6098 = vsub.f32 %v6080, %v6096
        %v6099 = vsub.f32 %v6081, %v6096
        %v6100 = vsub.f32 %v6082, %v6096
        %v6101 = vsub.f32 %v6083, %v6096
        %v6102 = vsub.f32 %v6084, %v6096
        %v6103 = vsub.f32 %v6085, %v6096
        %v6104 = vsub.f32 %v6086, %v6096
        %v6105 = vmul.f32 %v6097, %v6097
        %v6106 = vmul.f32 %v6098, %v6098
        %v6107 = vmul.f32 %v6099, %v6099
        %v6108 = vmul.f32 %v6100, %v6100
        %v6109 = vmul.f32 %v6101, %v6101
        %v6110 = vmul.f32 %v6102, %v6102
        %v6111 = vmul.f32 %v6103, %v6103
        %v6112 = vmul.f32 %v6104, %v6104
        %v6113 = vadd.f32 %v6105, %v6106
        %v6114 = vadd.f32 %v6113, %v6107
        %v6115 = vadd.f32 %v6114, %v6108
        %v6116 = vadd.f32 %v6115, %v6109
        %v6117 = vadd.f32 %v6116, %v6110
        %v6118 = vadd.f32 %v6117, %v6111
        %v6119 = vadd.f32 %v6118, %v6112
        %6120 = vadd.xlane.f32.xlu0 %v6119
        %v6121 = vpop.xlane.xlu0 %6120
        %v6122 = vmul.f32 %v6121, %v3753
        %v6123 = vadd.f32 %v6122, 1e-05
        %v6124 = vrsqrt.pop %v6123
        %v6125 = vmul.f32 %v6097, %v6124
        %v6126 = vmul.f32 %v6098, %v6124
        %v6127 = vmul.f32 %v6099, %v6124
        %v6128 = vmul.f32 %v6100, %v6124
        %v6129 = vmul.f32 %v6101, %v6124
        %v6130 = vmul.f32 %v6102, %v6124
        %v6131 = vmul.f32 %v6103, %v6124
        %v6132 = vmul.f32 %v6104, %v6124
        %v6133 = vmax.f32 %v6125, 0.0
        %v6134 = vmax.f32 %v6126, 0.0
        %v6135 = vmax.f32 %v6127, 0.0
        %v6136 = vmax.f32 %v6128, 0.0
        %v6137 = vmax.f32 %v6129, 0.0
        %v6138 = vmax.f32 %v6130, 0.0
        %v6139 = vmax.f32 %v6131, 0.0
        %v6140 = vmax.f32 %v6132, 0.0
        %6141 = vst [vmem:[%s239] sm:$0xff] %v6133
        %6142 = vst [vmem:[%s239 + $0x8] sm:$0xff] %v6134
        %6143 = vst [vmem:[%s239 + $0x10] sm:$0xff] %v6135
        %6144 = vst [vmem:[%s239 + $0x18] sm:$0xff] %v6136
        %6145 = vst [vmem:[%s239 + $0x20] sm:$0xff] %v6137
        %6146 = vst [vmem:[%s239 + $0x28] sm:$0xff] %v6138
        %6147 = vst [vmem:[%s239 + $0x30] sm:$0xff] %v6139
        %6148 = vst [vmem:[%s239 + $0x38] sm:$0xff] %v6140
        %p6149 = scmp.lt.s32.totalorder %s17, 1
        %s6150 = scalar_select %p6149, %s17, 1
        %s6151 = smul.addr %s6150, 8
        %s6152 = smul.addr %s6151, 8
        %s6153 = scalar_lea.vmem %s5, %s6152
        // Predicated region
        $region45: #{upsample_conv_forward.1} parent=39 // pred_check
          %p6154 = pneg %p145
        $region46: #{upsample_conv_forward.1} parent=39 // pred_check_branch
          %6156 = sbr.rel (%p6154) target = $region48
        $region47: #{upsample_conv_forward.1} parent=39 // pred_region
          _
        $region48: #{upsample_conv_forward.1} parent=39 // pred_fallthru
          _
      $region40: #{upsample_conv_forward.1} parent=5 // pred_fallthru
        _
      %p6157 = scmp.le.s32.totalorder 2, %s12
      // Predicated region
      $region49: #{upsample_conv_forward.1} parent=5 // pred_check
        %p6158 = pneg %p6157
      $region50: #{upsample_conv_forward.1} parent=5 // pred_check_branch
        %6160 = sbr.rel (%p6158) target = $region52
      $region51: #{upsample_conv_forward.1} parent=5 // pred_region
        %s6161 = ssub.s32 %s12, 2
        // Predicated region
        $region53: #{upsample_conv_forward.1} parent=51 // pred_check
          %p6162 = pneg %p151
        $region54: #{upsample_conv_forward.1} parent=51 // pred_check_branch
          %6164 = sbr.rel (%p6162) target = $region56
        $region55: #{upsample_conv_forward.1} parent=51 // pred_region
          %p6165 = scmp.lt.s32.totalorder %s18, 1
          %s6166 = scalar_select %p6165, %s18, 1
          %s6167 = smul.addr %s6166, 8
          %s6168 = smul.addr %s6167, 8
          %s6169 = scalar_lea.vmem %s5, %s6168
        $region56: #{upsample_conv_forward.1} parent=51 // pred_fallthru
          _
      $region52: #{upsample_conv_forward.1} parent=5 // pred_fallthru
        _
    $region6: #{upsample_conv_forward.1} parent=1 // loop_footer
      %s16 = sadd.s32 1, %s12
    $region7: #{upsample_conv_forward.1} parent=1 // loop_footer_branch
      %11 = sbr.rel target = $region3
    $region8: #{upsample_conv_forward.1} parent=1 // loop_exit
      _
    %6170 = vsyncpa [#allocation4], 1
    %s6171 = scalar_lea.sflag [#allocation4], 1
    %6172 = vsyncpa %s6171, 1

</llo_original>
